<compile_context>
chip_gen: v5e
topology: v5e:2x2
jax: 0.10.0
libtpu: 0.0.40
codegen_flags: <defaults>
</compile_context>

<pallas_src>
import jax
import jax.numpy as jnp
from jax.experimental import pallas as pl
from jax.experimental.pallas import tpu as pltpu


def _round_up(x, m):
    return ((x + m - 1) // m) * m


def _pick_row_tile(H, max_rows=8):
    # Largest divisor of H not exceeding max_rows (keeps f32 working set modest
    # and gives the pipeliner several grid steps per batch).
    for th in range(min(H, max_rows), 0, -1):
        if H % th == 0:
            return th
    return 1


# ---------------------------------------------------------------------------
# Fused kernel: 1x1 conv + SiLU  ->  depthwise 3x3  ->  GLU  ->  1x1 conv
# One (batch, row-tile) of the image per grid step.
# ---------------------------------------------------------------------------
def _glumb_fused_kernel(xm_ref, xh1_ref, xh2_ref, wix_ref, wig_ref,
                        dwx_ref, dwg_ref, pw_ref, o_ref, xbuf_ref):
    _, TH, W, out_dim = o_ref.shape          # output row tile
    _, _, Wp, C = xm_ref.shape               # padded-width input rows
    hid = wix_ref.shape[1]

    # -- assemble the (TH+2)-row window of the spatially zero-padded input ----
    # main TH rows + two 1-row halos (either zero-pad rows at the image border
    # or real rows owned by the neighbouring row tile).
    xbuf_ref[0:TH, :, :] = xm_ref[0]
    xbuf_ref[TH:TH + 1, :, :] = xh1_ref[0]
    xbuf_ref[TH + 1:TH + 2, :, :] = xh2_ref[0]
    x2d = xbuf_ref[...].reshape((TH + 2) * Wp, C)

    # -- inverted 1x1 conv + SiLU (native dtype in, f32 accumulate) -----------
    hx = jnp.dot(x2d, wix_ref[...], preferred_element_type=jnp.float32)
    hg = jnp.dot(x2d, wig_ref[...], preferred_element_type=jnp.float32)
    hx = (hx * jax.nn.sigmoid(hx)).reshape(TH + 2, Wp, hid)
    hg = (hg * jax.nn.sigmoid(hg)).reshape(TH + 2, Wp, hid)

    # -- depthwise 3x3 conv: 9 shifted multiply-accumulates (VPU) -------------
    dwx = dwx_ref[...].astype(jnp.float32)   # (9, hid)
    dwg = dwg_ref[...].astype(jnp.float32)
    acc_x = jnp.zeros((TH, W, hid), jnp.float32)
    acc_g = jnp.zeros((TH, W, hid), jnp.float32)
    for kw in range(3):
        # one W-window slice per kw (sublane axis); row (kh) slices are cheap
        hx_w = hx[:, kw:kw + W, :]
        hg_w = hg[:, kw:kw + W, :]
        for kh in range(3):
            tap = kh * 3 + kw
            acc_x = acc_x + hx_w[kh:kh + TH] * dwx[tap]
            acc_g = acc_g + hg_w[kh:kh + TH] * dwg[tap]

    # -- GLU gating: x * SiLU(gate), in f32 -----------------------------------
    gated = acc_x * (acc_g * jax.nn.sigmoid(acc_g))

    # -- pointwise 1x1 conv (hid -> out_dim) on the MXU ------------------------
    y = jnp.dot(gated.reshape(TH * W, hid).astype(pw_ref.dtype), pw_ref[...],
                preferred_element_type=jnp.float32)
    o_ref[...] = y.reshape(1, TH, W, out_dim).astype(o_ref.dtype)


# ---------------------------------------------------------------------------
# Wrapper (layout plumbing + pallas_call)
# ---------------------------------------------------------------------------
def glumb_conv(x, w_inv, w_dw, w_pw, HW=None):
    """GLUMBConv forward.

    x    : (B, N, C)          tokens, N = H*W row-major
    w_inv: (C, 2*hidden)      PyTorch inverted_conv weight (2*hid, C, 1, 1) transposed
    w_dw : (3, 3, 2*hidden)   PyTorch depth_conv weight (2*hid, 1, 3, 3) permuted
    w_pw : (hidden, out_dim)  PyTorch point_conv weight (out, hid, 1, 1) transposed
    """
    B, N, C = x.shape
    if HW is None:
        H = W = int(round(N ** 0.5))
        if H * W != N:
            raise ValueError(f"N={N} is not a perfect square; pass HW explicitly")
    else:
        H, W = HW
        if H * W != N:
            raise ValueError(f"HW={HW} inconsistent with N={N}")

    hid2 = w_inv.shape[1]
    hid = hid2 // 2
    out_dim = w_pw.shape[1]

    TH = _pick_row_tile(H)
    Wp = _round_up(W + 2, 8)                 # padded width, sublane aligned

    # Spatially zero-pad the narrow input once (the only extra HBM traffic).
    x_img = x.reshape(B, H, W, C)
    x_pad = jnp.pad(x_img, ((0, 0), (1, 1), (1, Wp - W - 1), (0, 0)))

    # Split GLU halves / flatten depthwise taps in the wrapper.
    w_inv_x = w_inv[:, :hid]
    w_inv_g = w_inv[:, hid:]
    w_dw9 = w_dw.reshape(9, hid2)
    w_dw_x = w_dw9[:, :hid]
    w_dw_g = w_dw9[:, hid:]

    flops = 2 * B * H * W * (C * hid2 + 9 * hid2 + hid * out_dim)
    transcendentals = B * H * W * (hid2 + hid)
    bytes_accessed = (x_pad.size * x_pad.dtype.itemsize
                      + (w_inv.size + w_dw.size + w_pw.size) * w_inv.dtype.itemsize
                      + B * H * W * out_dim * x.dtype.itemsize)

    y = pl.pallas_call(
        _glumb_fused_kernel,
        out_shape=jax.ShapeDtypeStruct((B, H, W, out_dim), x.dtype),
        grid=(B, H // TH),
        in_specs=[
            # main TH padded-input rows of this row tile
            pl.BlockSpec((1, TH, Wp, C), lambda b, r: (b, r, 0, 0)),
            # two 1-row halos below the tile (block row size 1 => element index)
            pl.BlockSpec((1, 1, Wp, C), lambda b, r: (b, (r + 1) * TH, 0, 0)),
            pl.BlockSpec((1, 1, Wp, C), lambda b, r: (b, (r + 1) * TH + 1, 0, 0)),
            # weights: constant index maps -> VMEM-resident across the grid
            pl.BlockSpec((C, hid), lambda b, r: (0, 0)),
            pl.BlockSpec((C, hid), lambda b, r: (0, 0)),
            pl.BlockSpec((9, hid), lambda b, r: (0, 0)),
            pl.BlockSpec((9, hid), lambda b, r: (0, 0)),
            pl.BlockSpec((hid, out_dim), lambda b, r: (0, 0)),
        ],
        out_specs=pl.BlockSpec((1, TH, W, out_dim), lambda b, r: (b, r, 0, 0)),
        scratch_shapes=[pltpu.VMEM((TH + 2, Wp, C), x.dtype)],
        compiler_params=pltpu.CompilerParams(
            dimension_semantics=("parallel", "parallel"),
            vmem_limit_bytes=32 * 1024 * 1024,
        ),
        cost_estimate=pl.CostEstimate(
            flops=flops, transcendentals=transcendentals,
            bytes_accessed=bytes_accessed),
    )(x_pad, x_pad, x_pad, w_inv_x, w_inv_g, w_dw_x, w_dw_g, w_pw)

    return y.reshape(B, N, out_dim)


# ---------------------------------------------------------------------------
# Pure-JAX reference (same math) for correctness checking.
# ---------------------------------------------------------------------------
def reference(x, w_inv, w_dw, w_pw, H, W):
    B, N, C = x.shape
    h = jnp.einsum("bnc,ch->bnh", x, w_inv)
    h = h * jax.nn.sigmoid(h)
    h = h.reshape(B, H, W, -1)
    hp = jnp.pad(h, ((0, 0), (1, 1), (1, 1), (0, 0)))
    acc = jnp.zeros_like(h)
    for kh in range(3):
        for kw in range(3):
            acc = acc + hp[:, kh:kh + H, kw:kw + W, :] * w_dw[kh, kw, :]
    hid = acc.shape[-1] // 2
    xx, gate = acc[..., :hid], acc[..., hid:]
    g = xx * (gate * jax.nn.sigmoid(gate))
    y = jnp.einsum("bhwk,ko->bhwo", g, w_pw)
    return y.reshape(B, N, -1)


if __name__ == "__main__":
    key = jax.random.PRNGKey(0)
    B, H, W = 2, 16, 16          # H > TH so the interior row-halo path is exercised
    N = H * W
    C_in = 16                    # in_features == out_feature (GLUMBConv default)
    hidden = 32                  # hidden_features

    k1, k2, k3, k4 = jax.random.split(key, 4)
    x = jax.random.normal(k1, (B, N, C_in), jnp.float32)
    # Conv weights (deterministic, synthetic). PyTorch shapes would be:
    #   inverted_conv: (2*hidden, C_in, 1, 1) -> stored here as (C_in, 2*hidden)
    #   depth_conv   : (2*hidden, 1, 3, 3)    -> stored here as (3, 3, 2*hidden)
    #   point_conv   : (C_in, hidden, 1, 1)   -> stored here as (hidden, C_in)
    w_inv = jax.random.normal(k2, (C_in, 2 * hidden), jnp.float32) * 0.1
    w_dw = jax.random.normal(k3, (3, 3, 2 * hidden), jnp.float32) * 0.1
    w_pw = jax.random.normal(k4, (hidden, C_in), jnp.float32) * 0.1

    y = glumb_conv(x, w_inv, w_dw, w_pw)
    y = jax.block_until_ready(y)

    y_ref = reference(x, w_inv, w_dw, w_pw, H, W)
    assert y.shape == (B, N, C_in), y.shape
    assert jnp.allclose(y, y_ref, atol=1e-4, rtol=1e-4), "mismatch vs reference"
    print("KERNEL_OK")
</pallas_src>

<mosaic_0001>
module attributes {stable_mosaic.version = 11 : i64} {
  func.func @_glumb_fused_kernel(%arg0: i32, %arg1: i32, %arg2: memref<1x8x24x16xf32, #tpu.memory_space<vmem>>, %arg3: memref<1x1x24x16xf32, #tpu.memory_space<vmem>>, %arg4: memref<1x1x24x16xf32, #tpu.memory_space<vmem>>, %arg5: memref<16x32xf32, #tpu.memory_space<vmem>>, %arg6: memref<16x32xf32, #tpu.memory_space<vmem>>, %arg7: memref<9x32xf32, #tpu.memory_space<vmem>>, %arg8: memref<9x32xf32, #tpu.memory_space<vmem>>, %arg9: memref<32x16xf32, #tpu.memory_space<vmem>>, %arg10: memref<1x8x16x16xf32, #tpu.memory_space<vmem>>, %arg11: memref<10x24x16xf32, #tpu.memory_space<vmem>>) attributes {dimension_semantics = [#tpu.dimension_semantics<parallel>, #tpu.dimension_semantics<parallel>], iteration_bounds = array<i64: 2, 2>, scalar_prefetch = 0 : i64, scratch_operands = 1 : i64, tpu.core_type = #tpu.core_type<tc>, window_params = [{transform_indices = @transform_0, window_bounds = array<i64: 1, 8, 24, 16>}, {transform_indices = @transform_1, window_bounds = array<i64: 1, 1, 24, 16>}, {transform_indices = @transform_2, window_bounds = array<i64: 1, 1, 24, 16>}, {pipeline_mode = #tpu.pipeline_mode<synchronous>, transform_indices = @transform_3, window_bounds = array<i64: 16, 32>}, {pipeline_mode = #tpu.pipeline_mode<synchronous>, transform_indices = @transform_4, window_bounds = array<i64: 16, 32>}, {pipeline_mode = #tpu.pipeline_mode<synchronous>, transform_indices = @transform_5, window_bounds = array<i64: 9, 32>}, {pipeline_mode = #tpu.pipeline_mode<synchronous>, transform_indices = @transform_6, window_bounds = array<i64: 9, 32>}, {pipeline_mode = #tpu.pipeline_mode<synchronous>, transform_indices = @transform_7, window_bounds = array<i64: 32, 16>}, {transform_indices = @transform_8, window_bounds = array<i64: 1, 8, 16, 16>}]} {
    %c0 = arith.constant 0 : index
    %c0_0 = arith.constant 0 : index
    %c0_1 = arith.constant 0 : index
    %c0_2 = arith.constant 0 : index
    %0 = vector.load %arg2[%c0, %c0_0, %c0_1, %c0_2] : memref<1x8x24x16xf32, #tpu.memory_space<vmem>>, vector<1x8x24x16xf32>
    %1 = vector.shape_cast %0 : vector<1x8x24x16xf32> to vector<8x24x16xf32>
    %c0_3 = arith.constant 0 : index
    %c0_4 = arith.constant 0 : index
    %c0_5 = arith.constant 0 : index
    %2 = vector.load %arg11[%c0_3, %c0_4, %c0_5] : memref<10x24x16xf32, #tpu.memory_space<vmem>>, vector<8x24x16xf32>
    tpu.vector_store %arg11[%c0_3, %c0_4, %c0_5], %1 {strides = array<i32>} : memref<10x24x16xf32, #tpu.memory_space<vmem>>, vector<8x24x16xf32>,
    %c0_6 = arith.constant 0 : index
    %c0_7 = arith.constant 0 : index
    %c0_8 = arith.constant 0 : index
    %c0_9 = arith.constant 0 : index
    %3 = vector.load %arg3[%c0_6, %c0_7, %c0_8, %c0_9] : memref<1x1x24x16xf32, #tpu.memory_space<vmem>>, vector<1x1x24x16xf32>
    %4 = vector.shape_cast %3 : vector<1x1x24x16xf32> to vector<1x24x16xf32>
    %c8 = arith.constant 8 : index
    %c0_10 = arith.constant 0 : index
    %c0_11 = arith.constant 0 : index
    %5 = vector.load %arg11[%c8, %c0_10, %c0_11] : memref<10x24x16xf32, #tpu.memory_space<vmem>>, vector<1x24x16xf32>
    tpu.vector_store %arg11[%c8, %c0_10, %c0_11], %4 {strides = array<i32>} : memref<10x24x16xf32, #tpu.memory_space<vmem>>, vector<1x24x16xf32>,
    %c0_12 = arith.constant 0 : index
    %c0_13 = arith.constant 0 : index
    %c0_14 = arith.constant 0 : index
    %c0_15 = arith.constant 0 : index
    %6 = vector.load %arg4[%c0_12, %c0_13, %c0_14, %c0_15] : memref<1x1x24x16xf32, #tpu.memory_space<vmem>>, vector<1x1x24x16xf32>
    %7 = vector.shape_cast %6 : vector<1x1x24x16xf32> to vector<1x24x16xf32>
    %c9 = arith.constant 9 : index
    %c0_16 = arith.constant 0 : index
    %c0_17 = arith.constant 0 : index
    %8 = vector.load %arg11[%c9, %c0_16, %c0_17] : memref<10x24x16xf32, #tpu.memory_space<vmem>>, vector<1x24x16xf32>
    tpu.vector_store %arg11[%c9, %c0_16, %c0_17], %7 {strides = array<i32>} : memref<10x24x16xf32, #tpu.memory_space<vmem>>, vector<1x24x16xf32>,
    %c0_18 = arith.constant 0 : index
    %c0_19 = arith.constant 0 : index
    %c0_20 = arith.constant 0 : index
    %9 = vector.load %arg11[%c0_18, %c0_19, %c0_20] : memref<10x24x16xf32, #tpu.memory_space<vmem>>, vector<10x24x16xf32>
    %10 = vector.shape_cast %9 : vector<10x24x16xf32> to vector<240x16xf32>
    %c0_21 = arith.constant 0 : index
    %c0_22 = arith.constant 0 : index
    %11 = vector.load %arg5[%c0_21, %c0_22] : memref<16x32xf32, #tpu.memory_space<vmem>>, vector<16x32xf32>
    %cst = arith.constant dense<0.000000e+00> : vector<240x32xf32>
    %12 = tpu.matmul %10, %11, %cst {dimension_numbers = #tpu.dot_dimension_numbers<[1], [0], [0], [1], [0, 0, 1, 1], [], []>} : vector<240x16xf32>, vector<16x32xf32>, vector<240x32xf32> -> vector<240x32xf32>
    %c0_23 = arith.constant 0 : index
    %c0_24 = arith.constant 0 : index
    %13 = vector.load %arg6[%c0_23, %c0_24] : memref<16x32xf32, #tpu.memory_space<vmem>>, vector<16x32xf32>
    %cst_25 = arith.constant dense<0.000000e+00> : vector<240x32xf32>
    %14 = tpu.matmul %10, %13, %cst_25 {dimension_numbers = #tpu.dot_dimension_numbers<[1], [0], [0], [1], [0, 0, 1, 1], [], []>} : vector<240x16xf32>, vector<16x32xf32>, vector<240x32xf32> -> vector<240x32xf32>
    %15 = arith.negf %12 : vector<240x32xf32>
    %16 = math.exp %15 : vector<240x32xf32>
    %cst_26 = arith.constant 1.000000e+00 : f32
    %17 = vector.broadcast %cst_26 : f32 to vector<240x32xf32>
    %18 = arith.addf %17, %16 : vector<240x32xf32>
    %19 = arith.divf %17, %18 : vector<240x32xf32>
    %20 = arith.mulf %12, %19 : vector<240x32xf32>
    %21 = vector.shape_cast %20 : vector<240x32xf32> to vector<10x24x32xf32>
    %22 = arith.negf %14 : vector<240x32xf32>
    %23 = math.exp %22 : vector<240x32xf32>
    %cst_27 = arith.constant 1.000000e+00 : f32
    %24 = vector.broadcast %cst_27 : f32 to vector<240x32xf32>
    %25 = arith.addf %24, %23 : vector<240x32xf32>
    %26 = arith.divf %24, %25 : vector<240x32xf32>
    %27 = arith.mulf %14, %26 : vector<240x32xf32>
    %28 = vector.shape_cast %27 : vector<240x32xf32> to vector<10x24x32xf32>
    %c0_28 = arith.constant 0 : index
    %c0_29 = arith.constant 0 : index
    %29 = vector.load %arg7[%c0_28, %c0_29] : memref<9x32xf32, #tpu.memory_space<vmem>>, vector<9x32xf32>
    %c0_30 = arith.constant 0 : index
    %c0_31 = arith.constant 0 : index
    %30 = vector.load %arg8[%c0_30, %c0_31] : memref<9x32xf32, #tpu.memory_space<vmem>>, vector<9x32xf32>
    %cst_32 = arith.constant 0.000000e+00 : f32
    %31 = vector.broadcast %cst_32 : f32 to vector<8x16x32xf32>
    %cst_33 = arith.constant 0.000000e+00 : f32
    %32 = vector.broadcast %cst_33 : f32 to vector<8x16x32xf32>
    %33 = vector.extract_strided_slice %21 {offsets = [0, 0, 0], sizes = [10, 16, 32], strides = [1, 1, 1]} : vector<10x24x32xf32> to vector<10x16x32xf32>
    %34 = vector.extract_strided_slice %28 {offsets = [0, 0, 0], sizes = [10, 16, 32], strides = [1, 1, 1]} : vector<10x24x32xf32> to vector<10x16x32xf32>
    %35 = vector.extract_strided_slice %33 {offsets = [0, 0, 0], sizes = [8, 16, 32], strides = [1, 1, 1]} : vector<10x16x32xf32> to vector<8x16x32xf32>
    %36 = vector.extract_strided_slice %29 {offsets = [0, 0], sizes = [1, 32], strides = [1, 1]} : vector<9x32xf32> to vector<1x32xf32>
    %37 = vector.shape_cast %36 : vector<1x32xf32> to vector<32xf32>
    %38 = vector.shape_cast %37 : vector<32xf32> to vector<1x1x32xf32>
    %39 = vector.broadcast %38 : vector<1x1x32xf32> to vector<8x16x32xf32>
    %40 = arith.mulf %35, %39 : vector<8x16x32xf32>
    %41 = arith.addf %31, %40 : vector<8x16x32xf32>
    %42 = vector.extract_strided_slice %34 {offsets = [0, 0, 0], sizes = [8, 16, 32], strides = [1, 1, 1]} : vector<10x16x32xf32> to vector<8x16x32xf32>
    %43 = vector.extract_strided_slice %30 {offsets = [0, 0], sizes = [1, 32], strides = [1, 1]} : vector<9x32xf32> to vector<1x32xf32>
    %44 = vector.shape_cast %43 : vector<1x32xf32> to vector<32xf32>
    %45 = vector.shape_cast %44 : vector<32xf32> to vector<1x1x32xf32>
    %46 = vector.broadcast %45 : vector<1x1x32xf32> to vector<8x16x32xf32>
    %47 = arith.mulf %42, %46 : vector<8x16x32xf32>
    %48 = arith.addf %32, %47 : vector<8x16x32xf32>
    %49 = vector.extract_strided_slice %33 {offsets = [1, 0, 0], sizes = [8, 16, 32], strides = [1, 1, 1]} : vector<10x16x32xf32> to vector<8x16x32xf32>
    %50 = vector.extract_strided_slice %29 {offsets = [3, 0], sizes = [1, 32], strides = [1, 1]} : vector<9x32xf32> to vector<1x32xf32>
    %51 = vector.shape_cast %50 : vector<1x32xf32> to vector<32xf32>
    %52 = vector.shape_cast %51 : vector<32xf32> to vector<1x1x32xf32>
    %53 = vector.broadcast %52 : vector<1x1x32xf32> to vector<8x16x32xf32>
    %54 = arith.mulf %49, %53 : vector<8x16x32xf32>
    %55 = arith.addf %41, %54 : vector<8x16x32xf32>
    %56 = vector.extract_strided_slice %34 {offsets = [1, 0, 0], sizes = [8, 16, 32], strides = [1, 1, 1]} : vector<10x16x32xf32> to vector<8x16x32xf32>
    %57 = vector.extract_strided_slice %30 {offsets = [3, 0], sizes = [1, 32], strides = [1, 1]} : vector<9x32xf32> to vector<1x32xf32>
    %58 = vector.shape_cast %57 : vector<1x32xf32> to vector<32xf32>
    %59 = vector.shape_cast %58 : vector<32xf32> to vector<1x1x32xf32>
    %60 = vector.broadcast %59 : vector<1x1x32xf32> to vector<8x16x32xf32>
    %61 = arith.mulf %56, %60 : vector<8x16x32xf32>
    %62 = arith.addf %48, %61 : vector<8x16x32xf32>
    %63 = vector.extract_strided_slice %33 {offsets = [2, 0, 0], sizes = [8, 16, 32], strides = [1, 1, 1]} : vector<10x16x32xf32> to vector<8x16x32xf32>
    %64 = vector.extract_strided_slice %29 {offsets = [6, 0], sizes = [1, 32], strides = [1, 1]} : vector<9x32xf32> to vector<1x32xf32>
    %65 = vector.shape_cast %64 : vector<1x32xf32> to vector<32xf32>
    %66 = vector.shape_cast %65 : vector<32xf32> to vector<1x1x32xf32>
    %67 = vector.broadcast %66 : vector<1x1x32xf32> to vector<8x16x32xf32>
    %68 = arith.mulf %63, %67 : vector<8x16x32xf32>
    %69 = arith.addf %55, %68 : vector<8x16x32xf32>
    %70 = vector.extract_strided_slice %34 {offsets = [2, 0, 0], sizes = [8, 16, 32], strides = [1, 1, 1]} : vector<10x16x32xf32> to vector<8x16x32xf32>
    %71 = vector.extract_strided_slice %30 {offsets = [6, 0], sizes = [1, 32], strides = [1, 1]} : vector<9x32xf32> to vector<1x32xf32>
    %72 = vector.shape_cast %71 : vector<1x32xf32> to vector<32xf32>
    %73 = vector.shape_cast %72 : vector<32xf32> to vector<1x1x32xf32>
    %74 = vector.broadcast %73 : vector<1x1x32xf32> to vector<8x16x32xf32>
    %75 = arith.mulf %70, %74 : vector<8x16x32xf32>
    %76 = arith.addf %62, %75 : vector<8x16x32xf32>
    %77 = vector.extract_strided_slice %21 {offsets = [0, 1, 0], sizes = [10, 16, 32], strides = [1, 1, 1]} : vector<10x24x32xf32> to vector<10x16x32xf32>
    %78 = vector.extract_strided_slice %28 {offsets = [0, 1, 0], sizes = [10, 16, 32], strides = [1, 1, 1]} : vector<10x24x32xf32> to vector<10x16x32xf32>
    %79 = vector.extract_strided_slice %77 {offsets = [0, 0, 0], sizes = [8, 16, 32], strides = [1, 1, 1]} : vector<10x16x32xf32> to vector<8x16x32xf32>
    %80 = vector.extract_strided_slice %29 {offsets = [1, 0], sizes = [1, 32], strides = [1, 1]} : vector<9x32xf32> to vector<1x32xf32>
    %81 = vector.shape_cast %80 : vector<1x32xf32> to vector<32xf32>
    %82 = vector.shape_cast %81 : vector<32xf32> to vector<1x1x32xf32>
    %83 = vector.broadcast %82 : vector<1x1x32xf32> to vector<8x16x32xf32>
    %84 = arith.mulf %79, %83 : vector<8x16x32xf32>
    %85 = arith.addf %69, %84 : vector<8x16x32xf32>
    %86 = vector.extract_strided_slice %78 {offsets = [0, 0, 0], sizes = [8, 16, 32], strides = [1, 1, 1]} : vector<10x16x32xf32> to vector<8x16x32xf32>
    %87 = vector.extract_strided_slice %30 {offsets = [1, 0], sizes = [1, 32], strides = [1, 1]} : vector<9x32xf32> to vector<1x32xf32>
    %88 = vector.shape_cast %87 : vector<1x32xf32> to vector<32xf32>
    %89 = vector.shape_cast %88 : vector<32xf32> to vector<1x1x32xf32>
    %90 = vector.broadcast %89 : vector<1x1x32xf32> to vector<8x16x32xf32>
    %91 = arith.mulf %86, %90 : vector<8x16x32xf32>
    %92 = arith.addf %76, %91 : vector<8x16x32xf32>
    %93 = vector.extract_strided_slice %77 {offsets = [1, 0, 0], sizes = [8, 16, 32], strides = [1, 1, 1]} : vector<10x16x32xf32> to vector<8x16x32xf32>
    %94 = vector.extract_strided_slice %29 {offsets = [4, 0], sizes = [1, 32], strides = [1, 1]} : vector<9x32xf32> to vector<1x32xf32>
    %95 = vector.shape_cast %94 : vector<1x32xf32> to vector<32xf32>
    %96 = vector.shape_cast %95 : vector<32xf32> to vector<1x1x32xf32>
    %97 = vector.broadcast %96 : vector<1x1x32xf32> to vector<8x16x32xf32>
    %98 = arith.mulf %93, %97 : vector<8x16x32xf32>
    %99 = arith.addf %85, %98 : vector<8x16x32xf32>
    %100 = vector.extract_strided_slice %78 {offsets = [1, 0, 0], sizes = [8, 16, 32], strides = [1, 1, 1]} : vector<10x16x32xf32> to vector<8x16x32xf32>
    %101 = vector.extract_strided_slice %30 {offsets = [4, 0], sizes = [1, 32], strides = [1, 1]} : vector<9x32xf32> to vector<1x32xf32>
    %102 = vector.shape_cast %101 : vector<1x32xf32> to vector<32xf32>
    %103 = vector.shape_cast %102 : vector<32xf32> to vector<1x1x32xf32>
    %104 = vector.broadcast %103 : vector<1x1x32xf32> to vector<8x16x32xf32>
    %105 = arith.mulf %100, %104 : vector<8x16x32xf32>
    %106 = arith.addf %92, %105 : vector<8x16x32xf32>
    %107 = vector.extract_strided_slice %77 {offsets = [2, 0, 0], sizes = [8, 16, 32], strides = [1, 1, 1]} : vector<10x16x32xf32> to vector<8x16x32xf32>
    %108 = vector.extract_strided_slice %29 {offsets = [7, 0], sizes = [1, 32], strides = [1, 1]} : vector<9x32xf32> to vector<1x32xf32>
    %109 = vector.shape_cast %108 : vector<1x32xf32> to vector<32xf32>
    %110 = vector.shape_cast %109 : vector<32xf32> to vector<1x1x32xf32>
    %111 = vector.broadcast %110 : vector<1x1x32xf32> to vector<8x16x32xf32>
    %112 = arith.mulf %107, %111 : vector<8x16x32xf32>
    %113 = arith.addf %99, %112 : vector<8x16x32xf32>
    %114 = vector.extract_strided_slice %78 {offsets = [2, 0, 0], sizes = [8, 16, 32], strides = [1, 1, 1]} : vector<10x16x32xf32> to vector<8x16x32xf32>
    %115 = vector.extract_strided_slice %30 {offsets = [7, 0], sizes = [1, 32], strides = [1, 1]} : vector<9x32xf32> to vector<1x32xf32>
    %116 = vector.shape_cast %115 : vector<1x32xf32> to vector<32xf32>
    %117 = vector.shape_cast %116 : vector<32xf32> to vector<1x1x32xf32>
    %118 = vector.broadcast %117 : vector<1x1x32xf32> to vector<8x16x32xf32>
    %119 = arith.mulf %114, %118 : vector<8x16x32xf32>
    %120 = arith.addf %106, %119 : vector<8x16x32xf32>
    %121 = vector.extract_strided_slice %21 {offsets = [0, 2, 0], sizes = [10, 16, 32], strides = [1, 1, 1]} : vector<10x24x32xf32> to vector<10x16x32xf32>
    %122 = vector.extract_strided_slice %28 {offsets = [0, 2, 0], sizes = [10, 16, 32], strides = [1, 1, 1]} : vector<10x24x32xf32> to vector<10x16x32xf32>
    %123 = vector.extract_strided_slice %121 {offsets = [0, 0, 0], sizes = [8, 16, 32], strides = [1, 1, 1]} : vector<10x16x32xf32> to vector<8x16x32xf32>
    %124 = vector.extract_strided_slice %29 {offsets = [2, 0], sizes = [1, 32], strides = [1, 1]} : vector<9x32xf32> to vector<1x32xf32>
    %125 = vector.shape_cast %124 : vector<1x32xf32> to vector<32xf32>
    %126 = vector.shape_cast %125 : vector<32xf32> to vector<1x1x32xf32>
    %127 = vector.broadcast %126 : vector<1x1x32xf32> to vector<8x16x32xf32>
    %128 = arith.mulf %123, %127 : vector<8x16x32xf32>
    %129 = arith.addf %113, %128 : vector<8x16x32xf32>
    %130 = vector.extract_strided_slice %122 {offsets = [0, 0, 0], sizes = [8, 16, 32], strides = [1, 1, 1]} : vector<10x16x32xf32> to vector<8x16x32xf32>
    %131 = vector.extract_strided_slice %30 {offsets = [2, 0], sizes = [1, 32], strides = [1, 1]} : vector<9x32xf32> to vector<1x32xf32>
    %132 = vector.shape_cast %131 : vector<1x32xf32> to vector<32xf32>
    %133 = vector.shape_cast %132 : vector<32xf32> to vector<1x1x32xf32>
    %134 = vector.broadcast %133 : vector<1x1x32xf32> to vector<8x16x32xf32>
    %135 = arith.mulf %130, %134 : vector<8x16x32xf32>
    %136 = arith.addf %120, %135 : vector<8x16x32xf32>
    %137 = vector.extract_strided_slice %121 {offsets = [1, 0, 0], sizes = [8, 16, 32], strides = [1, 1, 1]} : vector<10x16x32xf32> to vector<8x16x32xf32>
    %138 = vector.extract_strided_slice %29 {offsets = [5, 0], sizes = [1, 32], strides = [1, 1]} : vector<9x32xf32> to vector<1x32xf32>
    %139 = vector.shape_cast %138 : vector<1x32xf32> to vector<32xf32>
    %140 = vector.shape_cast %139 : vector<32xf32> to vector<1x1x32xf32>
    %141 = vector.broadcast %140 : vector<1x1x32xf32> to vector<8x16x32xf32>
    %142 = arith.mulf %137, %141 : vector<8x16x32xf32>
    %143 = arith.addf %129, %142 : vector<8x16x32xf32>
    %144 = vector.extract_strided_slice %122 {offsets = [1, 0, 0], sizes = [8, 16, 32], strides = [1, 1, 1]} : vector<10x16x32xf32> to vector<8x16x32xf32>
    %145 = vector.extract_strided_slice %30 {offsets = [5, 0], sizes = [1, 32], strides = [1, 1]} : vector<9x32xf32> to vector<1x32xf32>
    %146 = vector.shape_cast %145 : vector<1x32xf32> to vector<32xf32>
    %147 = vector.shape_cast %146 : vector<32xf32> to vector<1x1x32xf32>
    %148 = vector.broadcast %147 : vector<1x1x32xf32> to vector<8x16x32xf32>
    %149 = arith.mulf %144, %148 : vector<8x16x32xf32>
    %150 = arith.addf %136, %149 : vector<8x16x32xf32>
    %151 = vector.extract_strided_slice %121 {offsets = [2, 0, 0], sizes = [8, 16, 32], strides = [1, 1, 1]} : vector<10x16x32xf32> to vector<8x16x32xf32>
    %152 = vector.extract_strided_slice %29 {offsets = [8, 0], sizes = [1, 32], strides = [1, 1]} : vector<9x32xf32> to vector<1x32xf32>
    %153 = vector.shape_cast %152 : vector<1x32xf32> to vector<32xf32>
    %154 = vector.shape_cast %153 : vector<32xf32> to vector<1x1x32xf32>
    %155 = vector.broadcast %154 : vector<1x1x32xf32> to vector<8x16x32xf32>
    %156 = arith.mulf %151, %155 : vector<8x16x32xf32>
    %157 = arith.addf %143, %156 : vector<8x16x32xf32>
    %158 = vector.extract_strided_slice %122 {offsets = [2, 0, 0], sizes = [8, 16, 32], strides = [1, 1, 1]} : vector<10x16x32xf32> to vector<8x16x32xf32>
    %159 = vector.extract_strided_slice %30 {offsets = [8, 0], sizes = [1, 32], strides = [1, 1]} : vector<9x32xf32> to vector<1x32xf32>
    %160 = vector.shape_cast %159 : vector<1x32xf32> to vector<32xf32>
    %161 = vector.shape_cast %160 : vector<32xf32> to vector<1x1x32xf32>
    %162 = vector.broadcast %161 : vector<1x1x32xf32> to vector<8x16x32xf32>
    %163 = arith.mulf %158, %162 : vector<8x16x32xf32>
    %164 = arith.addf %150, %163 : vector<8x16x32xf32>
    %165 = arith.negf %164 : vector<8x16x32xf32>
    %166 = math.exp %165 : vector<8x16x32xf32>
    %cst_34 = arith.constant 1.000000e+00 : f32
    %167 = vector.broadcast %cst_34 : f32 to vector<8x16x32xf32>
    %168 = arith.addf %167, %166 : vector<8x16x32xf32>
    %169 = arith.divf %167, %168 : vector<8x16x32xf32>
    %170 = arith.mulf %164, %169 : vector<8x16x32xf32>
    %171 = arith.mulf %157, %170 : vector<8x16x32xf32>
    %172 = vector.shape_cast %171 : vector<8x16x32xf32> to vector<128x32xf32>
    %c0_35 = arith.constant 0 : index
    %c0_36 = arith.constant 0 : index
    %173 = vector.load %arg9[%c0_35, %c0_36] : memref<32x16xf32, #tpu.memory_space<vmem>>, vector<32x16xf32>
    %cst_37 = arith.constant dense<0.000000e+00> : vector<128x16xf32>
    %174 = tpu.matmul %172, %173, %cst_37 {dimension_numbers = #tpu.dot_dimension_numbers<[1], [0], [0], [1], [0, 0, 1, 1], [], []>} : vector<128x32xf32>, vector<32x16xf32>, vector<128x16xf32> -> vector<128x16xf32>
    %175 = vector.shape_cast %174 : vector<128x16xf32> to vector<1x8x16x16xf32>
    %c0_38 = arith.constant 0 : index
    %c0_39 = arith.constant 0 : index
    %c0_40 = arith.constant 0 : index
    %c0_41 = arith.constant 0 : index
    %176 = vector.load %arg10[%c0_38, %c0_39, %c0_40, %c0_41] : memref<1x8x16x16xf32, #tpu.memory_space<vmem>>, vector<1x8x16x16xf32>
    tpu.vector_store %arg10[%c0_38, %c0_39, %c0_40, %c0_41], %175 {strides = array<i32>} : memref<1x8x16x16xf32, #tpu.memory_space<vmem>>, vector<1x8x16x16xf32>,
    return
  }
  func.func @transform_0(%arg0: i32, %arg1: i32) -> (i32, i32, i32, i32) {
    %c0_i32 = arith.constant 0 : i32
    %c0_i32_0 = arith.constant 0 : i32
    %c0_i32_1 = arith.constant 0 : i32
    return %arg0, %arg1, %c0_i32, %c0_i32_0 : i32, i32, i32, i32
  }
  func.func @transform_1(%arg0: i32, %arg1: i32) -> (i32, i32, i32, i32) {
    %c1_i32 = arith.constant 1 : i32
    %0 = arith.addi %arg1, %c1_i32 : i32
    %c8_i32 = arith.constant 8 : i32
    %1 = arith.muli %0, %c8_i32 : i32
    %c0_i32 = arith.constant 0 : i32
    %c0_i32_0 = arith.constant 0 : i32
    %c0_i32_1 = arith.constant 0 : i32
    return %arg0, %1, %c0_i32, %c0_i32_0 : i32, i32, i32, i32
  }
  func.func @transform_2(%arg0: i32, %arg1: i32) -> (i32, i32, i32, i32) {
    %c1_i32 = arith.constant 1 : i32
    %0 = arith.addi %arg1, %c1_i32 : i32
    %c8_i32 = arith.constant 8 : i32
    %1 = arith.muli %0, %c8_i32 : i32
    %c1_i32_0 = arith.constant 1 : i32
    %2 = arith.addi %1, %c1_i32_0 : i32
    %c0_i32 = arith.constant 0 : i32
    %c0_i32_1 = arith.constant 0 : i32
    %c0_i32_2 = arith.constant 0 : i32
    return %arg0, %2, %c0_i32, %c0_i32_1 : i32, i32, i32, i32
  }
  func.func @transform_3(%arg0: i32, %arg1: i32) -> (i32, i32) {
    %c0_i32 = arith.constant 0 : i32
    %c0_i32_0 = arith.constant 0 : i32
    %c0_i32_1 = arith.constant 0 : i32
    return %c0_i32, %c0_i32_0 : i32, i32
  }
  func.func @transform_4(%arg0: i32, %arg1: i32) -> (i32, i32) {
    %c0_i32 = arith.constant 0 : i32
    %c0_i32_0 = arith.constant 0 : i32
    %c0_i32_1 = arith.constant 0 : i32
    return %c0_i32, %c0_i32_0 : i32, i32
  }
  func.func @transform_5(%arg0: i32, %arg1: i32) -> (i32, i32) {
    %c0_i32 = arith.constant 0 : i32
    %c0_i32_0 = arith.constant 0 : i32
    %c0_i32_1 = arith.constant 0 : i32
    return %c0_i32, %c0_i32_0 : i32, i32
  }
  func.func @transform_6(%arg0: i32, %arg1: i32) -> (i32, i32) {
    %c0_i32 = arith.constant 0 : i32
    %c0_i32_0 = arith.constant 0 : i32
    %c0_i32_1 = arith.constant 0 : i32
    return %c0_i32, %c0_i32_0 : i32, i32
  }
  func.func @transform_7(%arg0: i32, %arg1: i32) -> (i32, i32) {
    %c0_i32 = arith.constant 0 : i32
    %c0_i32_0 = arith.constant 0 : i32
    %c0_i32_1 = arith.constant 0 : i32
    return %c0_i32, %c0_i32_0 : i32, i32
  }
  func.func @transform_8(%arg0: i32, %arg1: i32) -> (i32, i32, i32, i32) {
    %c0_i32 = arith.constant 0 : i32
    %c0_i32_0 = arith.constant 0 : i32
    %c0_i32_1 = arith.constant 0 : i32
    return %arg0, %arg1, %c0_i32, %c0_i32_0 : i32, i32, i32, i32
  }
}

</mosaic_0001>

<llo_original>
// kernel: tpu_custom_call.1
$region0: #{tpu_custom_call.1}
  #allocation0 [shape = 'u32[]', space=smem, size = 0x4, offset = 0x4, fixed_abs, tag = 'smem constant byte address 0x4 - core index']
  #allocation1 [shape = 'u32[72,128]{1,0:T(1,128)}', space=vmem, size = 0x9000, scoped, tag = 'internal scratch']
  #allocation2 [shape = 'f32[10,24,16]{2,1,0:T(8,128)}', space=vmem, size = 0x1e000, scoped, tag = 'scratch operand']
  %s0 = inlined_call_operand.vmem [shape: f32[2,18,24,16], index: 0, kind: input, shape index: {}]
  %s1 = inlined_call_operand.vmem [shape: f32[2,18,24,16], index: 1, kind: input, shape index: {}]
  %s2 = inlined_call_operand.vmem [shape: f32[2,18,24,16], index: 2, kind: input, shape index: {}]
  %s3 = inlined_call_operand.vmem [shape: f32[16,32], index: 3, kind: input, shape index: {}]
  %s4 = inlined_call_operand.vmem [shape: f32[16,32], index: 4, kind: input, shape index: {}]
  %s5 = inlined_call_operand.vmem [shape: f32[9,32], index: 5, kind: input, shape index: {}]
  %s6 = inlined_call_operand.vmem [shape: f32[9,32], index: 6, kind: input, shape index: {}]
  %s7 = inlined_call_operand.vmem [shape: f32[32,16], index: 7, kind: input, shape index: {}]
  %s8 = inlined_call_operand.hbm [shape: f32[2,16,16,16], index: 8, kind: output, shape index: {}]
  %s9 = sld [smem:[#allocation0]]
  $region65: #{tpu_custom_call.1} parent=0
    _
  %s11 = ssub.s32 1, %s9
  %s12 = scalar_select 0, %s11, %s9
  $region1: #{tpu_custom_call.1} parent=0
    #allocation3 [shape = 'u8[131072]{0}', space=vmem, size = 0x20000, scoped, tag = 'output window, operand 0']
    #allocation4 [shape = 's32[2]{0}', space=sflag, size = 0x8, scoped, tag = 'scoped memory for tpu_custom_call.1']
    %13 = vsyncpa [#allocation4], 0
    %s14 = scalar_lea.sflag [#allocation4], 1
    %15 = vsyncpa %s14, 0
    loop: start=0, step=1, limit=6
    $region2: #{tpu_custom_call.1} parent=1 // loop_pre_header
      _
    $region3: #{tpu_custom_call.1} parent=1 // loop_header
      %s17 = sphi 0, %s21
      %p18 = scmp.ge.s32.totalorder %s17, 6
      %s24 = sphi 0, %s36
      %s25 = sphi 0, %s32
      %s26 = sphi 0, %s24
      %s27 = sphi 0, %s25
      %s28 = sphi 0, %s26
      %s29 = sphi 0, %s27
      %s41 = sphi 0, %s43
      %s44 = sphi 0, %s41
      %s45 = sphi 0, %s44
      %s61 = sphi 0, %s45
      %s73 = sphi 0, %s75
      %s76 = sphi 0, %s73
      %s77 = sphi 0, %s76
      %s93 = sphi 0, %s77
      %s107 = sphi 0, %s109
      %s110 = sphi 0, %s107
      %s111 = sphi 0, %s110
      %s127 = sphi 0, %s111
      %s131 = sphi 0, %s131
      %s133 = sphi 0, %s131
      %s134 = sphi 0, %s133
      %s148 = sphi 0, %s134
      %s152 = sphi 0, %s152
      %s154 = sphi 0, %s152
      %s155 = sphi 0, %s154
      %s169 = sphi 0, %s155
      %s173 = sphi 0, %s173
      %s175 = sphi 0, %s173
      %s176 = sphi 0, %s175
      %s190 = sphi 0, %s176
      %s194 = sphi 0, %s194
      %s196 = sphi 0, %s194
      %s197 = sphi 0, %s196
      %s211 = sphi 0, %s197
      %s215 = sphi 0, %s215
      %s217 = sphi 0, %s215
      %s218 = sphi 0, %s217
      %s232 = sphi 0, %s218
      %s240 = sphi 0, %s242
      %s243 = sphi 0, %s240
      %s244 = sphi 0, %s243
      %s260 = sphi 0, %s244
    $region4: #{tpu_custom_call.1} parent=1 // loop_header_branch
      %20 = sbr.rel (%p18) target = $region8
    $region5: #{tpu_custom_call.1} parent=1 // loop_body
      %s22 = ssub.s32 %s17, 1
      %s23 = ssub.s32 %s17, 2
      %s30 = sadd.s32 1, %s25
      %p31 = scmp.ge.s32.totalorder %s30, 2
      %s32 = scalar_select %p31, 0, %s30
      %s33 = sadd.s32 1, %s24
      %s34 = scalar_select %p31, %s33, %s24
      %p35 = scmp.ge.s32.totalorder %s34, 2
      %s36 = scalar_select %p35, 0, %s34
      %s37 = ssub.s32 %s24, %s36
      %s38 = ssub.s32 %s25, %s32
      %s39 = sor.u32 %s37, %s38
      %p40 = scmp.eq.s32.totalorder %s39, 0
      %s42 = sadd.s32 %s41, 1
      %s43 = scalar_select %p40, %s41, %s42
      %p46 = pneg %p40
      %p47 = scmp.eq.s32.totalorder %s17, 3
      %p48 = por %p46, %p47
      %p49 = scmp.ne.s32.totalorder %s41, %s44
      %p50 = scmp.eq.s32.totalorder %s17, 0
      %p51 = por %p49, %p50
      %p52 = scmp.ne.s32.totalorder %s41, %s44
      %p53 = scmp.eq.s32.totalorder %s22, 3
      %p54 = por %p52, %p53
      %p55 = scmp.ne.s32.totalorder %s44, %s45
      %p56 = scmp.eq.s32.totalorder %s22, 0
      %p57 = por %p55, %p56
      %p58 = scmp.ne.s32.totalorder %s44, %s45
      %p59 = scmp.eq.s32.totalorder %s23, 3
      %p60 = por %p58, %p59
      %p62 = scmp.ne.s32.totalorder %s45, %s61
      %p63 = scmp.eq.s32.totalorder %s23, 0
      %p64 = por %p62, %p63
      %s65 = sadd.s32 %s25, 1
      %s66 = smul.u32 %s65, 8
      %s67 = sadd.s32 %s32, 1
      %s68 = smul.u32 %s67, 8
      %s69 = ssub.s32 %s24, %s36
      %s70 = ssub.s32 %s66, %s68
      %s71 = sor.u32 %s69, %s70
      %p72 = scmp.eq.s32.totalorder %s71, 0
      %s74 = sadd.s32 %s73, 1
      %s75 = scalar_select %p72, %s73, %s74
      %p78 = pneg %p72
      %p79 = scmp.eq.s32.totalorder %s17, 3
      %p80 = por %p78, %p79
      %p81 = scmp.ne.s32.totalorder %s73, %s76
      %p82 = scmp.eq.s32.totalorder %s17, 0
      %p83 = por %p81, %p82
      %p84 = scmp.ne.s32.totalorder %s73, %s76
      %p85 = scmp.eq.s32.totalorder %s22, 3
      %p86 = por %p84, %p85
      %p87 = scmp.ne.s32.totalorder %s76, %s77
      %p88 = scmp.eq.s32.totalorder %s22, 0
      %p89 = por %p87, %p88
      %p90 = scmp.ne.s32.totalorder %s76, %s77
      %p91 = scmp.eq.s32.totalorder %s23, 3
      %p92 = por %p90, %p91
      %p94 = scmp.ne.s32.totalorder %s77, %s93
      %p95 = scmp.eq.s32.totalorder %s23, 0
      %p96 = por %p94, %p95
      %s97 = sadd.s32 %s25, 1
      %s98 = smul.u32 %s97, 8
      %s99 = sadd.s32 %s98, 1
      %s100 = sadd.s32 %s32, 1
      %s101 = smul.u32 %s100, 8
      %s102 = sadd.s32 %s101, 1
      %s103 = ssub.s32 %s24, %s36
      %s104 = ssub.s32 %s99, %s102
      %s105 = sor.u32 %s103, %s104
      %p106 = scmp.eq.s32.totalorder %s105, 0
      %s108 = sadd.s32 %s107, 1
      %s109 = scalar_select %p106, %s107, %s108
      %p112 = pneg %p106
      %p113 = scmp.eq.s32.totalorder %s17, 3
      %p114 = por %p112, %p113
      %p115 = scmp.ne.s32.totalorder %s107, %s110
      %p116 = scmp.eq.s32.totalorder %s17, 0
      %p117 = por %p115, %p116
      %p118 = scmp.ne.s32.totalorder %s107, %s110
      %p119 = scmp.eq.s32.totalorder %s22, 3
      %p120 = por %p118, %p119
      %p121 = scmp.ne.s32.totalorder %s110, %s111
      %p122 = scmp.eq.s32.totalorder %s22, 0
      %p123 = por %p121, %p122
      %p124 = scmp.ne.s32.totalorder %s110, %s111
      %p125 = scmp.eq.s32.totalorder %s23, 3
      %p126 = por %p124, %p125
      %p128 = scmp.ne.s32.totalorder %s111, %s127
      %p129 = scmp.eq.s32.totalorder %s23, 0
      %p130 = por %p128, %p129
      %s132 = sadd.s32 %s131, 1
      %p135 = scmp.eq.s32.totalorder %s17, 3
      %p136 = scmp.ne.s32.totalorder %s131, %s133
      %p137 = scmp.eq.s32.totalorder %s17, 0
      %p138 = por %p136, %p137
      %p139 = scmp.ne.s32.totalorder %s131, %s133
      %p140 = scmp.eq.s32.totalorder %s22, 3
      %p141 = por %p139, %p140
      %p142 = scmp.ne.s32.totalorder %s133, %s134
      %p143 = scmp.eq.s32.totalorder %s22, 0
      %p144 = por %p142, %p143
      %p145 = scmp.ne.s32.totalorder %s133, %s134
      %p146 = scmp.eq.s32.totalorder %s23, 3
      %p147 = por %p145, %p146
      %p149 = scmp.ne.s32.totalorder %s134, %s148
      %p150 = scmp.eq.s32.totalorder %s23, 0
      %p151 = por %p149, %p150
      %s153 = sadd.s32 %s152, 1
      %p156 = scmp.eq.s32.totalorder %s17, 3
      %p157 = scmp.ne.s32.totalorder %s152, %s154
      %p158 = scmp.eq.s32.totalorder %s17, 0
      %p159 = por %p157, %p158
      %p160 = scmp.ne.s32.totalorder %s152, %s154
      %p161 = scmp.eq.s32.totalorder %s22, 3
      %p162 = por %p160, %p161
      %p163 = scmp.ne.s32.totalorder %s154, %s155
      %p164 = scmp.eq.s32.totalorder %s22, 0
      %p165 = por %p163, %p164
      %p166 = scmp.ne.s32.totalorder %s154, %s155
      %p167 = scmp.eq.s32.totalorder %s23, 3
      %p168 = por %p166, %p167
      %p170 = scmp.ne.s32.totalorder %s155, %s169
      %p171 = scmp.eq.s32.totalorder %s23, 0
      %p172 = por %p170, %p171
      %s174 = sadd.s32 %s173, 1
      %p177 = scmp.eq.s32.totalorder %s17, 3
      %p178 = scmp.ne.s32.totalorder %s173, %s175
      %p179 = scmp.eq.s32.totalorder %s17, 0
      %p180 = por %p178, %p179
      %p181 = scmp.ne.s32.totalorder %s173, %s175
      %p182 = scmp.eq.s32.totalorder %s22, 3
      %p183 = por %p181, %p182
      %p184 = scmp.ne.s32.totalorder %s175, %s176
      %p185 = scmp.eq.s32.totalorder %s22, 0
      %p186 = por %p184, %p185
      %p187 = scmp.ne.s32.totalorder %s175, %s176
      %p188 = scmp.eq.s32.totalorder %s23, 3
      %p189 = por %p187, %p188
      %p191 = scmp.ne.s32.totalorder %s176, %s190
      %p192 = scmp.eq.s32.totalorder %s23, 0
      %p193 = por %p191, %p192
      %s195 = sadd.s32 %s194, 1
      %p198 = scmp.eq.s32.totalorder %s17, 3
      %p199 = scmp.ne.s32.totalorder %s194, %s196
      %p200 = scmp.eq.s32.totalorder %s17, 0
      %p201 = por %p199, %p200
      %p202 = scmp.ne.s32.totalorder %s194, %s196
      %p203 = scmp.eq.s32.totalorder %s22, 3
      %p204 = por %p202, %p203
      %p205 = scmp.ne.s32.totalorder %s196, %s197
      %p206 = scmp.eq.s32.totalorder %s22, 0
      %p207 = por %p205, %p206
      %p208 = scmp.ne.s32.totalorder %s196, %s197
      %p209 = scmp.eq.s32.totalorder %s23, 3
      %p210 = por %p208, %p209
      %p212 = scmp.ne.s32.totalorder %s197, %s211
      %p213 = scmp.eq.s32.totalorder %s23, 0
      %p214 = por %p212, %p213
      %s216 = sadd.s32 %s215, 1
      %p219 = scmp.eq.s32.totalorder %s17, 3
      %p220 = scmp.ne.s32.totalorder %s215, %s217
      %p221 = scmp.eq.s32.totalorder %s17, 0
      %p222 = por %p220, %p221
      %p223 = scmp.ne.s32.totalorder %s215, %s217
      %p224 = scmp.eq.s32.totalorder %s22, 3
      %p225 = por %p223, %p224
      %p226 = scmp.ne.s32.totalorder %s217, %s218
      %p227 = scmp.eq.s32.totalorder %s22, 0
      %p228 = por %p226, %p227
      %p229 = scmp.ne.s32.totalorder %s217, %s218
      %p230 = scmp.eq.s32.totalorder %s23, 3
      %p231 = por %p229, %p230
      %p233 = scmp.ne.s32.totalorder %s218, %s232
      %p234 = scmp.eq.s32.totalorder %s23, 0
      %p235 = por %p233, %p234
      %s236 = ssub.s32 %s24, %s36
      %s237 = ssub.s32 %s25, %s32
      %s238 = sor.u32 %s236, %s237
      %p239 = scmp.eq.s32.totalorder %s238, 0
      %s241 = sadd.s32 %s240, 1
      %s242 = scalar_select %p239, %s240, %s241
      %p245 = pneg %p239
      %p246 = scmp.eq.s32.totalorder %s17, 3
      %p247 = por %p245, %p246
      %p248 = scmp.ne.s32.totalorder %s240, %s243
      %p249 = scmp.eq.s32.totalorder %s17, 0
      %p250 = por %p248, %p249
      %p251 = scmp.ne.s32.totalorder %s240, %s243
      %p252 = scmp.eq.s32.totalorder %s22, 3
      %p253 = por %p251, %p252
      %p254 = scmp.ne.s32.totalorder %s243, %s244
      %p255 = scmp.eq.s32.totalorder %s22, 0
      %p256 = por %p254, %p255
      %p257 = scmp.ne.s32.totalorder %s243, %s244
      %p258 = scmp.eq.s32.totalorder %s23, 3
      %p259 = por %p257, %p258
      %p261 = scmp.ne.s32.totalorder %s244, %s260
      %p262 = scmp.eq.s32.totalorder %s23, 0
      %p263 = por %p261, %p262
      %p264 = scmp.le.s32.totalorder 1, %s17
      %p265 = scmp.lt.s32.totalorder %s17, 5
      %p266 = pnand %p264, %p265
      %p267 = pneg %p266
      // Predicated region
      $region9: #{tpu_custom_call.1} parent=5 // pred_check
        _
      $region10: #{tpu_custom_call.1} parent=5 // pred_check_branch
        %269 = sbr.rel (%p266) target = $region12
      $region11: #{tpu_custom_call.1} parent=5 // pred_region
        %s270 = ssub.s32 %s17, 1
        // Predicated region
        $region13: #{tpu_custom_call.1} parent=11 // pred_check
          %p271 = pneg %p144
        $region14: #{tpu_custom_call.1} parent=11 // pred_check_branch
          %273 = sbr.rel (%p271) target = $region16
        $region15: #{tpu_custom_call.1} parent=11 // pred_region
          _
        $region16: #{tpu_custom_call.1} parent=11 // pred_fallthru
          _
        // Predicated region
        $region17: #{tpu_custom_call.1} parent=11 // pred_check
          %p274 = pneg %p165
        $region18: #{tpu_custom_call.1} parent=11 // pred_check_branch
          %276 = sbr.rel (%p274) target = $region20
        $region19: #{tpu_custom_call.1} parent=11 // pred_region
          _
        $region20: #{tpu_custom_call.1} parent=11 // pred_fallthru
          _
        // Predicated region
        $region21: #{tpu_custom_call.1} parent=11 // pred_check
          %p277 = pneg %p186
        $region22: #{tpu_custom_call.1} parent=11 // pred_check_branch
          %279 = sbr.rel (%p277) target = $region24
        $region23: #{tpu_custom_call.1} parent=11 // pred_region
          _
        $region24: #{tpu_custom_call.1} parent=11 // pred_fallthru
          _
        // Predicated region
        $region25: #{tpu_custom_call.1} parent=11 // pred_check
          %p280 = pneg %p207
        $region26: #{tpu_custom_call.1} parent=11 // pred_check_branch
          %282 = sbr.rel (%p280) target = $region28
        $region27: #{tpu_custom_call.1} parent=11 // pred_region
          _
        $region28: #{tpu_custom_call.1} parent=11 // pred_fallthru
          _
        // Predicated region
        $region29: #{tpu_custom_call.1} parent=11 // pred_check
          %p283 = pneg %p228
        $region30: #{tpu_custom_call.1} parent=11 // pred_check_branch
          %285 = sbr.rel (%p283) target = $region32
        $region31: #{tpu_custom_call.1} parent=11 // pred_region
          _
        $region32: #{tpu_custom_call.1} parent=11 // pred_fallthru
          _
      $region12: #{tpu_custom_call.1} parent=5 // pred_fallthru
        _
      %p286 = scmp.lt.s32.totalorder %s17, 4
      // Predicated region
      $region33: #{tpu_custom_call.1} parent=5 // pred_check
        %p287 = pneg %p286
      $region34: #{tpu_custom_call.1} parent=5 // pred_check_branch
        %289 = sbr.rel (%p287) target = $region36
      $region35: #{tpu_custom_call.1} parent=5 // pred_region
        // Predicated region
        $region37: #{tpu_custom_call.1} parent=35 // pred_check
          %p290 = pneg %p51
        $region38: #{tpu_custom_call.1} parent=35 // pred_check_branch
          %292 = sbr.rel (%p290) target = $region40
        $region39: #{tpu_custom_call.1} parent=35 // pred_region
          %s293 = smul.u32 8, %s25
          %s294 = ssub.s32 18, %s293
          %p295 = scmp.lt.s32.totalorder %s294, 8
          %s296 = scalar_select %p295, %s294, 8
          %s297 = smul.u32 8, %s296
          %s298 = smul.u32 %s297, 3
          %p299 = scmp.lt.s32.totalorder %s24, 1
          %s300 = scalar_select %p299, %s24, 1
          %p301 = scmp.lt.s32.totalorder %s293, 17
          %s302 = scalar_select %p301, %s293, 17
          %s303 = smul.addr %s302, 3
          %s304 = smul.addr %s300, 54
          %s305 = sadd.s32 %s303, %s304
          %s306 = smul.addr %s305, 8
          %s307 = scalar_lea.vmem %s0, %s306
          %s308 = smul.u32 8, %s25
          %s309 = ssub.s32 18, %s308
          %p310 = scmp.lt.s32.totalorder %s309, 8
          %s311 = scalar_select %p310, %s309, 8
          %s312 = smul.u32 8, %s311
          %s313 = smul.u32 %s312, 3
        $region40: #{tpu_custom_call.1} parent=35 // pred_fallthru
          _
        // Predicated region
        $region41: #{tpu_custom_call.1} parent=35 // pred_check
          %p314 = pneg %p83
        $region42: #{tpu_custom_call.1} parent=35 // pred_check_branch
          %316 = sbr.rel (%p314) target = $region44
        $region43: #{tpu_custom_call.1} parent=35 // pred_region
          %s317 = sadd.s32 %s25, 1
          %s318 = smul.u32 %s317, 8
          %p319 = scmp.lt.s32.totalorder %s24, 1
          %s320 = scalar_select %p319, %s24, 1
          %p321 = scmp.lt.s32.totalorder %s318, 17
          %s322 = scalar_select %p321, %s318, 17
          %s323 = smul.addr %s322, 3
          %s324 = smul.addr %s320, 54
          %s325 = sadd.s32 %s323, %s324
          %s326 = smul.addr %s325, 8
          %s327 = scalar_lea.vmem %s1, %s326
          %s328 = sadd.s32 %s25, 1
          %s329 = smul.u32 %s328, 8
        $region44: #{tpu_custom_call.1} parent=35 // pred_fallthru
          _
        // Predicated region
        $region45: #{tpu_custom_call.1} parent=35 // pred_check
          %p330 = pneg %p117
        $region46: #{tpu_custom_call.1} parent=35 // pred_check_branch
          %332 = sbr.rel (%p330) target = $region48
        $region47: #{tpu_custom_call.1} parent=35 // pred_region
          %s333 = sadd.s32 %s25, 1
          %s334 = smul.u32 %s333, 8
          %s335 = sadd.s32 %s334, 1
          %p336 = scmp.lt.s32.totalorder %s24, 1
          %s337 = scalar_select %p336, %s24, 1
          %p338 = scmp.lt.s32.totalorder %s335, 17
          %s339 = scalar_select %p338, %s335, 17
          %s340 = smul.addr %s339, 3
          %s341 = smul.addr %s337, 54
          %s342 = sadd.s32 %s340, %s341
          %s343 = smul.addr %s342, 8
          %s344 = scalar_lea.vmem %s2, %s343
          %s345 = sadd.s32 %s25, 1
          %s346 = smul.u32 %s345, 8
          %s347 = sadd.s32 %s346, 1
        $region48: #{tpu_custom_call.1} parent=35 // pred_fallthru
          _
      $region36: #{tpu_custom_call.1} parent=5 // pred_fallthru
        _
      %p348 = scmp.le.s32.totalorder 1, %s17
      %p349 = scmp.lt.s32.totalorder %s17, 5
      %p350 = pnand %p348, %p349
      %p351 = pneg %p350
      // Predicated region
      $region49: #{tpu_custom_call.1} parent=5 // pred_check
        _
      $region50: #{tpu_custom_call.1} parent=5 // pred_check_branch
        %353 = sbr.rel (%p350) target = $region52
      $region51: #{tpu_custom_call.1} parent=5 // pred_region
        %s354 = ssub.s32 %s17, 1
        %s355 = smul.u32 8, %s27
        %s356 = ssub.s32 18, %s355
        %p357 = scmp.lt.s32.totalorder %s356, 8
        %s358 = scalar_select %p357, %s356, 8
        %s359 = smul.u32 8, %s358
        %s360 = smul.u32 %s359, 3
        %p361 = scmp.lt.s32.totalorder %s26, 1
        %s362 = scalar_select %p361, %s26, 1
        %p363 = scmp.lt.s32.totalorder %s355, 17
        %s364 = scalar_select %p363, %s355, 17
        %s365 = smul.addr %s364, 3
        %s366 = smul.addr %s362, 54
        %s367 = sadd.s32 %s365, %s366
        %s368 = smul.addr %s367, 8
        %s369 = scalar_lea.vmem %s0, %s368
        %p370 = pneg %p57
        %p371 = pneg %p54
        %s372 = sadd.s32 %s27, 1
        %s373 = smul.u32 %s372, 8
        %p374 = scmp.lt.s32.totalorder %s26, 1
        %s375 = scalar_select %p374, %s26, 1
        %p376 = scmp.lt.s32.totalorder %s373, 17
        %s377 = scalar_select %p376, %s373, 17
        %s378 = smul.addr %s377, 3
        %s379 = smul.addr %s375, 54
        %s380 = sadd.s32 %s378, %s379
        %s381 = smul.addr %s380, 8
        %s382 = scalar_lea.vmem %s1, %s381
        %p383 = pneg %p89
        %p384 = pneg %p86
        %s385 = sadd.s32 %s27, 1
        %s386 = smul.u32 %s385, 8
        %s387 = sadd.s32 %s386, 1
        %p388 = scmp.lt.s32.totalorder %s26, 1
        %s389 = scalar_select %p388, %s26, 1
        %p390 = scmp.lt.s32.totalorder %s387, 17
        %s391 = scalar_select %p390, %s387, 17
        %s392 = smul.addr %s391, 3
        %s393 = smul.addr %s389, 54
        %s394 = sadd.s32 %s392, %s393
        %s395 = smul.addr %s394, 8
        %s396 = scalar_lea.vmem %s2, %s395
        %p397 = pneg %p123
        %p398 = pneg %p120
        %p399 = pneg %p144
        %p400 = pneg %p141
        %p401 = pneg %p165
        %p402 = pneg %p162
        %p403 = pneg %p186
        %p404 = pneg %p183
        %p405 = pneg %p207
        %p406 = pneg %p204
        %p407 = pneg %p228
        %p408 = pneg %p225
        %p409 = pneg %p256
        %p410 = pneg %p253
        %s411 = sand.u32 %s243, 1
        %s412 = scalar_lea.sflag [#allocation4], %s411
        %s413 = sand.u32 %s243, 1
        %s414 = smul.addr %s413, 128
        %s415 = scalar_lea.vmem [#allocation3], %s414
        %s416 = smul.u32 8, %s27
        %s417 = ssub.s32 18, %s416
        %p418 = scmp.lt.s32.totalorder %s417, 8
        %s419 = scalar_select %p418, %s417, 8
        %s420 = smul.u32 8, %s419
        %s421 = smul.u32 %s420, 3
        %p422 = scmp.lt.s32.totalorder %s26, 1
        %s423 = scalar_select %p422, %s26, 1
        %p424 = scmp.lt.s32.totalorder %s416, 17
        %s425 = scalar_select %p424, %s416, 17
        %s426 = smul.addr %s425, 3
        %s427 = smul.addr %s423, 54
        %s428 = sadd.s32 %s426, %s427
        %s429 = smul.addr %s428, 8
        %s430 = scalar_lea.vmem %s0, %s429
        %s431 = smul.u32 8, %s27
        %s432 = ssub.s32 18, %s431
        %p433 = scmp.lt.s32.totalorder %s432, 8
        %s434 = scalar_select %p433, %s432, 8
        %s435 = smul.u32 8, %s434
        %s436 = smul.u32 %s435, 3
        %s437 = sadd.s32 %s27, 1
        %s438 = smul.u32 %s437, 8
        %p439 = scmp.lt.s32.totalorder %s26, 1
        %s440 = scalar_select %p439, %s26, 1
        %p441 = scmp.lt.s32.totalorder %s438, 17
        %s442 = scalar_select %p441, %s438, 17
        %s443 = smul.addr %s442, 3
        %s444 = smul.addr %s440, 54
        %s445 = sadd.s32 %s443, %s444
        %s446 = smul.addr %s445, 8
        %s447 = scalar_lea.vmem %s1, %s446
        %s448 = sadd.s32 %s27, 1
        %s449 = smul.u32 %s448, 8
        %s450 = sadd.s32 %s27, 1
        %s451 = smul.u32 %s450, 8
        %s452 = sadd.s32 %s451, 1
        %p453 = scmp.lt.s32.totalorder %s26, 1
        %s454 = scalar_select %p453, %s26, 1
        %p455 = scmp.lt.s32.totalorder %s452, 17
        %s456 = scalar_select %p455, %s452, 17
        %s457 = smul.addr %s456, 3
        %s458 = smul.addr %s454, 54
        %s459 = sadd.s32 %s457, %s458
        %s460 = smul.addr %s459, 8
        %s461 = scalar_lea.vmem %s2, %s460
        %s462 = sadd.s32 %s27, 1
        %s463 = smul.u32 %s462, 8
        %s464 = sadd.s32 %s463, 1
        %s465 = smul.u32 8, %s27
        %v466 = vld [vmem:[%s430] sm:$0xff]
        %v467 = vld [vmem:[%s430 + $0x8] sm:$0xff]
        %v468 = vld [vmem:[%s430 + $0x10] sm:$0xff]
        %v469 = vld [vmem:[%s430 + $0x18] sm:$0xff]
        %v470 = vld [vmem:[%s430 + $0x20] sm:$0xff]
        %v471 = vld [vmem:[%s430 + $0x28] sm:$0xff]
        %v472 = vld [vmem:[%s430 + $0x30] sm:$0xff]
        %v473 = vld [vmem:[%s430 + $0x38] sm:$0xff]
        %v474 = vld [vmem:[%s430 + $0x40] sm:$0xff]
        %v475 = vld [vmem:[%s430 + $0x48] sm:$0xff]
        %v476 = vld [vmem:[%s430 + $0x50] sm:$0xff]
        %v477 = vld [vmem:[%s430 + $0x58] sm:$0xff]
        %v478 = vld [vmem:[%s430 + $0x60] sm:$0xff]
        %v479 = vld [vmem:[%s430 + $0x68] sm:$0xff]
        %v480 = vld [vmem:[%s430 + $0x70] sm:$0xff]
        %v481 = vld [vmem:[%s430 + $0x78] sm:$0xff]
        %v482 = vld [vmem:[%s430 + $0x80] sm:$0xff]
        %v483 = vld [vmem:[%s430 + $0x88] sm:$0xff]
        %v484 = vld [vmem:[%s430 + $0x90] sm:$0xff]
        %v485 = vld [vmem:[%s430 + $0x98] sm:$0xff]
        %v486 = vld [vmem:[%s430 + $0xa0] sm:$0xff]
        %v487 = vld [vmem:[%s430 + $0xa8] sm:$0xff]
        %v488 = vld [vmem:[%s430 + $0xb0] sm:$0xff]
        %v489 = vld [vmem:[%s430 + $0xb8] sm:$0xff]
        %vm490 = vcmask 130048
        %491 = vst.msk [vmem:[#allocation2] sm:$0xff] %vm490, %v466
        %492 = vst.msk [vmem:[#allocation2 + $0x8] sm:$0xff] %vm490, %v467
        %493 = vst.msk [vmem:[#allocation2 + $0x10] sm:$0xff] %vm490, %v468
        %494 = vst.msk [vmem:[#allocation2 + $0x18] sm:$0xff] %vm490, %v469
        %495 = vst.msk [vmem:[#allocation2 + $0x20] sm:$0xff] %vm490, %v470
        %496 = vst.msk [vmem:[#allocation2 + $0x28] sm:$0xff] %vm490, %v471
        %497 = vst.msk [vmem:[#allocation2 + $0x30] sm:$0xff] %vm490, %v472
        %498 = vst.msk [vmem:[#allocation2 + $0x38] sm:$0xff] %vm490, %v473
        %499 = vst.msk [vmem:[#allocation2 + $0x40] sm:$0xff] %vm490, %v474
        %500 = vst.msk [vmem:[#allocation2 + $0x48] sm:$0xff] %vm490, %v475
        %501 = vst.msk [vmem:[#allocation2 + $0x50] sm:$0xff] %vm490, %v476
        %502 = vst.msk [vmem:[#allocation2 + $0x58] sm:$0xff] %vm490, %v477
        %503 = vst.msk [vmem:[#allocation2 + $0x60] sm:$0xff] %vm490, %v478
        %504 = vst.msk [vmem:[#allocation2 + $0x68] sm:$0xff] %vm490, %v479
        %505 = vst.msk [vmem:[#allocation2 + $0x70] sm:$0xff] %vm490, %v480
        %506 = vst.msk [vmem:[#allocation2 + $0x78] sm:$0xff] %vm490, %v481
        %507 = vst.msk [vmem:[#allocation2 + $0x80] sm:$0xff] %vm490, %v482
        %508 = vst.msk [vmem:[#allocation2 + $0x88] sm:$0xff] %vm490, %v483
        %509 = vst.msk [vmem:[#allocation2 + $0x90] sm:$0xff] %vm490, %v484
        %510 = vst.msk [vmem:[#allocation2 + $0x98] sm:$0xff] %vm490, %v485
        %511 = vst.msk [vmem:[#allocation2 + $0xa0] sm:$0xff] %vm490, %v486
        %512 = vst.msk [vmem:[#allocation2 + $0xa8] sm:$0xff] %vm490, %v487
        %513 = vst.msk [vmem:[#allocation2 + $0xb0] sm:$0xff] %vm490, %v488
        %514 = vst.msk [vmem:[#allocation2 + $0xb8] sm:$0xff] %vm490, %v489
        %v515 = vld [vmem:[%s447] sm:$0xff]
        %v516 = vld [vmem:[%s447 + $0x8] sm:$0xff]
        %v517 = vld [vmem:[%s447 + $0x10] sm:$0xff]
        %s518 = scalar_lea.vmem [#allocation2], 192
        %519 = vst.msk [vmem:[%s518] sm:$0xff] %vm490, %v515
        %520 = vst.msk [vmem:[%s518 + $0x8] sm:$0xff] %vm490, %v516
        %521 = vst.msk [vmem:[%s518 + $0x10] sm:$0xff] %vm490, %v517
        %v522 = vld [vmem:[%s461] sm:$0xff]
        %v523 = vld [vmem:[%s461 + $0x8] sm:$0xff]
        %v524 = vld [vmem:[%s461 + $0x10] sm:$0xff]
        %s525 = scalar_lea.vmem [#allocation2], 216
        %526 = vst.msk [vmem:[%s525] sm:$0xff] %vm490, %v522
        %527 = vst.msk [vmem:[%s525 + $0x8] sm:$0xff] %vm490, %v523
        %528 = vst.msk [vmem:[%s525 + $0x10] sm:$0xff] %vm490, %v524
        %v529 = vld [vmem:[#allocation2] sm:$0xff]
        %v530 = vld [vmem:[#allocation2 + $0x8] sm:$0xff]
        %v531 = vld [vmem:[#allocation2 + $0x10] sm:$0xff]
        %v532 = vld [vmem:[#allocation2 + $0x18] sm:$0xff]
        %v533 = vld [vmem:[#allocation2 + $0x20] sm:$0xff]
        %v534 = vld [vmem:[#allocation2 + $0x28] sm:$0xff]
        %v535 = vld [vmem:[#allocation2 + $0x30] sm:$0xff]
        %v536 = vld [vmem:[#allocation2 + $0x38] sm:$0xff]
        %v537 = vld [vmem:[#allocation2 + $0x40] sm:$0xff]
        %v538 = vld [vmem:[#allocation2 + $0x48] sm:$0xff]
        %v539 = vld [vmem:[#allocation2 + $0x50] sm:$0xff]
        %v540 = vld [vmem:[#allocation2 + $0x58] sm:$0xff]
        %v541 = vld [vmem:[#allocation2 + $0x60] sm:$0xff]
        %v542 = vld [vmem:[#allocation2 + $0x68] sm:$0xff]
        %v543 = vld [vmem:[#allocation2 + $0x70] sm:$0xff]
        %v544 = vld [vmem:[#allocation2 + $0x78] sm:$0xff]
        %v545 = vld [vmem:[#allocation2 + $0x80] sm:$0xff]
        %v546 = vld [vmem:[#allocation2 + $0x88] sm:$0xff]
        %v547 = vld [vmem:[#allocation2 + $0x90] sm:$0xff]
        %v548 = vld [vmem:[#allocation2 + $0x98] sm:$0xff]
        %v549 = vld [vmem:[#allocation2 + $0xa0] sm:$0xff]
        %v550 = vld [vmem:[#allocation2 + $0xa8] sm:$0xff]
        %v551 = vld [vmem:[#allocation2 + $0xb0] sm:$0xff]
        %v552 = vld [vmem:[#allocation2 + $0xb8] sm:$0xff]
        %v553 = vld [vmem:[#allocation2 + $0xc0] sm:$0xff]
        %v554 = vld [vmem:[#allocation2 + $0xc8] sm:$0xff]
        %v555 = vld [vmem:[#allocation2 + $0xd0] sm:$0xff]
        %v556 = vld [vmem:[#allocation2 + $0xd8] sm:$0xff]
        %v557 = vld [vmem:[#allocation2 + $0xe0] sm:$0xff]
        %v558 = vld [vmem:[#allocation2 + $0xe8] sm:$0xff]
        %v559 = vld [vmem:[%s3] sm:$0xff]
        %v560 = vld [vmem:[%s3 + $0x8] sm:$0xff]
        %v562 = vsel %vm490, %v529, 0
        %v565 = vsel %vm490, %v530, 0
        %v568 = vsel %vm490, %v531, 0
        %v571 = vsel %vm490, %v532, 0
        %v574 = vsel %vm490, %v533, 0
        %v577 = vsel %vm490, %v534, 0
        %v580 = vsel %vm490, %v535, 0
        %v583 = vsel %vm490, %v536, 0
        %v586 = vsel %vm490, %v537, 0
        %v589 = vsel %vm490, %v538, 0
        %v592 = vsel %vm490, %v539, 0
        %v595 = vsel %vm490, %v540, 0
        %v598 = vsel %vm490, %v541, 0
        %v601 = vsel %vm490, %v542, 0
        %v604 = vsel %vm490, %v543, 0
        %v607 = vsel %vm490, %v544, 0
        %v610 = vsel %vm490, %v545, 0
        %v613 = vsel %vm490, %v546, 0
        %v616 = vsel %vm490, %v547, 0
        %v619 = vsel %vm490, %v548, 0
        %v622 = vsel %vm490, %v549, 0
        %v625 = vsel %vm490, %v550, 0
        %v628 = vsel %vm490, %v551, 0
        %v631 = vsel %vm490, %v552, 0
        %v634 = vsel %vm490, %v553, 0
        %v637 = vsel %vm490, %v554, 0
        %v640 = vsel %vm490, %v555, 0
        %v643 = vsel %vm490, %v556, 0
        %v646 = vsel %vm490, %v557, 0
        %v649 = vsel %vm490, %v558, 0
        %651 = vmatpush.msra.mxu0 0.0
        %652 = vmatpush.msra.mxu0 0.0
        %653 = vmatpush.msra.mxu0 0.0
        %654 = vmatpush.msra.mxu0 0.0
        %655 = vmatpush.msra.mxu0 0.0
        %656 = vmatpush.msra.mxu0 0.0
        %657 = vmatpush.msra.mxu0 0.0
        %658 = vmatpush.msra.mxu0 0.0
        %659 = vmatpush.msra.mxu0 0.0
        %660 = vmatpush.msra.mxu0 0.0
        %661 = vmatpush.msra.mxu0 0.0
        %662 = vmatpush.msra.mxu0 0.0
        %663 = vmatpush.msra.mxu0 0.0
        %664 = vmatpush.msra.mxu0 0.0
        %665 = vmatpush.msra.mxu0 %v560
        %666 = vmatpush.msra.mxu0 %v559
        %667 = vmatmul.f32.gmra.mxu0 %v562
        %v668 = vpop.f32.mrf.mxu0
        %v669 = vadd.f32 0.0, %v668
        %670 = vmatmul.f32.gmra.mxu0 %v565
        %v671 = vpop.f32.mrf.mxu0
        %v672 = vadd.f32 0.0, %v671
        %673 = vmatmul.f32.gmra.mxu0 %v568
        %v674 = vpop.f32.mrf.mxu0
        %v675 = vadd.f32 0.0, %v674
        %676 = vmatmul.f32.gmra.mxu0 %v571
        %v677 = vpop.f32.mrf.mxu0
        %v678 = vadd.f32 0.0, %v677
        %679 = vmatmul.f32.gmra.mxu0 %v574
        %v680 = vpop.f32.mrf.mxu0
        %v681 = vadd.f32 0.0, %v680
        %682 = vmatmul.f32.gmra.mxu0 %v577
        %v683 = vpop.f32.mrf.mxu0
        %v684 = vadd.f32 0.0, %v683
        %685 = vmatmul.f32.gmra.mxu0 %v580
        %v686 = vpop.f32.mrf.mxu0
        %v687 = vadd.f32 0.0, %v686
        %688 = vmatmul.f32.gmra.mxu0 %v583
        %v689 = vpop.f32.mrf.mxu0
        %v690 = vadd.f32 0.0, %v689
        %691 = vmatmul.f32.gmra.mxu0 %v586
        %v692 = vpop.f32.mrf.mxu0
        %v693 = vadd.f32 0.0, %v692
        %694 = vmatmul.f32.gmra.mxu0 %v589
        %v695 = vpop.f32.mrf.mxu0
        %v696 = vadd.f32 0.0, %v695
        %697 = vmatmul.f32.gmra.mxu0 %v592
        %v698 = vpop.f32.mrf.mxu0
        %v699 = vadd.f32 0.0, %v698
        %700 = vmatmul.f32.gmra.mxu0 %v595
        %v701 = vpop.f32.mrf.mxu0
        %v702 = vadd.f32 0.0, %v701
        %703 = vmatmul.f32.gmra.mxu0 %v598
        %v704 = vpop.f32.mrf.mxu0
        %v705 = vadd.f32 0.0, %v704
        %706 = vmatmul.f32.gmra.mxu0 %v601
        %v707 = vpop.f32.mrf.mxu0
        %v708 = vadd.f32 0.0, %v707
        %709 = vmatmul.f32.gmra.mxu0 %v604
        %v710 = vpop.f32.mrf.mxu0
        %v711 = vadd.f32 0.0, %v710
        %712 = vmatmul.f32.gmra.mxu0 %v607
        %v713 = vpop.f32.mrf.mxu0
        %v714 = vadd.f32 0.0, %v713
        %715 = vmatmul.f32.gmra.mxu0 %v610
        %v716 = vpop.f32.mrf.mxu0
        %v717 = vadd.f32 0.0, %v716
        %718 = vmatmul.f32.gmra.mxu0 %v613
        %v719 = vpop.f32.mrf.mxu0
        %v720 = vadd.f32 0.0, %v719
        %721 = vmatmul.f32.gmra.mxu0 %v616
        %v722 = vpop.f32.mrf.mxu0
        %v723 = vadd.f32 0.0, %v722
        %724 = vmatmul.f32.gmra.mxu0 %v619
        %v725 = vpop.f32.mrf.mxu0
        %v726 = vadd.f32 0.0, %v725
        %727 = vmatmul.f32.gmra.mxu0 %v622
        %v728 = vpop.f32.mrf.mxu0
        %v729 = vadd.f32 0.0, %v728
        %730 = vmatmul.f32.gmra.mxu0 %v625
        %v731 = vpop.f32.mrf.mxu0
        %v732 = vadd.f32 0.0, %v731
        %733 = vmatmul.f32.gmra.mxu0 %v628
        %v734 = vpop.f32.mrf.mxu0
        %v735 = vadd.f32 0.0, %v734
        %736 = vmatmul.f32.gmra.mxu0 %v631
        %v737 = vpop.f32.mrf.mxu0
        %v738 = vadd.f32 0.0, %v737
        %739 = vmatmul.f32.gmra.mxu0 %v634
        %v740 = vpop.f32.mrf.mxu0
        %v741 = vadd.f32 0.0, %v740
        %742 = vmatmul.f32.gmra.mxu0 %v637
        %v743 = vpop.f32.mrf.mxu0
        %v744 = vadd.f32 0.0, %v743
        %745 = vmatmul.f32.gmra.mxu0 %v640
        %v746 = vpop.f32.mrf.mxu0
        %v747 = vadd.f32 0.0, %v746
        %748 = vmatmul.f32.gmra.mxu0 %v643
        %v749 = vpop.f32.mrf.mxu0
        %v750 = vadd.f32 0.0, %v749
        %751 = vmatmul.f32.gmra.mxu0 %v646
        %v752 = vpop.f32.mrf.mxu0
        %v753 = vadd.f32 0.0, %v752
        %754 = vmatmul.f32.gmra.mxu0 %v649
        %v755 = vpop.f32.mrf.mxu0
        %v756 = vadd.f32 0.0, %v755
        %757 = vdwg.mxu0
        %v758 = vld [vmem:[%s4] sm:$0xff]
        %v759 = vld [vmem:[%s4 + $0x8] sm:$0xff]
        %760 = vmatpush.msra.mxu0 0.0
        %761 = vmatpush.msra.mxu0 0.0
        %762 = vmatpush.msra.mxu0 0.0
        %763 = vmatpush.msra.mxu0 0.0
        %764 = vmatpush.msra.mxu0 0.0
        %765 = vmatpush.msra.mxu0 0.0
        %766 = vmatpush.msra.mxu0 0.0
        %767 = vmatpush.msra.mxu0 0.0
        %768 = vmatpush.msra.mxu0 0.0
        %769 = vmatpush.msra.mxu0 0.0
        %770 = vmatpush.msra.mxu0 0.0
        %771 = vmatpush.msra.mxu0 0.0
        %772 = vmatpush.msra.mxu0 0.0
        %773 = vmatpush.msra.mxu0 0.0
        %774 = vmatpush.msra.mxu0 %v759
        %775 = vmatpush.msra.mxu0 %v758
        %776 = vmatmul.f32.gmra.mxu0 %v562
        %v777 = vpop.f32.mrf.mxu0
        %v778 = vadd.f32 0.0, %v777
        %779 = vmatmul.f32.gmra.mxu0 %v565
        %v780 = vpop.f32.mrf.mxu0
        %v781 = vadd.f32 0.0, %v780
        %782 = vmatmul.f32.gmra.mxu0 %v568
        %v783 = vpop.f32.mrf.mxu0
        %v784 = vadd.f32 0.0, %v783
        %785 = vmatmul.f32.gmra.mxu0 %v571
        %v786 = vpop.f32.mrf.mxu0
        %v787 = vadd.f32 0.0, %v786
        %788 = vmatmul.f32.gmra.mxu0 %v574
        %v789 = vpop.f32.mrf.mxu0
        %v790 = vadd.f32 0.0, %v789
        %791 = vmatmul.f32.gmra.mxu0 %v577
        %v792 = vpop.f32.mrf.mxu0
        %v793 = vadd.f32 0.0, %v792
        %794 = vmatmul.f32.gmra.mxu0 %v580
        %v795 = vpop.f32.mrf.mxu0
        %v796 = vadd.f32 0.0, %v795
        %797 = vmatmul.f32.gmra.mxu0 %v583
        %v798 = vpop.f32.mrf.mxu0
        %v799 = vadd.f32 0.0, %v798
        %800 = vmatmul.f32.gmra.mxu0 %v586
        %v801 = vpop.f32.mrf.mxu0
        %v802 = vadd.f32 0.0, %v801
        %803 = vmatmul.f32.gmra.mxu0 %v589
        %v804 = vpop.f32.mrf.mxu0
        %v805 = vadd.f32 0.0, %v804
        %806 = vmatmul.f32.gmra.mxu0 %v592
        %v807 = vpop.f32.mrf.mxu0
        %v808 = vadd.f32 0.0, %v807
        %809 = vmatmul.f32.gmra.mxu0 %v595
        %v810 = vpop.f32.mrf.mxu0
        %v811 = vadd.f32 0.0, %v810
        %812 = vmatmul.f32.gmra.mxu0 %v598
        %v813 = vpop.f32.mrf.mxu0
        %v814 = vadd.f32 0.0, %v813
        %815 = vmatmul.f32.gmra.mxu0 %v601
        %v816 = vpop.f32.mrf.mxu0
        %v817 = vadd.f32 0.0, %v816
        %818 = vmatmul.f32.gmra.mxu0 %v604
        %v819 = vpop.f32.mrf.mxu0
        %v820 = vadd.f32 0.0, %v819
        %821 = vmatmul.f32.gmra.mxu0 %v607
        %v822 = vpop.f32.mrf.mxu0
        %v823 = vadd.f32 0.0, %v822
        %824 = vmatmul.f32.gmra.mxu0 %v610
        %v825 = vpop.f32.mrf.mxu0
        %v826 = vadd.f32 0.0, %v825
        %827 = vmatmul.f32.gmra.mxu0 %v613
        %v828 = vpop.f32.mrf.mxu0
        %v829 = vadd.f32 0.0, %v828
        %830 = vmatmul.f32.gmra.mxu0 %v616
        %v831 = vpop.f32.mrf.mxu0
        %v832 = vadd.f32 0.0, %v831
        %833 = vmatmul.f32.gmra.mxu0 %v619
        %v834 = vpop.f32.mrf.mxu0
        %v835 = vadd.f32 0.0, %v834
        %836 = vmatmul.f32.gmra.mxu0 %v622
        %v837 = vpop.f32.mrf.mxu0
        %v838 = vadd.f32 0.0, %v837
        %839 = vmatmul.f32.gmra.mxu0 %v625
        %v840 = vpop.f32.mrf.mxu0
        %v841 = vadd.f32 0.0, %v840
        %842 = vmatmul.f32.gmra.mxu0 %v628
        %v843 = vpop.f32.mrf.mxu0
        %v844 = vadd.f32 0.0, %v843
        %845 = vmatmul.f32.gmra.mxu0 %v631
        %v846 = vpop.f32.mrf.mxu0
        %v847 = vadd.f32 0.0, %v846
        %848 = vmatmul.f32.gmra.mxu0 %v634
        %v849 = vpop.f32.mrf.mxu0
        %v850 = vadd.f32 0.0, %v849
        %851 = vmatmul.f32.gmra.mxu0 %v637
        %v852 = vpop.f32.mrf.mxu0
        %v853 = vadd.f32 0.0, %v852
        %854 = vmatmul.f32.gmra.mxu0 %v640
        %v855 = vpop.f32.mrf.mxu0
        %v856 = vadd.f32 0.0, %v855
        %857 = vmatmul.f32.gmra.mxu0 %v643
        %v858 = vpop.f32.mrf.mxu0
        %v859 = vadd.f32 0.0, %v858
        %860 = vmatmul.f32.gmra.mxu0 %v646
        %v861 = vpop.f32.mrf.mxu0
        %v862 = vadd.f32 0.0, %v861
        %863 = vmatmul.f32.gmra.mxu0 %v649
        %v864 = vpop.f32.mrf.mxu0
        %v865 = vadd.f32 0.0, %v864
        %866 = vdwg.mxu0
        %v867 = vxor.u32 %v669, 2147483648
        %v868 = vxor.u32 %v672, 2147483648
        %v869 = vxor.u32 %v675, 2147483648
        %v870 = vxor.u32 %v678, 2147483648
        %v871 = vxor.u32 %v681, 2147483648
        %v872 = vxor.u32 %v684, 2147483648
        %v873 = vxor.u32 %v687, 2147483648
        %v874 = vxor.u32 %v690, 2147483648
        %v875 = vxor.u32 %v693, 2147483648
        %v876 = vxor.u32 %v696, 2147483648
        %v877 = vxor.u32 %v699, 2147483648
        %v878 = vxor.u32 %v702, 2147483648
        %v879 = vxor.u32 %v705, 2147483648
        %v880 = vxor.u32 %v708, 2147483648
        %v881 = vxor.u32 %v711, 2147483648
        %v882 = vxor.u32 %v714, 2147483648
        %v883 = vxor.u32 %v717, 2147483648
        %v884 = vxor.u32 %v720, 2147483648
        %v885 = vxor.u32 %v723, 2147483648
        %v886 = vxor.u32 %v726, 2147483648
        %v887 = vxor.u32 %v729, 2147483648
        %v888 = vxor.u32 %v732, 2147483648
        %v889 = vxor.u32 %v735, 2147483648
        %v890 = vxor.u32 %v738, 2147483648
        %v891 = vxor.u32 %v741, 2147483648
        %v892 = vxor.u32 %v744, 2147483648
        %v893 = vxor.u32 %v747, 2147483648
        %v894 = vxor.u32 %v750, 2147483648
        %v895 = vxor.u32 %v753, 2147483648
        %v896 = vxor.u32 %v756, 2147483648
        %v897 = vmul.f32 %v867, 1.442695
        %v898 = vpow.pop %v897
        %v899 = vmul.f32 %v868, 1.442695
        %v900 = vpow.pop %v899
        %v901 = vmul.f32 %v869, 1.442695
        %v902 = vpow.pop %v901
        %v903 = vmul.f32 %v870, 1.442695
        %v904 = vpow.pop %v903
        %v905 = vmul.f32 %v871, 1.442695
        %v906 = vpow.pop %v905
        %v907 = vmul.f32 %v872, 1.442695
        %v908 = vpow.pop %v907
        %v909 = vmul.f32 %v873, 1.442695
        %v910 = vpow.pop %v909
        %v911 = vmul.f32 %v874, 1.442695
        %v912 = vpow.pop %v911
        %v913 = vmul.f32 %v875, 1.442695
        %v914 = vpow.pop %v913
        %v915 = vmul.f32 %v876, 1.442695
        %v916 = vpow.pop %v915
        %v917 = vmul.f32 %v877, 1.442695
        %v918 = vpow.pop %v917
        %v919 = vmul.f32 %v878, 1.442695
        %v920 = vpow.pop %v919
        %v921 = vmul.f32 %v879, 1.442695
        %v922 = vpow.pop %v921
        %v923 = vmul.f32 %v880, 1.442695
        %v924 = vpow.pop %v923
        %v925 = vmul.f32 %v881, 1.442695
        %v926 = vpow.pop %v925
        %v927 = vmul.f32 %v882, 1.442695
        %v928 = vpow.pop %v927
        %v929 = vmul.f32 %v883, 1.442695
        %v930 = vpow.pop %v929
        %v931 = vmul.f32 %v884, 1.442695
        %v932 = vpow.pop %v931
        %v933 = vmul.f32 %v885, 1.442695
        %v934 = vpow.pop %v933
        %v935 = vmul.f32 %v886, 1.442695
        %v936 = vpow.pop %v935
        %v937 = vmul.f32 %v887, 1.442695
        %v938 = vpow.pop %v937
        %v939 = vmul.f32 %v888, 1.442695
        %v940 = vpow.pop %v939
        %v941 = vmul.f32 %v889, 1.442695
        %v942 = vpow.pop %v941
        %v943 = vmul.f32 %v890, 1.442695
        %v944 = vpow.pop %v943
        %v945 = vmul.f32 %v891, 1.442695
        %v946 = vpow.pop %v945
        %v947 = vmul.f32 %v892, 1.442695
        %v948 = vpow.pop %v947
        %v949 = vmul.f32 %v893, 1.442695
        %v950 = vpow.pop %v949
        %v951 = vmul.f32 %v894, 1.442695
        %v952 = vpow.pop %v951
        %v953 = vmul.f32 %v895, 1.442695
        %v954 = vpow.pop %v953
        %v955 = vmul.f32 %v896, 1.442695
        %v956 = vpow.pop %v955
        %v957 = vadd.f32 %v898, 1.0
        %v958 = vadd.f32 %v900, 1.0
        %v959 = vadd.f32 %v902, 1.0
        %v960 = vadd.f32 %v904, 1.0
        %v961 = vadd.f32 %v906, 1.0
        %v962 = vadd.f32 %v908, 1.0
        %v963 = vadd.f32 %v910, 1.0
        %v964 = vadd.f32 %v912, 1.0
        %v965 = vadd.f32 %v914, 1.0
        %v966 = vadd.f32 %v916, 1.0
        %v967 = vadd.f32 %v918, 1.0
        %v968 = vadd.f32 %v920, 1.0
        %v969 = vadd.f32 %v922, 1.0
        %v970 = vadd.f32 %v924, 1.0
        %v971 = vadd.f32 %v926, 1.0
        %v972 = vadd.f32 %v928, 1.0
        %v973 = vadd.f32 %v930, 1.0
        %v974 = vadd.f32 %v932, 1.0
        %v975 = vadd.f32 %v934, 1.0
        %v976 = vadd.f32 %v936, 1.0
        %v977 = vadd.f32 %v938, 1.0
        %v978 = vadd.f32 %v940, 1.0
        %v979 = vadd.f32 %v942, 1.0
        %v980 = vadd.f32 %v944, 1.0
        %v981 = vadd.f32 %v946, 1.0
        %v982 = vadd.f32 %v948, 1.0
        %v983 = vadd.f32 %v950, 1.0
        %v984 = vadd.f32 %v952, 1.0
        %v985 = vadd.f32 %v954, 1.0
        %v986 = vadd.f32 %v956, 1.0
        %v987 = vrcp.pop %v957
        %v988 = vmul.f32 %v957, %v987
        %v989 = vsub.f32 1.0, %v988
        %v990 = vmul.f32 %v987, %v989
        %v991 = vadd.f32 %v987, %v990
        %vm992 = vweird.f32 %v957
        %vm993 = vweird.f32 %v987
        %vm994 = vmor %vm992, %vm993
        %v995 = vsel %vm994, %v987, %v991
        %v996 = vand.u32 2147483647, %v957
        %vm997 = vcmp.eq.f32.partialorder %v996, 8.507059e+37
        %v998 = vand.u32 %v957, 2147483648
        %v999 = vor.u32 1.1754944e-38, %v998
        %v1000 = vsel %vm997, %v999, %v995
        %v1001 = vmul.f32 1.0, %v1000
        %v1002 = vrcp.pop %v958
        %v1003 = vmul.f32 %v958, %v1002
        %v1004 = vsub.f32 1.0, %v1003
        %v1005 = vmul.f32 %v1002, %v1004
        %v1006 = vadd.f32 %v1002, %v1005
        %vm1007 = vweird.f32 %v958
        %vm1008 = vweird.f32 %v1002
        %vm1009 = vmor %vm1007, %vm1008
        %v1010 = vsel %vm1009, %v1002, %v1006
        %v1011 = vand.u32 2147483647, %v958
        %vm1012 = vcmp.eq.f32.partialorder %v1011, 8.507059e+37
        %v1013 = vand.u32 %v958, 2147483648
        %v1014 = vor.u32 1.1754944e-38, %v1013
        %v1015 = vsel %vm1012, %v1014, %v1010
        %v1016 = vmul.f32 1.0, %v1015
        %v1017 = vrcp.pop %v959
        %v1018 = vmul.f32 %v959, %v1017
        %v1019 = vsub.f32 1.0, %v1018
        %v1020 = vmul.f32 %v1017, %v1019
        %v1021 = vadd.f32 %v1017, %v1020
        %vm1022 = vweird.f32 %v959
        %vm1023 = vweird.f32 %v1017
        %vm1024 = vmor %vm1022, %vm1023
        %v1025 = vsel %vm1024, %v1017, %v1021
        %v1026 = vand.u32 2147483647, %v959
        %vm1027 = vcmp.eq.f32.partialorder %v1026, 8.507059e+37
        %v1028 = vand.u32 %v959, 2147483648
        %v1029 = vor.u32 1.1754944e-38, %v1028
        %v1030 = vsel %vm1027, %v1029, %v1025
        %v1031 = vmul.f32 1.0, %v1030
        %v1032 = vrcp.pop %v960
        %v1033 = vmul.f32 %v960, %v1032
        %v1034 = vsub.f32 1.0, %v1033
        %v1035 = vmul.f32 %v1032, %v1034
        %v1036 = vadd.f32 %v1032, %v1035
        %vm1037 = vweird.f32 %v960
        %vm1038 = vweird.f32 %v1032
        %vm1039 = vmor %vm1037, %vm1038
        %v1040 = vsel %vm1039, %v1032, %v1036
        %v1041 = vand.u32 2147483647, %v960
        %vm1042 = vcmp.eq.f32.partialorder %v1041, 8.507059e+37
        %v1043 = vand.u32 %v960, 2147483648
        %v1044 = vor.u32 1.1754944e-38, %v1043
        %v1045 = vsel %vm1042, %v1044, %v1040
        %v1046 = vmul.f32 1.0, %v1045
        %v1047 = vrcp.pop %v961
        %v1048 = vmul.f32 %v961, %v1047
        %v1049 = vsub.f32 1.0, %v1048
        %v1050 = vmul.f32 %v1047, %v1049
        %v1051 = vadd.f32 %v1047, %v1050
        %vm1052 = vweird.f32 %v961
        %vm1053 = vweird.f32 %v1047
        %vm1054 = vmor %vm1052, %vm1053
        %v1055 = vsel %vm1054, %v1047, %v1051
        %v1056 = vand.u32 2147483647, %v961
        %vm1057 = vcmp.eq.f32.partialorder %v1056, 8.507059e+37
        %v1058 = vand.u32 %v961, 2147483648
        %v1059 = vor.u32 1.1754944e-38, %v1058
        %v1060 = vsel %vm1057, %v1059, %v1055
        %v1061 = vmul.f32 1.0, %v1060
        %v1062 = vrcp.pop %v962
        %v1063 = vmul.f32 %v962, %v1062
        %v1064 = vsub.f32 1.0, %v1063
        %v1065 = vmul.f32 %v1062, %v1064
        %v1066 = vadd.f32 %v1062, %v1065
        %vm1067 = vweird.f32 %v962
        %vm1068 = vweird.f32 %v1062
        %vm1069 = vmor %vm1067, %vm1068
        %v1070 = vsel %vm1069, %v1062, %v1066
        %v1071 = vand.u32 2147483647, %v962
        %vm1072 = vcmp.eq.f32.partialorder %v1071, 8.507059e+37
        %v1073 = vand.u32 %v962, 2147483648
        %v1074 = vor.u32 1.1754944e-38, %v1073
        %v1075 = vsel %vm1072, %v1074, %v1070
        %v1076 = vmul.f32 1.0, %v1075
        %v1077 = vrcp.pop %v963
        %v1078 = vmul.f32 %v963, %v1077
        %v1079 = vsub.f32 1.0, %v1078
        %v1080 = vmul.f32 %v1077, %v1079
        %v1081 = vadd.f32 %v1077, %v1080
        %vm1082 = vweird.f32 %v963
        %vm1083 = vweird.f32 %v1077
        %vm1084 = vmor %vm1082, %vm1083
        %v1085 = vsel %vm1084, %v1077, %v1081
        %v1086 = vand.u32 2147483647, %v963
        %vm1087 = vcmp.eq.f32.partialorder %v1086, 8.507059e+37
        %v1088 = vand.u32 %v963, 2147483648
        %v1089 = vor.u32 1.1754944e-38, %v1088
        %v1090 = vsel %vm1087, %v1089, %v1085
        %v1091 = vmul.f32 1.0, %v1090
        %v1092 = vrcp.pop %v964
        %v1093 = vmul.f32 %v964, %v1092
        %v1094 = vsub.f32 1.0, %v1093
        %v1095 = vmul.f32 %v1092, %v1094
        %v1096 = vadd.f32 %v1092, %v1095
        %vm1097 = vweird.f32 %v964
        %vm1098 = vweird.f32 %v1092
        %vm1099 = vmor %vm1097, %vm1098
        %v1100 = vsel %vm1099, %v1092, %v1096
        %v1101 = vand.u32 2147483647, %v964
        %vm1102 = vcmp.eq.f32.partialorder %v1101, 8.507059e+37
        %v1103 = vand.u32 %v964, 2147483648
        %v1104 = vor.u32 1.1754944e-38, %v1103
        %v1105 = vsel %vm1102, %v1104, %v1100
        %v1106 = vmul.f32 1.0, %v1105
        %v1107 = vrcp.pop %v965
        %v1108 = vmul.f32 %v965, %v1107
        %v1109 = vsub.f32 1.0, %v1108
        %v1110 = vmul.f32 %v1107, %v1109
        %v1111 = vadd.f32 %v1107, %v1110
        %vm1112 = vweird.f32 %v965
        %vm1113 = vweird.f32 %v1107
        %vm1114 = vmor %vm1112, %vm1113
        %v1115 = vsel %vm1114, %v1107, %v1111
        %v1116 = vand.u32 2147483647, %v965
        %vm1117 = vcmp.eq.f32.partialorder %v1116, 8.507059e+37
        %v1118 = vand.u32 %v965, 2147483648
        %v1119 = vor.u32 1.1754944e-38, %v1118
        %v1120 = vsel %vm1117, %v1119, %v1115
        %v1121 = vmul.f32 1.0, %v1120
        %v1122 = vrcp.pop %v966
        %v1123 = vmul.f32 %v966, %v1122
        %v1124 = vsub.f32 1.0, %v1123
        %v1125 = vmul.f32 %v1122, %v1124
        %v1126 = vadd.f32 %v1122, %v1125
        %vm1127 = vweird.f32 %v966
        %vm1128 = vweird.f32 %v1122
        %vm1129 = vmor %vm1127, %vm1128
        %v1130 = vsel %vm1129, %v1122, %v1126
        %v1131 = vand.u32 2147483647, %v966
        %vm1132 = vcmp.eq.f32.partialorder %v1131, 8.507059e+37
        %v1133 = vand.u32 %v966, 2147483648
        %v1134 = vor.u32 1.1754944e-38, %v1133
        %v1135 = vsel %vm1132, %v1134, %v1130
        %v1136 = vmul.f32 1.0, %v1135
        %v1137 = vrcp.pop %v967
        %v1138 = vmul.f32 %v967, %v1137
        %v1139 = vsub.f32 1.0, %v1138
        %v1140 = vmul.f32 %v1137, %v1139
        %v1141 = vadd.f32 %v1137, %v1140
        %vm1142 = vweird.f32 %v967
        %vm1143 = vweird.f32 %v1137
        %vm1144 = vmor %vm1142, %vm1143
        %v1145 = vsel %vm1144, %v1137, %v1141
        %v1146 = vand.u32 2147483647, %v967
        %vm1147 = vcmp.eq.f32.partialorder %v1146, 8.507059e+37
        %v1148 = vand.u32 %v967, 2147483648
        %v1149 = vor.u32 1.1754944e-38, %v1148
        %v1150 = vsel %vm1147, %v1149, %v1145
        %v1151 = vmul.f32 1.0, %v1150
        %v1152 = vrcp.pop %v968
        %v1153 = vmul.f32 %v968, %v1152
        %v1154 = vsub.f32 1.0, %v1153
        %v1155 = vmul.f32 %v1152, %v1154
        %v1156 = vadd.f32 %v1152, %v1155
        %vm1157 = vweird.f32 %v968
        %vm1158 = vweird.f32 %v1152
        %vm1159 = vmor %vm1157, %vm1158
        %v1160 = vsel %vm1159, %v1152, %v1156
        %v1161 = vand.u32 2147483647, %v968
        %vm1162 = vcmp.eq.f32.partialorder %v1161, 8.507059e+37
        %v1163 = vand.u32 %v968, 2147483648
        %v1164 = vor.u32 1.1754944e-38, %v1163
        %v1165 = vsel %vm1162, %v1164, %v1160
        %v1166 = vmul.f32 1.0, %v1165
        %v1167 = vrcp.pop %v969
        %v1168 = vmul.f32 %v969, %v1167
        %v1169 = vsub.f32 1.0, %v1168
        %v1170 = vmul.f32 %v1167, %v1169
        %v1171 = vadd.f32 %v1167, %v1170
        %vm1172 = vweird.f32 %v969
        %vm1173 = vweird.f32 %v1167
        %vm1174 = vmor %vm1172, %vm1173
        %v1175 = vsel %vm1174, %v1167, %v1171
        %v1176 = vand.u32 2147483647, %v969
        %vm1177 = vcmp.eq.f32.partialorder %v1176, 8.507059e+37
        %v1178 = vand.u32 %v969, 2147483648
        %v1179 = vor.u32 1.1754944e-38, %v1178
        %v1180 = vsel %vm1177, %v1179, %v1175
        %v1181 = vmul.f32 1.0, %v1180
        %v1182 = vrcp.pop %v970
        %v1183 = vmul.f32 %v970, %v1182
        %v1184 = vsub.f32 1.0, %v1183
        %v1185 = vmul.f32 %v1182, %v1184
        %v1186 = vadd.f32 %v1182, %v1185
        %vm1187 = vweird.f32 %v970
        %vm1188 = vweird.f32 %v1182
        %vm1189 = vmor %vm1187, %vm1188
        %v1190 = vsel %vm1189, %v1182, %v1186
        %v1191 = vand.u32 2147483647, %v970
        %vm1192 = vcmp.eq.f32.partialorder %v1191, 8.507059e+37
        %v1193 = vand.u32 %v970, 2147483648
        %v1194 = vor.u32 1.1754944e-38, %v1193
        %v1195 = vsel %vm1192, %v1194, %v1190
        %v1196 = vmul.f32 1.0, %v1195
        %v1197 = vrcp.pop %v971
        %v1198 = vmul.f32 %v971, %v1197
        %v1199 = vsub.f32 1.0, %v1198
        %v1200 = vmul.f32 %v1197, %v1199
        %v1201 = vadd.f32 %v1197, %v1200
        %vm1202 = vweird.f32 %v971
        %vm1203 = vweird.f32 %v1197
        %vm1204 = vmor %vm1202, %vm1203
        %v1205 = vsel %vm1204, %v1197, %v1201
        %v1206 = vand.u32 2147483647, %v971
        %vm1207 = vcmp.eq.f32.partialorder %v1206, 8.507059e+37
        %v1208 = vand.u32 %v971, 2147483648
        %v1209 = vor.u32 1.1754944e-38, %v1208
        %v1210 = vsel %vm1207, %v1209, %v1205
        %v1211 = vmul.f32 1.0, %v1210
        %v1212 = vrcp.pop %v972
        %v1213 = vmul.f32 %v972, %v1212
        %v1214 = vsub.f32 1.0, %v1213
        %v1215 = vmul.f32 %v1212, %v1214
        %v1216 = vadd.f32 %v1212, %v1215
        %vm1217 = vweird.f32 %v972
        %vm1218 = vweird.f32 %v1212
        %vm1219 = vmor %vm1217, %vm1218
        %v1220 = vsel %vm1219, %v1212, %v1216
        %v1221 = vand.u32 2147483647, %v972
        %vm1222 = vcmp.eq.f32.partialorder %v1221, 8.507059e+37
        %v1223 = vand.u32 %v972, 2147483648
        %v1224 = vor.u32 1.1754944e-38, %v1223
        %v1225 = vsel %vm1222, %v1224, %v1220
        %v1226 = vmul.f32 1.0, %v1225
        %v1227 = vrcp.pop %v973
        %v1228 = vmul.f32 %v973, %v1227
        %v1229 = vsub.f32 1.0, %v1228
        %v1230 = vmul.f32 %v1227, %v1229
        %v1231 = vadd.f32 %v1227, %v1230
        %vm1232 = vweird.f32 %v973
        %vm1233 = vweird.f32 %v1227
        %vm1234 = vmor %vm1232, %vm1233
        %v1235 = vsel %vm1234, %v1227, %v1231
        %v1236 = vand.u32 2147483647, %v973
        %vm1237 = vcmp.eq.f32.partialorder %v1236, 8.507059e+37
        %v1238 = vand.u32 %v973, 2147483648
        %v1239 = vor.u32 1.1754944e-38, %v1238
        %v1240 = vsel %vm1237, %v1239, %v1235
        %v1241 = vmul.f32 1.0, %v1240
        %v1242 = vrcp.pop %v974
        %v1243 = vmul.f32 %v974, %v1242
        %v1244 = vsub.f32 1.0, %v1243
        %v1245 = vmul.f32 %v1242, %v1244
        %v1246 = vadd.f32 %v1242, %v1245
        %vm1247 = vweird.f32 %v974
        %vm1248 = vweird.f32 %v1242
        %vm1249 = vmor %vm1247, %vm1248
        %v1250 = vsel %vm1249, %v1242, %v1246
        %v1251 = vand.u32 2147483647, %v974
        %vm1252 = vcmp.eq.f32.partialorder %v1251, 8.507059e+37
        %v1253 = vand.u32 %v974, 2147483648
        %v1254 = vor.u32 1.1754944e-38, %v1253
        %v1255 = vsel %vm1252, %v1254, %v1250
        %v1256 = vmul.f32 1.0, %v1255
        %v1257 = vrcp.pop %v975
        %v1258 = vmul.f32 %v975, %v1257
        %v1259 = vsub.f32 1.0, %v1258
        %v1260 = vmul.f32 %v1257, %v1259
        %v1261 = vadd.f32 %v1257, %v1260
        %vm1262 = vweird.f32 %v975
        %vm1263 = vweird.f32 %v1257
        %vm1264 = vmor %vm1262, %vm1263
        %v1265 = vsel %vm1264, %v1257, %v1261
        %v1266 = vand.u32 2147483647, %v975
        %vm1267 = vcmp.eq.f32.partialorder %v1266, 8.507059e+37
        %v1268 = vand.u32 %v975, 2147483648
        %v1269 = vor.u32 1.1754944e-38, %v1268
        %v1270 = vsel %vm1267, %v1269, %v1265
        %v1271 = vmul.f32 1.0, %v1270
        %v1272 = vrcp.pop %v976
        %v1273 = vmul.f32 %v976, %v1272
        %v1274 = vsub.f32 1.0, %v1273
        %v1275 = vmul.f32 %v1272, %v1274
        %v1276 = vadd.f32 %v1272, %v1275
        %vm1277 = vweird.f32 %v976
        %vm1278 = vweird.f32 %v1272
        %vm1279 = vmor %vm1277, %vm1278
        %v1280 = vsel %vm1279, %v1272, %v1276
        %v1281 = vand.u32 2147483647, %v976
        %vm1282 = vcmp.eq.f32.partialorder %v1281, 8.507059e+37
        %v1283 = vand.u32 %v976, 2147483648
        %v1284 = vor.u32 1.1754944e-38, %v1283
        %v1285 = vsel %vm1282, %v1284, %v1280
        %v1286 = vmul.f32 1.0, %v1285
        %v1287 = vrcp.pop %v977
        %v1288 = vmul.f32 %v977, %v1287
        %v1289 = vsub.f32 1.0, %v1288
        %v1290 = vmul.f32 %v1287, %v1289
        %v1291 = vadd.f32 %v1287, %v1290
        %vm1292 = vweird.f32 %v977
        %vm1293 = vweird.f32 %v1287
        %vm1294 = vmor %vm1292, %vm1293
        %v1295 = vsel %vm1294, %v1287, %v1291
        %v1296 = vand.u32 2147483647, %v977
        %vm1297 = vcmp.eq.f32.partialorder %v1296, 8.507059e+37
        %v1298 = vand.u32 %v977, 2147483648
        %v1299 = vor.u32 1.1754944e-38, %v1298
        %v1300 = vsel %vm1297, %v1299, %v1295
        %v1301 = vmul.f32 1.0, %v1300
        %v1302 = vrcp.pop %v978
        %v1303 = vmul.f32 %v978, %v1302
        %v1304 = vsub.f32 1.0, %v1303
        %v1305 = vmul.f32 %v1302, %v1304
        %v1306 = vadd.f32 %v1302, %v1305
        %vm1307 = vweird.f32 %v978
        %vm1308 = vweird.f32 %v1302
        %vm1309 = vmor %vm1307, %vm1308
        %v1310 = vsel %vm1309, %v1302, %v1306
        %v1311 = vand.u32 2147483647, %v978
        %vm1312 = vcmp.eq.f32.partialorder %v1311, 8.507059e+37
        %v1313 = vand.u32 %v978, 2147483648
        %v1314 = vor.u32 1.1754944e-38, %v1313
        %v1315 = vsel %vm1312, %v1314, %v1310
        %v1316 = vmul.f32 1.0, %v1315
        %v1317 = vrcp.pop %v979
        %v1318 = vmul.f32 %v979, %v1317
        %v1319 = vsub.f32 1.0, %v1318
        %v1320 = vmul.f32 %v1317, %v1319
        %v1321 = vadd.f32 %v1317, %v1320
        %vm1322 = vweird.f32 %v979
        %vm1323 = vweird.f32 %v1317
        %vm1324 = vmor %vm1322, %vm1323
        %v1325 = vsel %vm1324, %v1317, %v1321
        %v1326 = vand.u32 2147483647, %v979
        %vm1327 = vcmp.eq.f32.partialorder %v1326, 8.507059e+37
        %v1328 = vand.u32 %v979, 2147483648
        %v1329 = vor.u32 1.1754944e-38, %v1328
        %v1330 = vsel %vm1327, %v1329, %v1325
        %v1331 = vmul.f32 1.0, %v1330
        %v1332 = vrcp.pop %v980
        %v1333 = vmul.f32 %v980, %v1332
        %v1334 = vsub.f32 1.0, %v1333
        %v1335 = vmul.f32 %v1332, %v1334
        %v1336 = vadd.f32 %v1332, %v1335
        %vm1337 = vweird.f32 %v980
        %vm1338 = vweird.f32 %v1332
        %vm1339 = vmor %vm1337, %vm1338
        %v1340 = vsel %vm1339, %v1332, %v1336
        %v1341 = vand.u32 2147483647, %v980
        %vm1342 = vcmp.eq.f32.partialorder %v1341, 8.507059e+37
        %v1343 = vand.u32 %v980, 2147483648
        %v1344 = vor.u32 1.1754944e-38, %v1343
        %v1345 = vsel %vm1342, %v1344, %v1340
        %v1346 = vmul.f32 1.0, %v1345
        %v1347 = vrcp.pop %v981
        %v1348 = vmul.f32 %v981, %v1347
        %v1349 = vsub.f32 1.0, %v1348
        %v1350 = vmul.f32 %v1347, %v1349
        %v1351 = vadd.f32 %v1347, %v1350
        %vm1352 = vweird.f32 %v981
        %vm1353 = vweird.f32 %v1347
        %vm1354 = vmor %vm1352, %vm1353
        %v1355 = vsel %vm1354, %v1347, %v1351
        %v1356 = vand.u32 2147483647, %v981
        %vm1357 = vcmp.eq.f32.partialorder %v1356, 8.507059e+37
        %v1358 = vand.u32 %v981, 2147483648
        %v1359 = vor.u32 1.1754944e-38, %v1358
        %v1360 = vsel %vm1357, %v1359, %v1355
        %v1361 = vmul.f32 1.0, %v1360
        %v1362 = vrcp.pop %v982
        %v1363 = vmul.f32 %v982, %v1362
        %v1364 = vsub.f32 1.0, %v1363
        %v1365 = vmul.f32 %v1362, %v1364
        %v1366 = vadd.f32 %v1362, %v1365
        %vm1367 = vweird.f32 %v982
        %vm1368 = vweird.f32 %v1362
        %vm1369 = vmor %vm1367, %vm1368
        %v1370 = vsel %vm1369, %v1362, %v1366
        %v1371 = vand.u32 2147483647, %v982
        %vm1372 = vcmp.eq.f32.partialorder %v1371, 8.507059e+37
        %v1373 = vand.u32 %v982, 2147483648
        %v1374 = vor.u32 1.1754944e-38, %v1373
        %v1375 = vsel %vm1372, %v1374, %v1370
        %v1376 = vmul.f32 1.0, %v1375
        %v1377 = vrcp.pop %v983
        %v1378 = vmul.f32 %v983, %v1377
        %v1379 = vsub.f32 1.0, %v1378
        %v1380 = vmul.f32 %v1377, %v1379
        %v1381 = vadd.f32 %v1377, %v1380
        %vm1382 = vweird.f32 %v983
        %vm1383 = vweird.f32 %v1377
        %vm1384 = vmor %vm1382, %vm1383
        %v1385 = vsel %vm1384, %v1377, %v1381
        %v1386 = vand.u32 2147483647, %v983
        %vm1387 = vcmp.eq.f32.partialorder %v1386, 8.507059e+37
        %v1388 = vand.u32 %v983, 2147483648
        %v1389 = vor.u32 1.1754944e-38, %v1388
        %v1390 = vsel %vm1387, %v1389, %v1385
        %v1391 = vmul.f32 1.0, %v1390
        %v1392 = vrcp.pop %v984
        %v1393 = vmul.f32 %v984, %v1392
        %v1394 = vsub.f32 1.0, %v1393
        %v1395 = vmul.f32 %v1392, %v1394
        %v1396 = vadd.f32 %v1392, %v1395
        %vm1397 = vweird.f32 %v984
        %vm1398 = vweird.f32 %v1392
        %vm1399 = vmor %vm1397, %vm1398
        %v1400 = vsel %vm1399, %v1392, %v1396
        %v1401 = vand.u32 2147483647, %v984
        %vm1402 = vcmp.eq.f32.partialorder %v1401, 8.507059e+37
        %v1403 = vand.u32 %v984, 2147483648
        %v1404 = vor.u32 1.1754944e-38, %v1403
        %v1405 = vsel %vm1402, %v1404, %v1400
        %v1406 = vmul.f32 1.0, %v1405
        %v1407 = vrcp.pop %v985
        %v1408 = vmul.f32 %v985, %v1407
        %v1409 = vsub.f32 1.0, %v1408
        %v1410 = vmul.f32 %v1407, %v1409
        %v1411 = vadd.f32 %v1407, %v1410
        %vm1412 = vweird.f32 %v985
        %vm1413 = vweird.f32 %v1407
        %vm1414 = vmor %vm1412, %vm1413
        %v1415 = vsel %vm1414, %v1407, %v1411
        %v1416 = vand.u32 2147483647, %v985
        %vm1417 = vcmp.eq.f32.partialorder %v1416, 8.507059e+37
        %v1418 = vand.u32 %v985, 2147483648
        %v1419 = vor.u32 1.1754944e-38, %v1418
        %v1420 = vsel %vm1417, %v1419, %v1415
        %v1421 = vmul.f32 1.0, %v1420
        %v1422 = vrcp.pop %v986
        %v1423 = vmul.f32 %v986, %v1422
        %v1424 = vsub.f32 1.0, %v1423
        %v1425 = vmul.f32 %v1422, %v1424
        %v1426 = vadd.f32 %v1422, %v1425
        %vm1427 = vweird.f32 %v986
        %vm1428 = vweird.f32 %v1422
        %vm1429 = vmor %vm1427, %vm1428
        %v1430 = vsel %vm1429, %v1422, %v1426
        %v1431 = vand.u32 2147483647, %v986
        %vm1432 = vcmp.eq.f32.partialorder %v1431, 8.507059e+37
        %v1433 = vand.u32 %v986, 2147483648
        %v1434 = vor.u32 1.1754944e-38, %v1433
        %v1435 = vsel %vm1432, %v1434, %v1430
        %v1436 = vmul.f32 1.0, %v1435
        %v1437 = vmul.f32 %v669, %v1001
        %v1438 = vmul.f32 %v672, %v1016
        %v1439 = vmul.f32 %v675, %v1031
        %v1440 = vmul.f32 %v678, %v1046
        %v1441 = vmul.f32 %v681, %v1061
        %v1442 = vmul.f32 %v684, %v1076
        %v1443 = vmul.f32 %v687, %v1091
        %v1444 = vmul.f32 %v690, %v1106
        %v1445 = vmul.f32 %v693, %v1121
        %v1446 = vmul.f32 %v696, %v1136
        %v1447 = vmul.f32 %v699, %v1151
        %v1448 = vmul.f32 %v702, %v1166
        %v1449 = vmul.f32 %v705, %v1181
        %v1450 = vmul.f32 %v708, %v1196
        %v1451 = vmul.f32 %v711, %v1211
        %v1452 = vmul.f32 %v714, %v1226
        %v1453 = vmul.f32 %v717, %v1241
        %v1454 = vmul.f32 %v720, %v1256
        %v1455 = vmul.f32 %v723, %v1271
        %v1456 = vmul.f32 %v726, %v1286
        %v1457 = vmul.f32 %v729, %v1301
        %v1458 = vmul.f32 %v732, %v1316
        %v1459 = vmul.f32 %v735, %v1331
        %v1460 = vmul.f32 %v738, %v1346
        %v1461 = vmul.f32 %v741, %v1361
        %v1462 = vmul.f32 %v744, %v1376
        %v1463 = vmul.f32 %v747, %v1391
        %v1464 = vmul.f32 %v750, %v1406
        %v1465 = vmul.f32 %v753, %v1421
        %v1466 = vmul.f32 %v756, %v1436
        %v1467 = vxor.u32 %v778, 2147483648
        %v1468 = vxor.u32 %v781, 2147483648
        %v1469 = vxor.u32 %v784, 2147483648
        %v1470 = vxor.u32 %v787, 2147483648
        %v1471 = vxor.u32 %v790, 2147483648
        %v1472 = vxor.u32 %v793, 2147483648
        %v1473 = vxor.u32 %v796, 2147483648
        %v1474 = vxor.u32 %v799, 2147483648
        %v1475 = vxor.u32 %v802, 2147483648
        %v1476 = vxor.u32 %v805, 2147483648
        %v1477 = vxor.u32 %v808, 2147483648
        %v1478 = vxor.u32 %v811, 2147483648
        %v1479 = vxor.u32 %v814, 2147483648
        %v1480 = vxor.u32 %v817, 2147483648
        %v1481 = vxor.u32 %v820, 2147483648
        %v1482 = vxor.u32 %v823, 2147483648
        %v1483 = vxor.u32 %v826, 2147483648
        %v1484 = vxor.u32 %v829, 2147483648
        %v1485 = vxor.u32 %v832, 2147483648
        %v1486 = vxor.u32 %v835, 2147483648
        %v1487 = vxor.u32 %v838, 2147483648
        %v1488 = vxor.u32 %v841, 2147483648
        %v1489 = vxor.u32 %v844, 2147483648
        %v1490 = vxor.u32 %v847, 2147483648
        %v1491 = vxor.u32 %v850, 2147483648
        %v1492 = vxor.u32 %v853, 2147483648
        %v1493 = vxor.u32 %v856, 2147483648
        %v1494 = vxor.u32 %v859, 2147483648
        %v1495 = vxor.u32 %v862, 2147483648
        %v1496 = vxor.u32 %v865, 2147483648
        %v1497 = vmul.f32 %v1467, 1.442695
        %v1498 = vpow.pop %v1497
        %v1499 = vmul.f32 %v1468, 1.442695
        %v1500 = vpow.pop %v1499
        %v1501 = vmul.f32 %v1469, 1.442695
        %v1502 = vpow.pop %v1501
        %v1503 = vmul.f32 %v1470, 1.442695
        %v1504 = vpow.pop %v1503
        %v1505 = vmul.f32 %v1471, 1.442695
        %v1506 = vpow.pop %v1505
        %v1507 = vmul.f32 %v1472, 1.442695
        %v1508 = vpow.pop %v1507
        %v1509 = vmul.f32 %v1473, 1.442695
        %v1510 = vpow.pop %v1509
        %v1511 = vmul.f32 %v1474, 1.442695
        %v1512 = vpow.pop %v1511
        %v1513 = vmul.f32 %v1475, 1.442695
        %v1514 = vpow.pop %v1513
        %v1515 = vmul.f32 %v1476, 1.442695
        %v1516 = vpow.pop %v1515
        %v1517 = vmul.f32 %v1477, 1.442695
        %v1518 = vpow.pop %v1517
        %v1519 = vmul.f32 %v1478, 1.442695
        %v1520 = vpow.pop %v1519
        %v1521 = vmul.f32 %v1479, 1.442695
        %v1522 = vpow.pop %v1521
        %v1523 = vmul.f32 %v1480, 1.442695
        %v1524 = vpow.pop %v1523
        %v1525 = vmul.f32 %v1481, 1.442695
        %v1526 = vpow.pop %v1525
        %v1527 = vmul.f32 %v1482, 1.442695
        %v1528 = vpow.pop %v1527
        %v1529 = vmul.f32 %v1483, 1.442695
        %v1530 = vpow.pop %v1529
        %v1531 = vmul.f32 %v1484, 1.442695
        %v1532 = vpow.pop %v1531
        %v1533 = vmul.f32 %v1485, 1.442695
        %v1534 = vpow.pop %v1533
        %v1535 = vmul.f32 %v1486, 1.442695
        %v1536 = vpow.pop %v1535
        %v1537 = vmul.f32 %v1487, 1.442695
        %v1538 = vpow.pop %v1537
        %v1539 = vmul.f32 %v1488, 1.442695
        %v1540 = vpow.pop %v1539
        %v1541 = vmul.f32 %v1489, 1.442695
        %v1542 = vpow.pop %v1541
        %v1543 = vmul.f32 %v1490, 1.442695
        %v1544 = vpow.pop %v1543
        %v1545 = vmul.f32 %v1491, 1.442695
        %v1546 = vpow.pop %v1545
        %v1547 = vmul.f32 %v1492, 1.442695
        %v1548 = vpow.pop %v1547
        %v1549 = vmul.f32 %v1493, 1.442695
        %v1550 = vpow.pop %v1549
        %v1551 = vmul.f32 %v1494, 1.442695
        %v1552 = vpow.pop %v1551
        %v1553 = vmul.f32 %v1495, 1.442695
        %v1554 = vpow.pop %v1553
        %v1555 = vmul.f32 %v1496, 1.442695
        %v1556 = vpow.pop %v1555
        %v1557 = vadd.f32 %v1498, 1.0
        %v1558 = vadd.f32 %v1500, 1.0
        %v1559 = vadd.f32 %v1502, 1.0
        %v1560 = vadd.f32 %v1504, 1.0
        %v1561 = vadd.f32 %v1506, 1.0
        %v1562 = vadd.f32 %v1508, 1.0
        %v1563 = vadd.f32 %v1510, 1.0
        %v1564 = vadd.f32 %v1512, 1.0
        %v1565 = vadd.f32 %v1514, 1.0
        %v1566 = vadd.f32 %v1516, 1.0
        %v1567 = vadd.f32 %v1518, 1.0
        %v1568 = vadd.f32 %v1520, 1.0
        %v1569 = vadd.f32 %v1522, 1.0
        %v1570 = vadd.f32 %v1524, 1.0
        %v1571 = vadd.f32 %v1526, 1.0
        %v1572 = vadd.f32 %v1528, 1.0
        %v1573 = vadd.f32 %v1530, 1.0
        %v1574 = vadd.f32 %v1532, 1.0
        %v1575 = vadd.f32 %v1534, 1.0
        %v1576 = vadd.f32 %v1536, 1.0
        %v1577 = vadd.f32 %v1538, 1.0
        %v1578 = vadd.f32 %v1540, 1.0
        %v1579 = vadd.f32 %v1542, 1.0
        %v1580 = vadd.f32 %v1544, 1.0
        %v1581 = vadd.f32 %v1546, 1.0
        %v1582 = vadd.f32 %v1548, 1.0
        %v1583 = vadd.f32 %v1550, 1.0
        %v1584 = vadd.f32 %v1552, 1.0
        %v1585 = vadd.f32 %v1554, 1.0
        %v1586 = vadd.f32 %v1556, 1.0
        %v1587 = vrcp.pop %v1557
        %v1588 = vmul.f32 %v1557, %v1587
        %v1589 = vsub.f32 1.0, %v1588
        %v1590 = vmul.f32 %v1587, %v1589
        %v1591 = vadd.f32 %v1587, %v1590
        %vm1592 = vweird.f32 %v1557
        %vm1593 = vweird.f32 %v1587
        %vm1594 = vmor %vm1592, %vm1593
        %v1595 = vsel %vm1594, %v1587, %v1591
        %v1596 = vand.u32 2147483647, %v1557
        %vm1597 = vcmp.eq.f32.partialorder %v1596, 8.507059e+37
        %v1598 = vand.u32 %v1557, 2147483648
        %v1599 = vor.u32 1.1754944e-38, %v1598
        %v1600 = vsel %vm1597, %v1599, %v1595
        %v1601 = vmul.f32 1.0, %v1600
        %v1602 = vrcp.pop %v1558
        %v1603 = vmul.f32 %v1558, %v1602
        %v1604 = vsub.f32 1.0, %v1603
        %v1605 = vmul.f32 %v1602, %v1604
        %v1606 = vadd.f32 %v1602, %v1605
        %vm1607 = vweird.f32 %v1558
        %vm1608 = vweird.f32 %v1602
        %vm1609 = vmor %vm1607, %vm1608
        %v1610 = vsel %vm1609, %v1602, %v1606
        %v1611 = vand.u32 2147483647, %v1558
        %vm1612 = vcmp.eq.f32.partialorder %v1611, 8.507059e+37
        %v1613 = vand.u32 %v1558, 2147483648
        %v1614 = vor.u32 1.1754944e-38, %v1613
        %v1615 = vsel %vm1612, %v1614, %v1610
        %v1616 = vmul.f32 1.0, %v1615
        %v1617 = vrcp.pop %v1559
        %v1618 = vmul.f32 %v1559, %v1617
        %v1619 = vsub.f32 1.0, %v1618
        %v1620 = vmul.f32 %v1617, %v1619
        %v1621 = vadd.f32 %v1617, %v1620
        %vm1622 = vweird.f32 %v1559
        %vm1623 = vweird.f32 %v1617
        %vm1624 = vmor %vm1622, %vm1623
        %v1625 = vsel %vm1624, %v1617, %v1621
        %v1626 = vand.u32 2147483647, %v1559
        %vm1627 = vcmp.eq.f32.partialorder %v1626, 8.507059e+37
        %v1628 = vand.u32 %v1559, 2147483648
        %v1629 = vor.u32 1.1754944e-38, %v1628
        %v1630 = vsel %vm1627, %v1629, %v1625
        %v1631 = vmul.f32 1.0, %v1630
        %v1632 = vrcp.pop %v1560
        %v1633 = vmul.f32 %v1560, %v1632
        %v1634 = vsub.f32 1.0, %v1633
        %v1635 = vmul.f32 %v1632, %v1634
        %v1636 = vadd.f32 %v1632, %v1635
        %vm1637 = vweird.f32 %v1560
        %vm1638 = vweird.f32 %v1632
        %vm1639 = vmor %vm1637, %vm1638
        %v1640 = vsel %vm1639, %v1632, %v1636
        %v1641 = vand.u32 2147483647, %v1560
        %vm1642 = vcmp.eq.f32.partialorder %v1641, 8.507059e+37
        %v1643 = vand.u32 %v1560, 2147483648
        %v1644 = vor.u32 1.1754944e-38, %v1643
        %v1645 = vsel %vm1642, %v1644, %v1640
        %v1646 = vmul.f32 1.0, %v1645
        %v1647 = vrcp.pop %v1561
        %v1648 = vmul.f32 %v1561, %v1647
        %v1649 = vsub.f32 1.0, %v1648
        %v1650 = vmul.f32 %v1647, %v1649
        %v1651 = vadd.f32 %v1647, %v1650
        %vm1652 = vweird.f32 %v1561
        %vm1653 = vweird.f32 %v1647
        %vm1654 = vmor %vm1652, %vm1653
        %v1655 = vsel %vm1654, %v1647, %v1651
        %v1656 = vand.u32 2147483647, %v1561
        %vm1657 = vcmp.eq.f32.partialorder %v1656, 8.507059e+37
        %v1658 = vand.u32 %v1561, 2147483648
        %v1659 = vor.u32 1.1754944e-38, %v1658
        %v1660 = vsel %vm1657, %v1659, %v1655
        %v1661 = vmul.f32 1.0, %v1660
        %v1662 = vrcp.pop %v1562
        %v1663 = vmul.f32 %v1562, %v1662
        %v1664 = vsub.f32 1.0, %v1663
        %v1665 = vmul.f32 %v1662, %v1664
        %v1666 = vadd.f32 %v1662, %v1665
        %vm1667 = vweird.f32 %v1562
        %vm1668 = vweird.f32 %v1662
        %vm1669 = vmor %vm1667, %vm1668
        %v1670 = vsel %vm1669, %v1662, %v1666
        %v1671 = vand.u32 2147483647, %v1562
        %vm1672 = vcmp.eq.f32.partialorder %v1671, 8.507059e+37
        %v1673 = vand.u32 %v1562, 2147483648
        %v1674 = vor.u32 1.1754944e-38, %v1673
        %v1675 = vsel %vm1672, %v1674, %v1670
        %v1676 = vmul.f32 1.0, %v1675
        %v1677 = vrcp.pop %v1563
        %v1678 = vmul.f32 %v1563, %v1677
        %v1679 = vsub.f32 1.0, %v1678
        %v1680 = vmul.f32 %v1677, %v1679
        %v1681 = vadd.f32 %v1677, %v1680
        %vm1682 = vweird.f32 %v1563
        %vm1683 = vweird.f32 %v1677
        %vm1684 = vmor %vm1682, %vm1683
        %v1685 = vsel %vm1684, %v1677, %v1681
        %v1686 = vand.u32 2147483647, %v1563
        %vm1687 = vcmp.eq.f32.partialorder %v1686, 8.507059e+37
        %v1688 = vand.u32 %v1563, 2147483648
        %v1689 = vor.u32 1.1754944e-38, %v1688
        %v1690 = vsel %vm1687, %v1689, %v1685
        %v1691 = vmul.f32 1.0, %v1690
        %v1692 = vrcp.pop %v1564
        %v1693 = vmul.f32 %v1564, %v1692
        %v1694 = vsub.f32 1.0, %v1693
        %v1695 = vmul.f32 %v1692, %v1694
        %v1696 = vadd.f32 %v1692, %v1695
        %vm1697 = vweird.f32 %v1564
        %vm1698 = vweird.f32 %v1692
        %vm1699 = vmor %vm1697, %vm1698
        %v1700 = vsel %vm1699, %v1692, %v1696
        %v1701 = vand.u32 2147483647, %v1564
        %vm1702 = vcmp.eq.f32.partialorder %v1701, 8.507059e+37
        %v1703 = vand.u32 %v1564, 2147483648
        %v1704 = vor.u32 1.1754944e-38, %v1703
        %v1705 = vsel %vm1702, %v1704, %v1700
        %v1706 = vmul.f32 1.0, %v1705
        %v1707 = vrcp.pop %v1565
        %v1708 = vmul.f32 %v1565, %v1707
        %v1709 = vsub.f32 1.0, %v1708
        %v1710 = vmul.f32 %v1707, %v1709
        %v1711 = vadd.f32 %v1707, %v1710
        %vm1712 = vweird.f32 %v1565
        %vm1713 = vweird.f32 %v1707
        %vm1714 = vmor %vm1712, %vm1713
        %v1715 = vsel %vm1714, %v1707, %v1711
        %v1716 = vand.u32 2147483647, %v1565
        %vm1717 = vcmp.eq.f32.partialorder %v1716, 8.507059e+37
        %v1718 = vand.u32 %v1565, 2147483648
        %v1719 = vor.u32 1.1754944e-38, %v1718
        %v1720 = vsel %vm1717, %v1719, %v1715
        %v1721 = vmul.f32 1.0, %v1720
        %v1722 = vrcp.pop %v1566
        %v1723 = vmul.f32 %v1566, %v1722
        %v1724 = vsub.f32 1.0, %v1723
        %v1725 = vmul.f32 %v1722, %v1724
        %v1726 = vadd.f32 %v1722, %v1725
        %vm1727 = vweird.f32 %v1566
        %vm1728 = vweird.f32 %v1722
        %vm1729 = vmor %vm1727, %vm1728
        %v1730 = vsel %vm1729, %v1722, %v1726
        %v1731 = vand.u32 2147483647, %v1566
        %vm1732 = vcmp.eq.f32.partialorder %v1731, 8.507059e+37
        %v1733 = vand.u32 %v1566, 2147483648
        %v1734 = vor.u32 1.1754944e-38, %v1733
        %v1735 = vsel %vm1732, %v1734, %v1730
        %v1736 = vmul.f32 1.0, %v1735
        %v1737 = vrcp.pop %v1567
        %v1738 = vmul.f32 %v1567, %v1737
        %v1739 = vsub.f32 1.0, %v1738
        %v1740 = vmul.f32 %v1737, %v1739
        %v1741 = vadd.f32 %v1737, %v1740
        %vm1742 = vweird.f32 %v1567
        %vm1743 = vweird.f32 %v1737
        %vm1744 = vmor %vm1742, %vm1743
        %v1745 = vsel %vm1744, %v1737, %v1741
        %v1746 = vand.u32 2147483647, %v1567
        %vm1747 = vcmp.eq.f32.partialorder %v1746, 8.507059e+37
        %v1748 = vand.u32 %v1567, 2147483648
        %v1749 = vor.u32 1.1754944e-38, %v1748
        %v1750 = vsel %vm1747, %v1749, %v1745
        %v1751 = vmul.f32 1.0, %v1750
        %v1752 = vrcp.pop %v1568
        %v1753 = vmul.f32 %v1568, %v1752
        %v1754 = vsub.f32 1.0, %v1753
        %v1755 = vmul.f32 %v1752, %v1754
        %v1756 = vadd.f32 %v1752, %v1755
        %vm1757 = vweird.f32 %v1568
        %vm1758 = vweird.f32 %v1752
        %vm1759 = vmor %vm1757, %vm1758
        %v1760 = vsel %vm1759, %v1752, %v1756
        %v1761 = vand.u32 2147483647, %v1568
        %vm1762 = vcmp.eq.f32.partialorder %v1761, 8.507059e+37
        %v1763 = vand.u32 %v1568, 2147483648
        %v1764 = vor.u32 1.1754944e-38, %v1763
        %v1765 = vsel %vm1762, %v1764, %v1760
        %v1766 = vmul.f32 1.0, %v1765
        %v1767 = vrcp.pop %v1569
        %v1768 = vmul.f32 %v1569, %v1767
        %v1769 = vsub.f32 1.0, %v1768
        %v1770 = vmul.f32 %v1767, %v1769
        %v1771 = vadd.f32 %v1767, %v1770
        %vm1772 = vweird.f32 %v1569
        %vm1773 = vweird.f32 %v1767
        %vm1774 = vmor %vm1772, %vm1773
        %v1775 = vsel %vm1774, %v1767, %v1771
        %v1776 = vand.u32 2147483647, %v1569
        %vm1777 = vcmp.eq.f32.partialorder %v1776, 8.507059e+37
        %v1778 = vand.u32 %v1569, 2147483648
        %v1779 = vor.u32 1.1754944e-38, %v1778
        %v1780 = vsel %vm1777, %v1779, %v1775
        %v1781 = vmul.f32 1.0, %v1780
        %v1782 = vrcp.pop %v1570
        %v1783 = vmul.f32 %v1570, %v1782
        %v1784 = vsub.f32 1.0, %v1783
        %v1785 = vmul.f32 %v1782, %v1784
        %v1786 = vadd.f32 %v1782, %v1785
        %vm1787 = vweird.f32 %v1570
        %vm1788 = vweird.f32 %v1782
        %vm1789 = vmor %vm1787, %vm1788
        %v1790 = vsel %vm1789, %v1782, %v1786
        %v1791 = vand.u32 2147483647, %v1570
        %vm1792 = vcmp.eq.f32.partialorder %v1791, 8.507059e+37
        %v1793 = vand.u32 %v1570, 2147483648
        %v1794 = vor.u32 1.1754944e-38, %v1793
        %v1795 = vsel %vm1792, %v1794, %v1790
        %v1796 = vmul.f32 1.0, %v1795
        %v1797 = vrcp.pop %v1571
        %v1798 = vmul.f32 %v1571, %v1797
        %v1799 = vsub.f32 1.0, %v1798
        %v1800 = vmul.f32 %v1797, %v1799
        %v1801 = vadd.f32 %v1797, %v1800
        %vm1802 = vweird.f32 %v1571
        %vm1803 = vweird.f32 %v1797
        %vm1804 = vmor %vm1802, %vm1803
        %v1805 = vsel %vm1804, %v1797, %v1801
        %v1806 = vand.u32 2147483647, %v1571
        %vm1807 = vcmp.eq.f32.partialorder %v1806, 8.507059e+37
        %v1808 = vand.u32 %v1571, 2147483648
        %v1809 = vor.u32 1.1754944e-38, %v1808
        %v1810 = vsel %vm1807, %v1809, %v1805
        %v1811 = vmul.f32 1.0, %v1810
        %v1812 = vrcp.pop %v1572
        %v1813 = vmul.f32 %v1572, %v1812
        %v1814 = vsub.f32 1.0, %v1813
        %v1815 = vmul.f32 %v1812, %v1814
        %v1816 = vadd.f32 %v1812, %v1815
        %vm1817 = vweird.f32 %v1572
        %vm1818 = vweird.f32 %v1812
        %vm1819 = vmor %vm1817, %vm1818
        %v1820 = vsel %vm1819, %v1812, %v1816
        %v1821 = vand.u32 2147483647, %v1572
        %vm1822 = vcmp.eq.f32.partialorder %v1821, 8.507059e+37
        %v1823 = vand.u32 %v1572, 2147483648
        %v1824 = vor.u32 1.1754944e-38, %v1823
        %v1825 = vsel %vm1822, %v1824, %v1820
        %v1826 = vmul.f32 1.0, %v1825
        %v1827 = vrcp.pop %v1573
        %v1828 = vmul.f32 %v1573, %v1827
        %v1829 = vsub.f32 1.0, %v1828
        %v1830 = vmul.f32 %v1827, %v1829
        %v1831 = vadd.f32 %v1827, %v1830
        %vm1832 = vweird.f32 %v1573
        %vm1833 = vweird.f32 %v1827
        %vm1834 = vmor %vm1832, %vm1833
        %v1835 = vsel %vm1834, %v1827, %v1831
        %v1836 = vand.u32 2147483647, %v1573
        %vm1837 = vcmp.eq.f32.partialorder %v1836, 8.507059e+37
        %v1838 = vand.u32 %v1573, 2147483648
        %v1839 = vor.u32 1.1754944e-38, %v1838
        %v1840 = vsel %vm1837, %v1839, %v1835
        %v1841 = vmul.f32 1.0, %v1840
        %v1842 = vrcp.pop %v1574
        %v1843 = vmul.f32 %v1574, %v1842
        %v1844 = vsub.f32 1.0, %v1843
        %v1845 = vmul.f32 %v1842, %v1844
        %v1846 = vadd.f32 %v1842, %v1845
        %vm1847 = vweird.f32 %v1574
        %vm1848 = vweird.f32 %v1842
        %vm1849 = vmor %vm1847, %vm1848
        %v1850 = vsel %vm1849, %v1842, %v1846
        %v1851 = vand.u32 2147483647, %v1574
        %vm1852 = vcmp.eq.f32.partialorder %v1851, 8.507059e+37
        %v1853 = vand.u32 %v1574, 2147483648
        %v1854 = vor.u32 1.1754944e-38, %v1853
        %v1855 = vsel %vm1852, %v1854, %v1850
        %v1856 = vmul.f32 1.0, %v1855
        %v1857 = vrcp.pop %v1575
        %v1858 = vmul.f32 %v1575, %v1857
        %v1859 = vsub.f32 1.0, %v1858
        %v1860 = vmul.f32 %v1857, %v1859
        %v1861 = vadd.f32 %v1857, %v1860
        %vm1862 = vweird.f32 %v1575
        %vm1863 = vweird.f32 %v1857
        %vm1864 = vmor %vm1862, %vm1863
        %v1865 = vsel %vm1864, %v1857, %v1861
        %v1866 = vand.u32 2147483647, %v1575
        %vm1867 = vcmp.eq.f32.partialorder %v1866, 8.507059e+37
        %v1868 = vand.u32 %v1575, 2147483648
        %v1869 = vor.u32 1.1754944e-38, %v1868
        %v1870 = vsel %vm1867, %v1869, %v1865
        %v1871 = vmul.f32 1.0, %v1870
        %v1872 = vrcp.pop %v1576
        %v1873 = vmul.f32 %v1576, %v1872
        %v1874 = vsub.f32 1.0, %v1873
        %v1875 = vmul.f32 %v1872, %v1874
        %v1876 = vadd.f32 %v1872, %v1875
        %vm1877 = vweird.f32 %v1576
        %vm1878 = vweird.f32 %v1872
        %vm1879 = vmor %vm1877, %vm1878
        %v1880 = vsel %vm1879, %v1872, %v1876
        %v1881 = vand.u32 2147483647, %v1576
        %vm1882 = vcmp.eq.f32.partialorder %v1881, 8.507059e+37
        %v1883 = vand.u32 %v1576, 2147483648
        %v1884 = vor.u32 1.1754944e-38, %v1883
        %v1885 = vsel %vm1882, %v1884, %v1880
        %v1886 = vmul.f32 1.0, %v1885
        %v1887 = vrcp.pop %v1577
        %v1888 = vmul.f32 %v1577, %v1887
        %v1889 = vsub.f32 1.0, %v1888
        %v1890 = vmul.f32 %v1887, %v1889
        %v1891 = vadd.f32 %v1887, %v1890
        %vm1892 = vweird.f32 %v1577
        %vm1893 = vweird.f32 %v1887
        %vm1894 = vmor %vm1892, %vm1893
        %v1895 = vsel %vm1894, %v1887, %v1891
        %v1896 = vand.u32 2147483647, %v1577
        %vm1897 = vcmp.eq.f32.partialorder %v1896, 8.507059e+37
        %v1898 = vand.u32 %v1577, 2147483648
        %v1899 = vor.u32 1.1754944e-38, %v1898
        %v1900 = vsel %vm1897, %v1899, %v1895
        %v1901 = vmul.f32 1.0, %v1900
        %v1902 = vrcp.pop %v1578
        %v1903 = vmul.f32 %v1578, %v1902
        %v1904 = vsub.f32 1.0, %v1903
        %v1905 = vmul.f32 %v1902, %v1904
        %v1906 = vadd.f32 %v1902, %v1905
        %vm1907 = vweird.f32 %v1578
        %vm1908 = vweird.f32 %v1902
        %vm1909 = vmor %vm1907, %vm1908
        %v1910 = vsel %vm1909, %v1902, %v1906
        %v1911 = vand.u32 2147483647, %v1578
        %vm1912 = vcmp.eq.f32.partialorder %v1911, 8.507059e+37
        %v1913 = vand.u32 %v1578, 2147483648
        %v1914 = vor.u32 1.1754944e-38, %v1913
        %v1915 = vsel %vm1912, %v1914, %v1910
        %v1916 = vmul.f32 1.0, %v1915
        %v1917 = vrcp.pop %v1579
        %v1918 = vmul.f32 %v1579, %v1917
        %v1919 = vsub.f32 1.0, %v1918
        %v1920 = vmul.f32 %v1917, %v1919
        %v1921 = vadd.f32 %v1917, %v1920
        %vm1922 = vweird.f32 %v1579
        %vm1923 = vweird.f32 %v1917
        %vm1924 = vmor %vm1922, %vm1923
        %v1925 = vsel %vm1924, %v1917, %v1921
        %v1926 = vand.u32 2147483647, %v1579
        %vm1927 = vcmp.eq.f32.partialorder %v1926, 8.507059e+37
        %v1928 = vand.u32 %v1579, 2147483648
        %v1929 = vor.u32 1.1754944e-38, %v1928
        %v1930 = vsel %vm1927, %v1929, %v1925
        %v1931 = vmul.f32 1.0, %v1930
        %v1932 = vrcp.pop %v1580
        %v1933 = vmul.f32 %v1580, %v1932
        %v1934 = vsub.f32 1.0, %v1933
        %v1935 = vmul.f32 %v1932, %v1934
        %v1936 = vadd.f32 %v1932, %v1935
        %vm1937 = vweird.f32 %v1580
        %vm1938 = vweird.f32 %v1932
        %vm1939 = vmor %vm1937, %vm1938
        %v1940 = vsel %vm1939, %v1932, %v1936
        %v1941 = vand.u32 2147483647, %v1580
        %vm1942 = vcmp.eq.f32.partialorder %v1941, 8.507059e+37
        %v1943 = vand.u32 %v1580, 2147483648
        %v1944 = vor.u32 1.1754944e-38, %v1943
        %v1945 = vsel %vm1942, %v1944, %v1940
        %v1946 = vmul.f32 1.0, %v1945
        %v1947 = vrcp.pop %v1581
        %v1948 = vmul.f32 %v1581, %v1947
        %v1949 = vsub.f32 1.0, %v1948
        %v1950 = vmul.f32 %v1947, %v1949
        %v1951 = vadd.f32 %v1947, %v1950
        %vm1952 = vweird.f32 %v1581
        %vm1953 = vweird.f32 %v1947
        %vm1954 = vmor %vm1952, %vm1953
        %v1955 = vsel %vm1954, %v1947, %v1951
        %v1956 = vand.u32 2147483647, %v1581
        %vm1957 = vcmp.eq.f32.partialorder %v1956, 8.507059e+37
        %v1958 = vand.u32 %v1581, 2147483648
        %v1959 = vor.u32 1.1754944e-38, %v1958
        %v1960 = vsel %vm1957, %v1959, %v1955
        %v1961 = vmul.f32 1.0, %v1960
        %v1962 = vrcp.pop %v1582
        %v1963 = vmul.f32 %v1582, %v1962
        %v1964 = vsub.f32 1.0, %v1963
        %v1965 = vmul.f32 %v1962, %v1964
        %v1966 = vadd.f32 %v1962, %v1965
        %vm1967 = vweird.f32 %v1582
        %vm1968 = vweird.f32 %v1962
        %vm1969 = vmor %vm1967, %vm1968
        %v1970 = vsel %vm1969, %v1962, %v1966
        %v1971 = vand.u32 2147483647, %v1582
        %vm1972 = vcmp.eq.f32.partialorder %v1971, 8.507059e+37
        %v1973 = vand.u32 %v1582, 2147483648
        %v1974 = vor.u32 1.1754944e-38, %v1973
        %v1975 = vsel %vm1972, %v1974, %v1970
        %v1976 = vmul.f32 1.0, %v1975
        %v1977 = vrcp.pop %v1583
        %v1978 = vmul.f32 %v1583, %v1977
        %v1979 = vsub.f32 1.0, %v1978
        %v1980 = vmul.f32 %v1977, %v1979
        %v1981 = vadd.f32 %v1977, %v1980
        %vm1982 = vweird.f32 %v1583
        %vm1983 = vweird.f32 %v1977
        %vm1984 = vmor %vm1982, %vm1983
        %v1985 = vsel %vm1984, %v1977, %v1981
        %v1986 = vand.u32 2147483647, %v1583
        %vm1987 = vcmp.eq.f32.partialorder %v1986, 8.507059e+37
        %v1988 = vand.u32 %v1583, 2147483648
        %v1989 = vor.u32 1.1754944e-38, %v1988
        %v1990 = vsel %vm1987, %v1989, %v1985
        %v1991 = vmul.f32 1.0, %v1990
        %v1992 = vrcp.pop %v1584
        %v1993 = vmul.f32 %v1584, %v1992
        %v1994 = vsub.f32 1.0, %v1993
        %v1995 = vmul.f32 %v1992, %v1994
        %v1996 = vadd.f32 %v1992, %v1995
        %vm1997 = vweird.f32 %v1584
        %vm1998 = vweird.f32 %v1992
        %vm1999 = vmor %vm1997, %vm1998
        %v2000 = vsel %vm1999, %v1992, %v1996
        %v2001 = vand.u32 2147483647, %v1584
        %vm2002 = vcmp.eq.f32.partialorder %v2001, 8.507059e+37
        %v2003 = vand.u32 %v1584, 2147483648
        %v2004 = vor.u32 1.1754944e-38, %v2003
        %v2005 = vsel %vm2002, %v2004, %v2000
        %v2006 = vmul.f32 1.0, %v2005
        %v2007 = vrcp.pop %v1585
        %v2008 = vmul.f32 %v1585, %v2007
        %v2009 = vsub.f32 1.0, %v2008
        %v2010 = vmul.f32 %v2007, %v2009
        %v2011 = vadd.f32 %v2007, %v2010
        %vm2012 = vweird.f32 %v1585
        %vm2013 = vweird.f32 %v2007
        %vm2014 = vmor %vm2012, %vm2013
        %v2015 = vsel %vm2014, %v2007, %v2011
        %v2016 = vand.u32 2147483647, %v1585
        %vm2017 = vcmp.eq.f32.partialorder %v2016, 8.507059e+37
        %v2018 = vand.u32 %v1585, 2147483648
        %v2019 = vor.u32 1.1754944e-38, %v2018
        %v2020 = vsel %vm2017, %v2019, %v2015
        %v2021 = vmul.f32 1.0, %v2020
        %v2022 = vrcp.pop %v1586
        %v2023 = vmul.f32 %v1586, %v2022
        %v2024 = vsub.f32 1.0, %v2023
        %v2025 = vmul.f32 %v2022, %v2024
        %v2026 = vadd.f32 %v2022, %v2025
        %vm2027 = vweird.f32 %v1586
        %vm2028 = vweird.f32 %v2022
        %vm2029 = vmor %vm2027, %vm2028
        %v2030 = vsel %vm2029, %v2022, %v2026
        %v2031 = vand.u32 2147483647, %v1586
        %vm2032 = vcmp.eq.f32.partialorder %v2031, 8.507059e+37
        %v2033 = vand.u32 %v1586, 2147483648
        %v2034 = vor.u32 1.1754944e-38, %v2033
        %v2035 = vsel %vm2032, %v2034, %v2030
        %v2036 = vmul.f32 1.0, %v2035
        %v2037 = vmul.f32 %v778, %v1601
        %v2038 = vmul.f32 %v781, %v1616
        %v2039 = vmul.f32 %v784, %v1631
        %v2040 = vmul.f32 %v787, %v1646
        %v2041 = vmul.f32 %v790, %v1661
        %v2042 = vmul.f32 %v793, %v1676
        %v2043 = vmul.f32 %v796, %v1691
        %v2044 = vmul.f32 %v799, %v1706
        %v2045 = vmul.f32 %v802, %v1721
        %v2046 = vmul.f32 %v805, %v1736
        %v2047 = vmul.f32 %v808, %v1751
        %v2048 = vmul.f32 %v811, %v1766
        %v2049 = vmul.f32 %v814, %v1781
        %v2050 = vmul.f32 %v817, %v1796
        %v2051 = vmul.f32 %v820, %v1811
        %v2052 = vmul.f32 %v823, %v1826
        %v2053 = vmul.f32 %v826, %v1841
        %v2054 = vmul.f32 %v829, %v1856
        %v2055 = vmul.f32 %v832, %v1871
        %v2056 = vmul.f32 %v835, %v1886
        %v2057 = vmul.f32 %v838, %v1901
        %v2058 = vmul.f32 %v841, %v1916
        %v2059 = vmul.f32 %v844, %v1931
        %v2060 = vmul.f32 %v847, %v1946
        %v2061 = vmul.f32 %v850, %v1961
        %v2062 = vmul.f32 %v853, %v1976
        %v2063 = vmul.f32 %v856, %v1991
        %v2064 = vmul.f32 %v859, %v2006
        %v2065 = vmul.f32 %v862, %v2021
        %v2066 = vmul.f32 %v865, %v2036
        %v2067 = vld [vmem:[%s5] sm:$0xff]
        %v2068 = vld [vmem:[%s5 + $0x8] sm:$0x1]
        %v2069 = vld [vmem:[%s6] sm:$0xff]
        %v2070 = vld [vmem:[%s6 + $0x8] sm:$0x1]
        %v2071 = vperm.slane %v2067, 0
        %v2072 = vmul.f32 %v1437, %v2071
        %v2073 = vmul.f32 %v1438, %v2071
        %v2074 = vmul.f32 %v1440, %v2071
        %v2075 = vmul.f32 %v1441, %v2071
        %v2076 = vmul.f32 %v1443, %v2071
        %v2077 = vmul.f32 %v1444, %v2071
        %v2078 = vmul.f32 %v1446, %v2071
        %v2079 = vmul.f32 %v1447, %v2071
        %v2080 = vmul.f32 %v1449, %v2071
        %v2081 = vmul.f32 %v1450, %v2071
        %v2082 = vmul.f32 %v1452, %v2071
        %v2083 = vmul.f32 %v1453, %v2071
        %v2084 = vmul.f32 %v1455, %v2071
        %v2085 = vmul.f32 %v1456, %v2071
        %v2086 = vmul.f32 %v1458, %v2071
        %v2087 = vmul.f32 %v1459, %v2071
        %v2088 = vadd.f32 %v2072, 0.0
        %v2089 = vadd.f32 %v2073, 0.0
        %v2090 = vadd.f32 %v2074, 0.0
        %v2091 = vadd.f32 %v2075, 0.0
        %v2092 = vadd.f32 %v2076, 0.0
        %v2093 = vadd.f32 %v2077, 0.0
        %v2094 = vadd.f32 %v2078, 0.0
        %v2095 = vadd.f32 %v2079, 0.0
        %v2096 = vadd.f32 %v2080, 0.0
        %v2097 = vadd.f32 %v2081, 0.0
        %v2098 = vadd.f32 %v2082, 0.0
        %v2099 = vadd.f32 %v2083, 0.0
        %v2100 = vadd.f32 %v2084, 0.0
        %v2101 = vadd.f32 %v2085, 0.0
        %v2102 = vadd.f32 %v2086, 0.0
        %v2103 = vadd.f32 %v2087, 0.0
        %v2104 = vperm.slane %v2069, 0
        %v2105 = vmul.f32 %v2037, %v2104
        %v2106 = vmul.f32 %v2038, %v2104
        %v2107 = vmul.f32 %v2040, %v2104
        %v2108 = vmul.f32 %v2041, %v2104
        %v2109 = vmul.f32 %v2043, %v2104
        %v2110 = vmul.f32 %v2044, %v2104
        %v2111 = vmul.f32 %v2046, %v2104
        %v2112 = vmul.f32 %v2047, %v2104
        %v2113 = vmul.f32 %v2049, %v2104
        %v2114 = vmul.f32 %v2050, %v2104
        %v2115 = vmul.f32 %v2052, %v2104
        %v2116 = vmul.f32 %v2053, %v2104
        %v2117 = vmul.f32 %v2055, %v2104
        %v2118 = vmul.f32 %v2056, %v2104
        %v2119 = vmul.f32 %v2058, %v2104
        %v2120 = vmul.f32 %v2059, %v2104
        %v2121 = vadd.f32 %v2105, 0.0
        %v2122 = vadd.f32 %v2106, 0.0
        %v2123 = vadd.f32 %v2107, 0.0
        %v2124 = vadd.f32 %v2108, 0.0
        %v2125 = vadd.f32 %v2109, 0.0
        %v2126 = vadd.f32 %v2110, 0.0
        %v2127 = vadd.f32 %v2111, 0.0
        %v2128 = vadd.f32 %v2112, 0.0
        %v2129 = vadd.f32 %v2113, 0.0
        %v2130 = vadd.f32 %v2114, 0.0
        %v2131 = vadd.f32 %v2115, 0.0
        %v2132 = vadd.f32 %v2116, 0.0
        %v2133 = vadd.f32 %v2117, 0.0
        %v2134 = vadd.f32 %v2118, 0.0
        %v2135 = vadd.f32 %v2119, 0.0
        %v2136 = vadd.f32 %v2120, 0.0
        %v2137 = vperm.slane %v2067, 3
        %v2138 = vmul.f32 %v1440, %v2137
        %v2139 = vmul.f32 %v1441, %v2137
        %v2140 = vmul.f32 %v1443, %v2137
        %v2141 = vmul.f32 %v1444, %v2137
        %v2142 = vmul.f32 %v1446, %v2137
        %v2143 = vmul.f32 %v1447, %v2137
        %v2144 = vmul.f32 %v1449, %v2137
        %v2145 = vmul.f32 %v1450, %v2137
        %v2146 = vmul.f32 %v1452, %v2137
        %v2147 = vmul.f32 %v1453, %v2137
        %v2148 = vmul.f32 %v1455, %v2137
        %v2149 = vmul.f32 %v1456, %v2137
        %v2150 = vmul.f32 %v1458, %v2137
        %v2151 = vmul.f32 %v1459, %v2137
        %v2152 = vmul.f32 %v1461, %v2137
        %v2153 = vmul.f32 %v1462, %v2137
        %v2154 = vadd.f32 %v2088, %v2138
        %v2155 = vadd.f32 %v2089, %v2139
        %v2156 = vadd.f32 %v2090, %v2140
        %v2157 = vadd.f32 %v2091, %v2141
        %v2158 = vadd.f32 %v2092, %v2142
        %v2159 = vadd.f32 %v2093, %v2143
        %v2160 = vadd.f32 %v2094, %v2144
        %v2161 = vadd.f32 %v2095, %v2145
        %v2162 = vadd.f32 %v2096, %v2146
        %v2163 = vadd.f32 %v2097, %v2147
        %v2164 = vadd.f32 %v2098, %v2148
        %v2165 = vadd.f32 %v2099, %v2149
        %v2166 = vadd.f32 %v2100, %v2150
        %v2167 = vadd.f32 %v2101, %v2151
        %v2168 = vadd.f32 %v2102, %v2152
        %v2169 = vadd.f32 %v2103, %v2153
        %v2170 = vperm.slane %v2069, 3
        %v2171 = vmul.f32 %v2040, %v2170
        %v2172 = vmul.f32 %v2041, %v2170
        %v2173 = vmul.f32 %v2043, %v2170
        %v2174 = vmul.f32 %v2044, %v2170
        %v2175 = vmul.f32 %v2046, %v2170
        %v2176 = vmul.f32 %v2047, %v2170
        %v2177 = vmul.f32 %v2049, %v2170
        %v2178 = vmul.f32 %v2050, %v2170
        %v2179 = vmul.f32 %v2052, %v2170
        %v2180 = vmul.f32 %v2053, %v2170
        %v2181 = vmul.f32 %v2055, %v2170
        %v2182 = vmul.f32 %v2056, %v2170
        %v2183 = vmul.f32 %v2058, %v2170
        %v2184 = vmul.f32 %v2059, %v2170
        %v2185 = vmul.f32 %v2061, %v2170
        %v2186 = vmul.f32 %v2062, %v2170
        %v2187 = vadd.f32 %v2121, %v2171
        %v2188 = vadd.f32 %v2122, %v2172
        %v2189 = vadd.f32 %v2123, %v2173
        %v2190 = vadd.f32 %v2124, %v2174
        %v2191 = vadd.f32 %v2125, %v2175
        %v2192 = vadd.f32 %v2126, %v2176
        %v2193 = vadd.f32 %v2127, %v2177
        %v2194 = vadd.f32 %v2128, %v2178
        %v2195 = vadd.f32 %v2129, %v2179
        %v2196 = vadd.f32 %v2130, %v2180
        %v2197 = vadd.f32 %v2131, %v2181
        %v2198 = vadd.f32 %v2132, %v2182
        %v2199 = vadd.f32 %v2133, %v2183
        %v2200 = vadd.f32 %v2134, %v2184
        %v2201 = vadd.f32 %v2135, %v2185
        %v2202 = vadd.f32 %v2136, %v2186
        %v2203 = vperm.slane %v2067, 6
        %v2204 = vmul.f32 %v1443, %v2203
        %v2205 = vmul.f32 %v1444, %v2203
        %v2206 = vmul.f32 %v1446, %v2203
        %v2207 = vmul.f32 %v1447, %v2203
        %v2208 = vmul.f32 %v1449, %v2203
        %v2209 = vmul.f32 %v1450, %v2203
        %v2210 = vmul.f32 %v1452, %v2203
        %v2211 = vmul.f32 %v1453, %v2203
        %v2212 = vmul.f32 %v1455, %v2203
        %v2213 = vmul.f32 %v1456, %v2203
        %v2214 = vmul.f32 %v1458, %v2203
        %v2215 = vmul.f32 %v1459, %v2203
        %v2216 = vmul.f32 %v1461, %v2203
        %v2217 = vmul.f32 %v1462, %v2203
        %v2218 = vmul.f32 %v1464, %v2203
        %v2219 = vmul.f32 %v1465, %v2203
        %v2220 = vadd.f32 %v2154, %v2204
        %v2221 = vadd.f32 %v2155, %v2205
        %v2222 = vadd.f32 %v2156, %v2206
        %v2223 = vadd.f32 %v2157, %v2207
        %v2224 = vadd.f32 %v2158, %v2208
        %v2225 = vadd.f32 %v2159, %v2209
        %v2226 = vadd.f32 %v2160, %v2210
        %v2227 = vadd.f32 %v2161, %v2211
        %v2228 = vadd.f32 %v2162, %v2212
        %v2229 = vadd.f32 %v2163, %v2213
        %v2230 = vadd.f32 %v2164, %v2214
        %v2231 = vadd.f32 %v2165, %v2215
        %v2232 = vadd.f32 %v2166, %v2216
        %v2233 = vadd.f32 %v2167, %v2217
        %v2234 = vadd.f32 %v2168, %v2218
        %v2235 = vadd.f32 %v2169, %v2219
        %v2236 = vperm.slane %v2069, 6
        %v2237 = vmul.f32 %v2043, %v2236
        %v2238 = vmul.f32 %v2044, %v2236
        %v2239 = vmul.f32 %v2046, %v2236
        %v2240 = vmul.f32 %v2047, %v2236
        %v2241 = vmul.f32 %v2049, %v2236
        %v2242 = vmul.f32 %v2050, %v2236
        %v2243 = vmul.f32 %v2052, %v2236
        %v2244 = vmul.f32 %v2053, %v2236
        %v2245 = vmul.f32 %v2055, %v2236
        %v2246 = vmul.f32 %v2056, %v2236
        %v2247 = vmul.f32 %v2058, %v2236
        %v2248 = vmul.f32 %v2059, %v2236
        %v2249 = vmul.f32 %v2061, %v2236
        %v2250 = vmul.f32 %v2062, %v2236
        %v2251 = vmul.f32 %v2064, %v2236
        %v2252 = vmul.f32 %v2065, %v2236
        %v2253 = vadd.f32 %v2187, %v2237
        %v2254 = vadd.f32 %v2188, %v2238
        %v2255 = vadd.f32 %v2189, %v2239
        %v2256 = vadd.f32 %v2190, %v2240
        %v2257 = vadd.f32 %v2191, %v2241
        %v2258 = vadd.f32 %v2192, %v2242
        %v2259 = vadd.f32 %v2193, %v2243
        %v2260 = vadd.f32 %v2194, %v2244
        %v2261 = vadd.f32 %v2195, %v2245
        %v2262 = vadd.f32 %v2196, %v2246
        %v2263 = vadd.f32 %v2197, %v2247
        %v2264 = vadd.f32 %v2198, %v2248
        %v2265 = vadd.f32 %v2199, %v2249
        %v2266 = vadd.f32 %v2200, %v2250
        %v2267 = vadd.f32 %v2201, %v2251
        %v2268 = vadd.f32 %v2202, %v2252
        %v2269 = vperm.slane %v2067, 1
        %v2270 = vmul.f32 %v1437, %v2269
        %v2271 = vmul.f32 %v1438, %v2269
        %v2272 = vmul.f32 %v1439, %v2269
        %v2273 = vmul.f32 %v1440, %v2269
        %v2274 = vmul.f32 %v1441, %v2269
        %v2275 = vmul.f32 %v1442, %v2269
        %v2276 = vmul.f32 %v1443, %v2269
        %v2277 = vmul.f32 %v1444, %v2269
        %v2278 = vmul.f32 %v1445, %v2269
        %v2279 = vmul.f32 %v1446, %v2269
        %v2280 = vmul.f32 %v1447, %v2269
        %v2281 = vmul.f32 %v1448, %v2269
        %v2282 = vmul.f32 %v1449, %v2269
        %v2283 = vmul.f32 %v1450, %v2269
        %v2284 = vmul.f32 %v1451, %v2269
        %v2285 = vmul.f32 %v1452, %v2269
        %v2286 = vmul.f32 %v1453, %v2269
        %v2287 = vmul.f32 %v1454, %v2269
        %v2288 = vmul.f32 %v1455, %v2269
        %v2289 = vmul.f32 %v1456, %v2269
        %v2290 = vmul.f32 %v1457, %v2269
        %v2291 = vmul.f32 %v1458, %v2269
        %v2292 = vmul.f32 %v1459, %v2269
        %v2293 = vmul.f32 %v1460, %v2269
        %vm2318 = vcmask 1046528
        %v2319 = vrot.slane %v2270, 1
        %v2320 = vrot.slane %v2271, 1
        %v2321 = vsel %vm2318, %v2319, %v2320
        %v2322 = vrot.slane %v2272, 1
        %v2323 = vsel %vm2318, %v2320, %v2322
        %v2324 = vrot.slane %v2273, 1
        %v2325 = vrot.slane %v2274, 1
        %v2326 = vsel %vm2318, %v2324, %v2325
        %v2327 = vrot.slane %v2275, 1
        %v2328 = vsel %vm2318, %v2325, %v2327
        %v2329 = vrot.slane %v2276, 1
        %v2330 = vrot.slane %v2277, 1
        %v2331 = vsel %vm2318, %v2329, %v2330
        %v2332 = vrot.slane %v2278, 1
        %v2333 = vsel %vm2318, %v2330, %v2332
        %v2334 = vrot.slane %v2279, 1
        %v2335 = vrot.slane %v2280, 1
        %v2336 = vsel %vm2318, %v2334, %v2335
        %v2337 = vrot.slane %v2281, 1
        %v2338 = vsel %vm2318, %v2335, %v2337
        %v2339 = vrot.slane %v2282, 1
        %v2340 = vrot.slane %v2283, 1
        %v2341 = vsel %vm2318, %v2339, %v2340
        %v2342 = vrot.slane %v2284, 1
        %v2343 = vsel %vm2318, %v2340, %v2342
        %v2344 = vrot.slane %v2285, 1
        %v2345 = vrot.slane %v2286, 1
        %v2346 = vsel %vm2318, %v2344, %v2345
        %v2347 = vrot.slane %v2287, 1
        %v2348 = vsel %vm2318, %v2345, %v2347
        %v2349 = vrot.slane %v2288, 1
        %v2350 = vrot.slane %v2289, 1
        %v2351 = vsel %vm2318, %v2349, %v2350
        %v2352 = vrot.slane %v2290, 1
        %v2353 = vsel %vm2318, %v2350, %v2352
        %v2354 = vrot.slane %v2291, 1
        %v2355 = vrot.slane %v2292, 1
        %v2356 = vsel %vm2318, %v2354, %v2355
        %v2357 = vrot.slane %v2293, 1
        %v2358 = vsel %vm2318, %v2355, %v2357
        %v2375 = vadd.f32 %v2220, %v2321
        %v2376 = vadd.f32 %v2221, %v2323
        %v2377 = vadd.f32 %v2222, %v2326
        %v2378 = vadd.f32 %v2223, %v2328
        %v2379 = vadd.f32 %v2224, %v2331
        %v2380 = vadd.f32 %v2225, %v2333
        %v2381 = vadd.f32 %v2226, %v2336
        %v2382 = vadd.f32 %v2227, %v2338
        %v2383 = vadd.f32 %v2228, %v2341
        %v2384 = vadd.f32 %v2229, %v2343
        %v2385 = vadd.f32 %v2230, %v2346
        %v2386 = vadd.f32 %v2231, %v2348
        %v2387 = vadd.f32 %v2232, %v2351
        %v2388 = vadd.f32 %v2233, %v2353
        %v2389 = vadd.f32 %v2234, %v2356
        %v2390 = vadd.f32 %v2235, %v2358
        %v2391 = vperm.slane %v2069, 1
        %v2392 = vmul.f32 %v2037, %v2391
        %v2393 = vmul.f32 %v2038, %v2391
        %v2394 = vmul.f32 %v2039, %v2391
        %v2395 = vmul.f32 %v2040, %v2391
        %v2396 = vmul.f32 %v2041, %v2391
        %v2397 = vmul.f32 %v2042, %v2391
        %v2398 = vmul.f32 %v2043, %v2391
        %v2399 = vmul.f32 %v2044, %v2391
        %v2400 = vmul.f32 %v2045, %v2391
        %v2401 = vmul.f32 %v2046, %v2391
        %v2402 = vmul.f32 %v2047, %v2391
        %v2403 = vmul.f32 %v2048, %v2391
        %v2404 = vmul.f32 %v2049, %v2391
        %v2405 = vmul.f32 %v2050, %v2391
        %v2406 = vmul.f32 %v2051, %v2391
        %v2407 = vmul.f32 %v2052, %v2391
        %v2408 = vmul.f32 %v2053, %v2391
        %v2409 = vmul.f32 %v2054, %v2391
        %v2410 = vmul.f32 %v2055, %v2391
        %v2411 = vmul.f32 %v2056, %v2391
        %v2412 = vmul.f32 %v2057, %v2391
        %v2413 = vmul.f32 %v2058, %v2391
        %v2414 = vmul.f32 %v2059, %v2391
        %v2415 = vmul.f32 %v2060, %v2391
        %v2440 = vrot.slane %v2392, 1
        %v2441 = vrot.slane %v2393, 1
        %v2442 = vsel %vm2318, %v2440, %v2441
        %v2443 = vrot.slane %v2394, 1
        %v2444 = vsel %vm2318, %v2441, %v2443
        %v2445 = vrot.slane %v2395, 1
        %v2446 = vrot.slane %v2396, 1
        %v2447 = vsel %vm2318, %v2445, %v2446
        %v2448 = vrot.slane %v2397, 1
        %v2449 = vsel %vm2318, %v2446, %v2448
        %v2450 = vrot.slane %v2398, 1
        %v2451 = vrot.slane %v2399, 1
        %v2452 = vsel %vm2318, %v2450, %v2451
        %v2453 = vrot.slane %v2400, 1
        %v2454 = vsel %vm2318, %v2451, %v2453
        %v2455 = vrot.slane %v2401, 1
        %v2456 = vrot.slane %v2402, 1
        %v2457 = vsel %vm2318, %v2455, %v2456
        %v2458 = vrot.slane %v2403, 1
        %v2459 = vsel %vm2318, %v2456, %v2458
        %v2460 = vrot.slane %v2404, 1
        %v2461 = vrot.slane %v2405, 1
        %v2462 = vsel %vm2318, %v2460, %v2461
        %v2463 = vrot.slane %v2406, 1
        %v2464 = vsel %vm2318, %v2461, %v2463
        %v2465 = vrot.slane %v2407, 1
        %v2466 = vrot.slane %v2408, 1
        %v2467 = vsel %vm2318, %v2465, %v2466
        %v2468 = vrot.slane %v2409, 1
        %v2469 = vsel %vm2318, %v2466, %v2468
        %v2470 = vrot.slane %v2410, 1
        %v2471 = vrot.slane %v2411, 1
        %v2472 = vsel %vm2318, %v2470, %v2471
        %v2473 = vrot.slane %v2412, 1
        %v2474 = vsel %vm2318, %v2471, %v2473
        %v2475 = vrot.slane %v2413, 1
        %v2476 = vrot.slane %v2414, 1
        %v2477 = vsel %vm2318, %v2475, %v2476
        %v2478 = vrot.slane %v2415, 1
        %v2479 = vsel %vm2318, %v2476, %v2478
        %v2496 = vadd.f32 %v2253, %v2442
        %v2497 = vadd.f32 %v2254, %v2444
        %v2498 = vadd.f32 %v2255, %v2447
        %v2499 = vadd.f32 %v2256, %v2449
        %v2500 = vadd.f32 %v2257, %v2452
        %v2501 = vadd.f32 %v2258, %v2454
        %v2502 = vadd.f32 %v2259, %v2457
        %v2503 = vadd.f32 %v2260, %v2459
        %v2504 = vadd.f32 %v2261, %v2462
        %v2505 = vadd.f32 %v2262, %v2464
        %v2506 = vadd.f32 %v2263, %v2467
        %v2507 = vadd.f32 %v2264, %v2469
        %v2508 = vadd.f32 %v2265, %v2472
        %v2509 = vadd.f32 %v2266, %v2474
        %v2510 = vadd.f32 %v2267, %v2477
        %v2511 = vadd.f32 %v2268, %v2479
        %v2512 = vperm.slane %v2067, 4
        %v2513 = vmul.f32 %v1440, %v2512
        %v2514 = vmul.f32 %v1441, %v2512
        %v2515 = vmul.f32 %v1442, %v2512
        %v2516 = vmul.f32 %v1443, %v2512
        %v2517 = vmul.f32 %v1444, %v2512
        %v2518 = vmul.f32 %v1445, %v2512
        %v2519 = vmul.f32 %v1446, %v2512
        %v2520 = vmul.f32 %v1447, %v2512
        %v2521 = vmul.f32 %v1448, %v2512
        %v2522 = vmul.f32 %v1449, %v2512
        %v2523 = vmul.f32 %v1450, %v2512
        %v2524 = vmul.f32 %v1451, %v2512
        %v2525 = vmul.f32 %v1452, %v2512
        %v2526 = vmul.f32 %v1453, %v2512
        %v2527 = vmul.f32 %v1454, %v2512
        %v2528 = vmul.f32 %v1455, %v2512
        %v2529 = vmul.f32 %v1456, %v2512
        %v2530 = vmul.f32 %v1457, %v2512
        %v2531 = vmul.f32 %v1458, %v2512
        %v2532 = vmul.f32 %v1459, %v2512
        %v2533 = vmul.f32 %v1460, %v2512
        %v2534 = vmul.f32 %v1461, %v2512
        %v2535 = vmul.f32 %v1462, %v2512
        %v2536 = vmul.f32 %v1463, %v2512
        %v2561 = vrot.slane %v2513, 1
        %v2562 = vrot.slane %v2514, 1
        %v2563 = vsel %vm2318, %v2561, %v2562
        %v2564 = vrot.slane %v2515, 1
        %v2565 = vsel %vm2318, %v2562, %v2564
        %v2566 = vrot.slane %v2516, 1
        %v2567 = vrot.slane %v2517, 1
        %v2568 = vsel %vm2318, %v2566, %v2567
        %v2569 = vrot.slane %v2518, 1
        %v2570 = vsel %vm2318, %v2567, %v2569
        %v2571 = vrot.slane %v2519, 1
        %v2572 = vrot.slane %v2520, 1
        %v2573 = vsel %vm2318, %v2571, %v2572
        %v2574 = vrot.slane %v2521, 1
        %v2575 = vsel %vm2318, %v2572, %v2574
        %v2576 = vrot.slane %v2522, 1
        %v2577 = vrot.slane %v2523, 1
        %v2578 = vsel %vm2318, %v2576, %v2577
        %v2579 = vrot.slane %v2524, 1
        %v2580 = vsel %vm2318, %v2577, %v2579
        %v2581 = vrot.slane %v2525, 1
        %v2582 = vrot.slane %v2526, 1
        %v2583 = vsel %vm2318, %v2581, %v2582
        %v2584 = vrot.slane %v2527, 1
        %v2585 = vsel %vm2318, %v2582, %v2584
        %v2586 = vrot.slane %v2528, 1
        %v2587 = vrot.slane %v2529, 1
        %v2588 = vsel %vm2318, %v2586, %v2587
        %v2589 = vrot.slane %v2530, 1
        %v2590 = vsel %vm2318, %v2587, %v2589
        %v2591 = vrot.slane %v2531, 1
        %v2592 = vrot.slane %v2532, 1
        %v2593 = vsel %vm2318, %v2591, %v2592
        %v2594 = vrot.slane %v2533, 1
        %v2595 = vsel %vm2318, %v2592, %v2594
        %v2596 = vrot.slane %v2534, 1
        %v2597 = vrot.slane %v2535, 1
        %v2598 = vsel %vm2318, %v2596, %v2597
        %v2599 = vrot.slane %v2536, 1
        %v2600 = vsel %vm2318, %v2597, %v2599
        %v2617 = vadd.f32 %v2375, %v2563
        %v2618 = vadd.f32 %v2376, %v2565
        %v2619 = vadd.f32 %v2377, %v2568
        %v2620 = vadd.f32 %v2378, %v2570
        %v2621 = vadd.f32 %v2379, %v2573
        %v2622 = vadd.f32 %v2380, %v2575
        %v2623 = vadd.f32 %v2381, %v2578
        %v2624 = vadd.f32 %v2382, %v2580
        %v2625 = vadd.f32 %v2383, %v2583
        %v2626 = vadd.f32 %v2384, %v2585
        %v2627 = vadd.f32 %v2385, %v2588
        %v2628 = vadd.f32 %v2386, %v2590
        %v2629 = vadd.f32 %v2387, %v2593
        %v2630 = vadd.f32 %v2388, %v2595
        %v2631 = vadd.f32 %v2389, %v2598
        %v2632 = vadd.f32 %v2390, %v2600
        %v2633 = vperm.slane %v2069, 4
        %v2634 = vmul.f32 %v2040, %v2633
        %v2635 = vmul.f32 %v2041, %v2633
        %v2636 = vmul.f32 %v2042, %v2633
        %v2637 = vmul.f32 %v2043, %v2633
        %v2638 = vmul.f32 %v2044, %v2633
        %v2639 = vmul.f32 %v2045, %v2633
        %v2640 = vmul.f32 %v2046, %v2633
        %v2641 = vmul.f32 %v2047, %v2633
        %v2642 = vmul.f32 %v2048, %v2633
        %v2643 = vmul.f32 %v2049, %v2633
        %v2644 = vmul.f32 %v2050, %v2633
        %v2645 = vmul.f32 %v2051, %v2633
        %v2646 = vmul.f32 %v2052, %v2633
        %v2647 = vmul.f32 %v2053, %v2633
        %v2648 = vmul.f32 %v2054, %v2633
        %v2649 = vmul.f32 %v2055, %v2633
        %v2650 = vmul.f32 %v2056, %v2633
        %v2651 = vmul.f32 %v2057, %v2633
        %v2652 = vmul.f32 %v2058, %v2633
        %v2653 = vmul.f32 %v2059, %v2633
        %v2654 = vmul.f32 %v2060, %v2633
        %v2655 = vmul.f32 %v2061, %v2633
        %v2656 = vmul.f32 %v2062, %v2633
        %v2657 = vmul.f32 %v2063, %v2633
        %v2682 = vrot.slane %v2634, 1
        %v2683 = vrot.slane %v2635, 1
        %v2684 = vsel %vm2318, %v2682, %v2683
        %v2685 = vrot.slane %v2636, 1
        %v2686 = vsel %vm2318, %v2683, %v2685
        %v2687 = vrot.slane %v2637, 1
        %v2688 = vrot.slane %v2638, 1
        %v2689 = vsel %vm2318, %v2687, %v2688
        %v2690 = vrot.slane %v2639, 1
        %v2691 = vsel %vm2318, %v2688, %v2690
        %v2692 = vrot.slane %v2640, 1
        %v2693 = vrot.slane %v2641, 1
        %v2694 = vsel %vm2318, %v2692, %v2693
        %v2695 = vrot.slane %v2642, 1
        %v2696 = vsel %vm2318, %v2693, %v2695
        %v2697 = vrot.slane %v2643, 1
        %v2698 = vrot.slane %v2644, 1
        %v2699 = vsel %vm2318, %v2697, %v2698
        %v2700 = vrot.slane %v2645, 1
        %v2701 = vsel %vm2318, %v2698, %v2700
        %v2702 = vrot.slane %v2646, 1
        %v2703 = vrot.slane %v2647, 1
        %v2704 = vsel %vm2318, %v2702, %v2703
        %v2705 = vrot.slane %v2648, 1
        %v2706 = vsel %vm2318, %v2703, %v2705
        %v2707 = vrot.slane %v2649, 1
        %v2708 = vrot.slane %v2650, 1
        %v2709 = vsel %vm2318, %v2707, %v2708
        %v2710 = vrot.slane %v2651, 1
        %v2711 = vsel %vm2318, %v2708, %v2710
        %v2712 = vrot.slane %v2652, 1
        %v2713 = vrot.slane %v2653, 1
        %v2714 = vsel %vm2318, %v2712, %v2713
        %v2715 = vrot.slane %v2654, 1
        %v2716 = vsel %vm2318, %v2713, %v2715
        %v2717 = vrot.slane %v2655, 1
        %v2718 = vrot.slane %v2656, 1
        %v2719 = vsel %vm2318, %v2717, %v2718
        %v2720 = vrot.slane %v2657, 1
        %v2721 = vsel %vm2318, %v2718, %v2720
        %v2738 = vadd.f32 %v2496, %v2684
        %v2739 = vadd.f32 %v2497, %v2686
        %v2740 = vadd.f32 %v2498, %v2689
        %v2741 = vadd.f32 %v2499, %v2691
        %v2742 = vadd.f32 %v2500, %v2694
        %v2743 = vadd.f32 %v2501, %v2696
        %v2744 = vadd.f32 %v2502, %v2699
        %v2745 = vadd.f32 %v2503, %v2701
        %v2746 = vadd.f32 %v2504, %v2704
        %v2747 = vadd.f32 %v2505, %v2706
        %v2748 = vadd.f32 %v2506, %v2709
        %v2749 = vadd.f32 %v2507, %v2711
        %v2750 = vadd.f32 %v2508, %v2714
        %v2751 = vadd.f32 %v2509, %v2716
        %v2752 = vadd.f32 %v2510, %v2719
        %v2753 = vadd.f32 %v2511, %v2721
        %v2754 = vperm.slane %v2067, 7
        %v2755 = vmul.f32 %v1443, %v2754
        %v2756 = vmul.f32 %v1444, %v2754
        %v2757 = vmul.f32 %v1445, %v2754
        %v2758 = vmul.f32 %v1446, %v2754
        %v2759 = vmul.f32 %v1447, %v2754
        %v2760 = vmul.f32 %v1448, %v2754
        %v2761 = vmul.f32 %v1449, %v2754
        %v2762 = vmul.f32 %v1450, %v2754
        %v2763 = vmul.f32 %v1451, %v2754
        %v2764 = vmul.f32 %v1452, %v2754
        %v2765 = vmul.f32 %v1453, %v2754
        %v2766 = vmul.f32 %v1454, %v2754
        %v2767 = vmul.f32 %v1455, %v2754
        %v2768 = vmul.f32 %v1456, %v2754
        %v2769 = vmul.f32 %v1457, %v2754
        %v2770 = vmul.f32 %v1458, %v2754
        %v2771 = vmul.f32 %v1459, %v2754
        %v2772 = vmul.f32 %v1460, %v2754
        %v2773 = vmul.f32 %v1461, %v2754
        %v2774 = vmul.f32 %v1462, %v2754
        %v2775 = vmul.f32 %v1463, %v2754
        %v2776 = vmul.f32 %v1464, %v2754
        %v2777 = vmul.f32 %v1465, %v2754
        %v2778 = vmul.f32 %v1466, %v2754
        %v2803 = vrot.slane %v2755, 1
        %v2804 = vrot.slane %v2756, 1
        %v2805 = vsel %vm2318, %v2803, %v2804
        %v2806 = vrot.slane %v2757, 1
        %v2807 = vsel %vm2318, %v2804, %v2806
        %v2808 = vrot.slane %v2758, 1
        %v2809 = vrot.slane %v2759, 1
        %v2810 = vsel %vm2318, %v2808, %v2809
        %v2811 = vrot.slane %v2760, 1
        %v2812 = vsel %vm2318, %v2809, %v2811
        %v2813 = vrot.slane %v2761, 1
        %v2814 = vrot.slane %v2762, 1
        %v2815 = vsel %vm2318, %v2813, %v2814
        %v2816 = vrot.slane %v2763, 1
        %v2817 = vsel %vm2318, %v2814, %v2816
        %v2818 = vrot.slane %v2764, 1
        %v2819 = vrot.slane %v2765, 1
        %v2820 = vsel %vm2318, %v2818, %v2819
        %v2821 = vrot.slane %v2766, 1
        %v2822 = vsel %vm2318, %v2819, %v2821
        %v2823 = vrot.slane %v2767, 1
        %v2824 = vrot.slane %v2768, 1
        %v2825 = vsel %vm2318, %v2823, %v2824
        %v2826 = vrot.slane %v2769, 1
        %v2827 = vsel %vm2318, %v2824, %v2826
        %v2828 = vrot.slane %v2770, 1
        %v2829 = vrot.slane %v2771, 1
        %v2830 = vsel %vm2318, %v2828, %v2829
        %v2831 = vrot.slane %v2772, 1
        %v2832 = vsel %vm2318, %v2829, %v2831
        %v2833 = vrot.slane %v2773, 1
        %v2834 = vrot.slane %v2774, 1
        %v2835 = vsel %vm2318, %v2833, %v2834
        %v2836 = vrot.slane %v2775, 1
        %v2837 = vsel %vm2318, %v2834, %v2836
        %v2838 = vrot.slane %v2776, 1
        %v2839 = vrot.slane %v2777, 1
        %v2840 = vsel %vm2318, %v2838, %v2839
        %v2841 = vrot.slane %v2778, 1
        %v2842 = vsel %vm2318, %v2839, %v2841
        %v2859 = vadd.f32 %v2617, %v2805
        %v2860 = vadd.f32 %v2618, %v2807
        %v2861 = vadd.f32 %v2619, %v2810
        %v2862 = vadd.f32 %v2620, %v2812
        %v2863 = vadd.f32 %v2621, %v2815
        %v2864 = vadd.f32 %v2622, %v2817
        %v2865 = vadd.f32 %v2623, %v2820
        %v2866 = vadd.f32 %v2624, %v2822
        %v2867 = vadd.f32 %v2625, %v2825
        %v2868 = vadd.f32 %v2626, %v2827
        %v2869 = vadd.f32 %v2627, %v2830
        %v2870 = vadd.f32 %v2628, %v2832
        %v2871 = vadd.f32 %v2629, %v2835
        %v2872 = vadd.f32 %v2630, %v2837
        %v2873 = vadd.f32 %v2631, %v2840
        %v2874 = vadd.f32 %v2632, %v2842
        %v2875 = vperm.slane %v2069, 7
        %v2876 = vmul.f32 %v2043, %v2875
        %v2877 = vmul.f32 %v2044, %v2875
        %v2878 = vmul.f32 %v2045, %v2875
        %v2879 = vmul.f32 %v2046, %v2875
        %v2880 = vmul.f32 %v2047, %v2875
        %v2881 = vmul.f32 %v2048, %v2875
        %v2882 = vmul.f32 %v2049, %v2875
        %v2883 = vmul.f32 %v2050, %v2875
        %v2884 = vmul.f32 %v2051, %v2875
        %v2885 = vmul.f32 %v2052, %v2875
        %v2886 = vmul.f32 %v2053, %v2875
        %v2887 = vmul.f32 %v2054, %v2875
        %v2888 = vmul.f32 %v2055, %v2875
        %v2889 = vmul.f32 %v2056, %v2875
        %v2890 = vmul.f32 %v2057, %v2875
        %v2891 = vmul.f32 %v2058, %v2875
        %v2892 = vmul.f32 %v2059, %v2875
        %v2893 = vmul.f32 %v2060, %v2875
        %v2894 = vmul.f32 %v2061, %v2875
        %v2895 = vmul.f32 %v2062, %v2875
        %v2896 = vmul.f32 %v2063, %v2875
        %v2897 = vmul.f32 %v2064, %v2875
        %v2898 = vmul.f32 %v2065, %v2875
        %v2899 = vmul.f32 %v2066, %v2875
        %v2924 = vrot.slane %v2876, 1
        %v2925 = vrot.slane %v2877, 1
        %v2926 = vsel %vm2318, %v2924, %v2925
        %v2927 = vrot.slane %v2878, 1
        %v2928 = vsel %vm2318, %v2925, %v2927
        %v2929 = vrot.slane %v2879, 1
        %v2930 = vrot.slane %v2880, 1
        %v2931 = vsel %vm2318, %v2929, %v2930
        %v2932 = vrot.slane %v2881, 1
        %v2933 = vsel %vm2318, %v2930, %v2932
        %v2934 = vrot.slane %v2882, 1
        %v2935 = vrot.slane %v2883, 1
        %v2936 = vsel %vm2318, %v2934, %v2935
        %v2937 = vrot.slane %v2884, 1
        %v2938 = vsel %vm2318, %v2935, %v2937
        %v2939 = vrot.slane %v2885, 1
        %v2940 = vrot.slane %v2886, 1
        %v2941 = vsel %vm2318, %v2939, %v2940
        %v2942 = vrot.slane %v2887, 1
        %v2943 = vsel %vm2318, %v2940, %v2942
        %v2944 = vrot.slane %v2888, 1
        %v2945 = vrot.slane %v2889, 1
        %v2946 = vsel %vm2318, %v2944, %v2945
        %v2947 = vrot.slane %v2890, 1
        %v2948 = vsel %vm2318, %v2945, %v2947
        %v2949 = vrot.slane %v2891, 1
        %v2950 = vrot.slane %v2892, 1
        %v2951 = vsel %vm2318, %v2949, %v2950
        %v2952 = vrot.slane %v2893, 1
        %v2953 = vsel %vm2318, %v2950, %v2952
        %v2954 = vrot.slane %v2894, 1
        %v2955 = vrot.slane %v2895, 1
        %v2956 = vsel %vm2318, %v2954, %v2955
        %v2957 = vrot.slane %v2896, 1
        %v2958 = vsel %vm2318, %v2955, %v2957
        %v2959 = vrot.slane %v2897, 1
        %v2960 = vrot.slane %v2898, 1
        %v2961 = vsel %vm2318, %v2959, %v2960
        %v2962 = vrot.slane %v2899, 1
        %v2963 = vsel %vm2318, %v2960, %v2962
        %v2980 = vadd.f32 %v2738, %v2926
        %v2981 = vadd.f32 %v2739, %v2928
        %v2982 = vadd.f32 %v2740, %v2931
        %v2983 = vadd.f32 %v2741, %v2933
        %v2984 = vadd.f32 %v2742, %v2936
        %v2985 = vadd.f32 %v2743, %v2938
        %v2986 = vadd.f32 %v2744, %v2941
        %v2987 = vadd.f32 %v2745, %v2943
        %v2988 = vadd.f32 %v2746, %v2946
        %v2989 = vadd.f32 %v2747, %v2948
        %v2990 = vadd.f32 %v2748, %v2951
        %v2991 = vadd.f32 %v2749, %v2953
        %v2992 = vadd.f32 %v2750, %v2956
        %v2993 = vadd.f32 %v2751, %v2958
        %v2994 = vadd.f32 %v2752, %v2961
        %v2995 = vadd.f32 %v2753, %v2963
        %v2996 = vperm.slane %v2067, 2
        %v2997 = vmul.f32 %v1437, %v2996
        %v2998 = vmul.f32 %v1438, %v2996
        %v2999 = vmul.f32 %v1439, %v2996
        %v3000 = vmul.f32 %v1440, %v2996
        %v3001 = vmul.f32 %v1441, %v2996
        %v3002 = vmul.f32 %v1442, %v2996
        %v3003 = vmul.f32 %v1443, %v2996
        %v3004 = vmul.f32 %v1444, %v2996
        %v3005 = vmul.f32 %v1445, %v2996
        %v3006 = vmul.f32 %v1446, %v2996
        %v3007 = vmul.f32 %v1447, %v2996
        %v3008 = vmul.f32 %v1448, %v2996
        %v3009 = vmul.f32 %v1449, %v2996
        %v3010 = vmul.f32 %v1450, %v2996
        %v3011 = vmul.f32 %v1451, %v2996
        %v3012 = vmul.f32 %v1452, %v2996
        %v3013 = vmul.f32 %v1453, %v2996
        %v3014 = vmul.f32 %v1454, %v2996
        %v3015 = vmul.f32 %v1455, %v2996
        %v3016 = vmul.f32 %v1456, %v2996
        %v3017 = vmul.f32 %v1457, %v2996
        %v3018 = vmul.f32 %v1458, %v2996
        %v3019 = vmul.f32 %v1459, %v2996
        %v3020 = vmul.f32 %v1460, %v2996
        %vm3045 = vcmask 1045504
        %v3046 = vrot.slane %v2997, 2
        %v3047 = vrot.slane %v2998, 2
        %v3048 = vsel %vm3045, %v3046, %v3047
        %v3049 = vrot.slane %v2999, 2
        %v3050 = vsel %vm3045, %v3047, %v3049
        %v3051 = vrot.slane %v3000, 2
        %v3052 = vrot.slane %v3001, 2
        %v3053 = vsel %vm3045, %v3051, %v3052
        %v3054 = vrot.slane %v3002, 2
        %v3055 = vsel %vm3045, %v3052, %v3054
        %v3056 = vrot.slane %v3003, 2
        %v3057 = vrot.slane %v3004, 2
        %v3058 = vsel %vm3045, %v3056, %v3057
        %v3059 = vrot.slane %v3005, 2
        %v3060 = vsel %vm3045, %v3057, %v3059
        %v3061 = vrot.slane %v3006, 2
        %v3062 = vrot.slane %v3007, 2
        %v3063 = vsel %vm3045, %v3061, %v3062
        %v3064 = vrot.slane %v3008, 2
        %v3065 = vsel %vm3045, %v3062, %v3064
        %v3066 = vrot.slane %v3009, 2
        %v3067 = vrot.slane %v3010, 2
        %v3068 = vsel %vm3045, %v3066, %v3067
        %v3069 = vrot.slane %v3011, 2
        %v3070 = vsel %vm3045, %v3067, %v3069
        %v3071 = vrot.slane %v3012, 2
        %v3072 = vrot.slane %v3013, 2
        %v3073 = vsel %vm3045, %v3071, %v3072
        %v3074 = vrot.slane %v3014, 2
        %v3075 = vsel %vm3045, %v3072, %v3074
        %v3076 = vrot.slane %v3015, 2
        %v3077 = vrot.slane %v3016, 2
        %v3078 = vsel %vm3045, %v3076, %v3077
        %v3079 = vrot.slane %v3017, 2
        %v3080 = vsel %vm3045, %v3077, %v3079
        %v3081 = vrot.slane %v3018, 2
        %v3082 = vrot.slane %v3019, 2
        %v3083 = vsel %vm3045, %v3081, %v3082
        %v3084 = vrot.slane %v3020, 2
        %v3085 = vsel %vm3045, %v3082, %v3084
        %v3102 = vadd.f32 %v2859, %v3048
        %v3103 = vadd.f32 %v2860, %v3050
        %v3104 = vadd.f32 %v2861, %v3053
        %v3105 = vadd.f32 %v2862, %v3055
        %v3106 = vadd.f32 %v2863, %v3058
        %v3107 = vadd.f32 %v2864, %v3060
        %v3108 = vadd.f32 %v2865, %v3063
        %v3109 = vadd.f32 %v2866, %v3065
        %v3110 = vadd.f32 %v2867, %v3068
        %v3111 = vadd.f32 %v2868, %v3070
        %v3112 = vadd.f32 %v2869, %v3073
        %v3113 = vadd.f32 %v2870, %v3075
        %v3114 = vadd.f32 %v2871, %v3078
        %v3115 = vadd.f32 %v2872, %v3080
        %v3116 = vadd.f32 %v2873, %v3083
        %v3117 = vadd.f32 %v2874, %v3085
        %v3118 = vperm.slane %v2069, 2
        %v3119 = vmul.f32 %v2037, %v3118
        %v3120 = vmul.f32 %v2038, %v3118
        %v3121 = vmul.f32 %v2039, %v3118
        %v3122 = vmul.f32 %v2040, %v3118
        %v3123 = vmul.f32 %v2041, %v3118
        %v3124 = vmul.f32 %v2042, %v3118
        %v3125 = vmul.f32 %v2043, %v3118
        %v3126 = vmul.f32 %v2044, %v3118
        %v3127 = vmul.f32 %v2045, %v3118
        %v3128 = vmul.f32 %v2046, %v3118
        %v3129 = vmul.f32 %v2047, %v3118
        %v3130 = vmul.f32 %v2048, %v3118
        %v3131 = vmul.f32 %v2049, %v3118
        %v3132 = vmul.f32 %v2050, %v3118
        %v3133 = vmul.f32 %v2051, %v3118
        %v3134 = vmul.f32 %v2052, %v3118
        %v3135 = vmul.f32 %v2053, %v3118
        %v3136 = vmul.f32 %v2054, %v3118
        %v3137 = vmul.f32 %v2055, %v3118
        %v3138 = vmul.f32 %v2056, %v3118
        %v3139 = vmul.f32 %v2057, %v3118
        %v3140 = vmul.f32 %v2058, %v3118
        %v3141 = vmul.f32 %v2059, %v3118
        %v3142 = vmul.f32 %v2060, %v3118
        %v3167 = vrot.slane %v3119, 2
        %v3168 = vrot.slane %v3120, 2
        %v3169 = vsel %vm3045, %v3167, %v3168
        %v3170 = vrot.slane %v3121, 2
        %v3171 = vsel %vm3045, %v3168, %v3170
        %v3172 = vrot.slane %v3122, 2
        %v3173 = vrot.slane %v3123, 2
        %v3174 = vsel %vm3045, %v3172, %v3173
        %v3175 = vrot.slane %v3124, 2
        %v3176 = vsel %vm3045, %v3173, %v3175
        %v3177 = vrot.slane %v3125, 2
        %v3178 = vrot.slane %v3126, 2
        %v3179 = vsel %vm3045, %v3177, %v3178
        %v3180 = vrot.slane %v3127, 2
        %v3181 = vsel %vm3045, %v3178, %v3180
        %v3182 = vrot.slane %v3128, 2
        %v3183 = vrot.slane %v3129, 2
        %v3184 = vsel %vm3045, %v3182, %v3183
        %v3185 = vrot.slane %v3130, 2
        %v3186 = vsel %vm3045, %v3183, %v3185
        %v3187 = vrot.slane %v3131, 2
        %v3188 = vrot.slane %v3132, 2
        %v3189 = vsel %vm3045, %v3187, %v3188
        %v3190 = vrot.slane %v3133, 2
        %v3191 = vsel %vm3045, %v3188, %v3190
        %v3192 = vrot.slane %v3134, 2
        %v3193 = vrot.slane %v3135, 2
        %v3194 = vsel %vm3045, %v3192, %v3193
        %v3195 = vrot.slane %v3136, 2
        %v3196 = vsel %vm3045, %v3193, %v3195
        %v3197 = vrot.slane %v3137, 2
        %v3198 = vrot.slane %v3138, 2
        %v3199 = vsel %vm3045, %v3197, %v3198
        %v3200 = vrot.slane %v3139, 2
        %v3201 = vsel %vm3045, %v3198, %v3200
        %v3202 = vrot.slane %v3140, 2
        %v3203 = vrot.slane %v3141, 2
        %v3204 = vsel %vm3045, %v3202, %v3203
        %v3205 = vrot.slane %v3142, 2
        %v3206 = vsel %vm3045, %v3203, %v3205
        %v3223 = vadd.f32 %v2980, %v3169
        %v3224 = vadd.f32 %v2981, %v3171
        %v3225 = vadd.f32 %v2982, %v3174
        %v3226 = vadd.f32 %v2983, %v3176
        %v3227 = vadd.f32 %v2984, %v3179
        %v3228 = vadd.f32 %v2985, %v3181
        %v3229 = vadd.f32 %v2986, %v3184
        %v3230 = vadd.f32 %v2987, %v3186
        %v3231 = vadd.f32 %v2988, %v3189
        %v3232 = vadd.f32 %v2989, %v3191
        %v3233 = vadd.f32 %v2990, %v3194
        %v3234 = vadd.f32 %v2991, %v3196
        %v3235 = vadd.f32 %v2992, %v3199
        %v3236 = vadd.f32 %v2993, %v3201
        %v3237 = vadd.f32 %v2994, %v3204
        %v3238 = vadd.f32 %v2995, %v3206
        %v3239 = vperm.slane %v2067, 5
        %v3240 = vmul.f32 %v1440, %v3239
        %v3241 = vmul.f32 %v1441, %v3239
        %v3242 = vmul.f32 %v1442, %v3239
        %v3243 = vmul.f32 %v1443, %v3239
        %v3244 = vmul.f32 %v1444, %v3239
        %v3245 = vmul.f32 %v1445, %v3239
        %v3246 = vmul.f32 %v1446, %v3239
        %v3247 = vmul.f32 %v1447, %v3239
        %v3248 = vmul.f32 %v1448, %v3239
        %v3249 = vmul.f32 %v1449, %v3239
        %v3250 = vmul.f32 %v1450, %v3239
        %v3251 = vmul.f32 %v1451, %v3239
        %v3252 = vmul.f32 %v1452, %v3239
        %v3253 = vmul.f32 %v1453, %v3239
        %v3254 = vmul.f32 %v1454, %v3239
        %v3255 = vmul.f32 %v1455, %v3239
        %v3256 = vmul.f32 %v1456, %v3239
        %v3257 = vmul.f32 %v1457, %v3239
        %v3258 = vmul.f32 %v1458, %v3239
        %v3259 = vmul.f32 %v1459, %v3239
        %v3260 = vmul.f32 %v1460, %v3239
        %v3261 = vmul.f32 %v1461, %v3239
        %v3262 = vmul.f32 %v1462, %v3239
        %v3263 = vmul.f32 %v1463, %v3239
        %v3288 = vrot.slane %v3240, 2
        %v3289 = vrot.slane %v3241, 2
        %v3290 = vsel %vm3045, %v3288, %v3289
        %v3291 = vrot.slane %v3242, 2
        %v3292 = vsel %vm3045, %v3289, %v3291
        %v3293 = vrot.slane %v3243, 2
        %v3294 = vrot.slane %v3244, 2
        %v3295 = vsel %vm3045, %v3293, %v3294
        %v3296 = vrot.slane %v3245, 2
        %v3297 = vsel %vm3045, %v3294, %v3296
        %v3298 = vrot.slane %v3246, 2
        %v3299 = vrot.slane %v3247, 2
        %v3300 = vsel %vm3045, %v3298, %v3299
        %v3301 = vrot.slane %v3248, 2
        %v3302 = vsel %vm3045, %v3299, %v3301
        %v3303 = vrot.slane %v3249, 2
        %v3304 = vrot.slane %v3250, 2
        %v3305 = vsel %vm3045, %v3303, %v3304
        %v3306 = vrot.slane %v3251, 2
        %v3307 = vsel %vm3045, %v3304, %v3306
        %v3308 = vrot.slane %v3252, 2
        %v3309 = vrot.slane %v3253, 2
        %v3310 = vsel %vm3045, %v3308, %v3309
        %v3311 = vrot.slane %v3254, 2
        %v3312 = vsel %vm3045, %v3309, %v3311
        %v3313 = vrot.slane %v3255, 2
        %v3314 = vrot.slane %v3256, 2
        %v3315 = vsel %vm3045, %v3313, %v3314
        %v3316 = vrot.slane %v3257, 2
        %v3317 = vsel %vm3045, %v3314, %v3316
        %v3318 = vrot.slane %v3258, 2
        %v3319 = vrot.slane %v3259, 2
        %v3320 = vsel %vm3045, %v3318, %v3319
        %v3321 = vrot.slane %v3260, 2
        %v3322 = vsel %vm3045, %v3319, %v3321
        %v3323 = vrot.slane %v3261, 2
        %v3324 = vrot.slane %v3262, 2
        %v3325 = vsel %vm3045, %v3323, %v3324
        %v3326 = vrot.slane %v3263, 2
        %v3327 = vsel %vm3045, %v3324, %v3326
        %v3344 = vadd.f32 %v3102, %v3290
        %v3345 = vadd.f32 %v3103, %v3292
        %v3346 = vadd.f32 %v3104, %v3295
        %v3347 = vadd.f32 %v3105, %v3297
        %v3348 = vadd.f32 %v3106, %v3300
        %v3349 = vadd.f32 %v3107, %v3302
        %v3350 = vadd.f32 %v3108, %v3305
        %v3351 = vadd.f32 %v3109, %v3307
        %v3352 = vadd.f32 %v3110, %v3310
        %v3353 = vadd.f32 %v3111, %v3312
        %v3354 = vadd.f32 %v3112, %v3315
        %v3355 = vadd.f32 %v3113, %v3317
        %v3356 = vadd.f32 %v3114, %v3320
        %v3357 = vadd.f32 %v3115, %v3322
        %v3358 = vadd.f32 %v3116, %v3325
        %v3359 = vadd.f32 %v3117, %v3327
        %v3360 = vperm.slane %v2069, 5
        %v3361 = vmul.f32 %v2040, %v3360
        %v3362 = vmul.f32 %v2041, %v3360
        %v3363 = vmul.f32 %v2042, %v3360
        %v3364 = vmul.f32 %v2043, %v3360
        %v3365 = vmul.f32 %v2044, %v3360
        %v3366 = vmul.f32 %v2045, %v3360
        %v3367 = vmul.f32 %v2046, %v3360
        %v3368 = vmul.f32 %v2047, %v3360
        %v3369 = vmul.f32 %v2048, %v3360
        %v3370 = vmul.f32 %v2049, %v3360
        %v3371 = vmul.f32 %v2050, %v3360
        %v3372 = vmul.f32 %v2051, %v3360
        %v3373 = vmul.f32 %v2052, %v3360
        %v3374 = vmul.f32 %v2053, %v3360
        %v3375 = vmul.f32 %v2054, %v3360
        %v3376 = vmul.f32 %v2055, %v3360
        %v3377 = vmul.f32 %v2056, %v3360
        %v3378 = vmul.f32 %v2057, %v3360
        %v3379 = vmul.f32 %v2058, %v3360
        %v3380 = vmul.f32 %v2059, %v3360
        %v3381 = vmul.f32 %v2060, %v3360
        %v3382 = vmul.f32 %v2061, %v3360
        %v3383 = vmul.f32 %v2062, %v3360
        %v3384 = vmul.f32 %v2063, %v3360
        %v3409 = vrot.slane %v3361, 2
        %v3410 = vrot.slane %v3362, 2
        %v3411 = vsel %vm3045, %v3409, %v3410
        %v3412 = vrot.slane %v3363, 2
        %v3413 = vsel %vm3045, %v3410, %v3412
        %v3414 = vrot.slane %v3364, 2
        %v3415 = vrot.slane %v3365, 2
        %v3416 = vsel %vm3045, %v3414, %v3415
        %v3417 = vrot.slane %v3366, 2
        %v3418 = vsel %vm3045, %v3415, %v3417
        %v3419 = vrot.slane %v3367, 2
        %v3420 = vrot.slane %v3368, 2
        %v3421 = vsel %vm3045, %v3419, %v3420
        %v3422 = vrot.slane %v3369, 2
        %v3423 = vsel %vm3045, %v3420, %v3422
        %v3424 = vrot.slane %v3370, 2
        %v3425 = vrot.slane %v3371, 2
        %v3426 = vsel %vm3045, %v3424, %v3425
        %v3427 = vrot.slane %v3372, 2
        %v3428 = vsel %vm3045, %v3425, %v3427
        %v3429 = vrot.slane %v3373, 2
        %v3430 = vrot.slane %v3374, 2
        %v3431 = vsel %vm3045, %v3429, %v3430
        %v3432 = vrot.slane %v3375, 2
        %v3433 = vsel %vm3045, %v3430, %v3432
        %v3434 = vrot.slane %v3376, 2
        %v3435 = vrot.slane %v3377, 2
        %v3436 = vsel %vm3045, %v3434, %v3435
        %v3437 = vrot.slane %v3378, 2
        %v3438 = vsel %vm3045, %v3435, %v3437
        %v3439 = vrot.slane %v3379, 2
        %v3440 = vrot.slane %v3380, 2
        %v3441 = vsel %vm3045, %v3439, %v3440
        %v3442 = vrot.slane %v3381, 2
        %v3443 = vsel %vm3045, %v3440, %v3442
        %v3444 = vrot.slane %v3382, 2
        %v3445 = vrot.slane %v3383, 2
        %v3446 = vsel %vm3045, %v3444, %v3445
        %v3447 = vrot.slane %v3384, 2
        %v3448 = vsel %vm3045, %v3445, %v3447
        %v3465 = vadd.f32 %v3223, %v3411
        %v3466 = vadd.f32 %v3224, %v3413
        %v3467 = vadd.f32 %v3225, %v3416
        %v3468 = vadd.f32 %v3226, %v3418
        %v3469 = vadd.f32 %v3227, %v3421
        %v3470 = vadd.f32 %v3228, %v3423
        %v3471 = vadd.f32 %v3229, %v3426
        %v3472 = vadd.f32 %v3230, %v3428
        %v3473 = vadd.f32 %v3231, %v3431
        %v3474 = vadd.f32 %v3232, %v3433
        %v3475 = vadd.f32 %v3233, %v3436
        %v3476 = vadd.f32 %v3234, %v3438
        %v3477 = vadd.f32 %v3235, %v3441
        %v3478 = vadd.f32 %v3236, %v3443
        %v3479 = vadd.f32 %v3237, %v3446
        %v3480 = vadd.f32 %v3238, %v3448
        %v3481 = vperm.slane %v2068, 0
        %v3482 = vmul.f32 %v1443, %v3481
        %v3483 = vmul.f32 %v1444, %v3481
        %v3484 = vmul.f32 %v1445, %v3481
        %v3485 = vmul.f32 %v1446, %v3481
        %v3486 = vmul.f32 %v1447, %v3481
        %v3487 = vmul.f32 %v1448, %v3481
        %v3488 = vmul.f32 %v1449, %v3481
        %v3489 = vmul.f32 %v1450, %v3481
        %v3490 = vmul.f32 %v1451, %v3481
        %v3491 = vmul.f32 %v1452, %v3481
        %v3492 = vmul.f32 %v1453, %v3481
        %v3493 = vmul.f32 %v1454, %v3481
        %v3494 = vmul.f32 %v1455, %v3481
        %v3495 = vmul.f32 %v1456, %v3481
        %v3496 = vmul.f32 %v1457, %v3481
        %v3497 = vmul.f32 %v1458, %v3481
        %v3498 = vmul.f32 %v1459, %v3481
        %v3499 = vmul.f32 %v1460, %v3481
        %v3500 = vmul.f32 %v1461, %v3481
        %v3501 = vmul.f32 %v1462, %v3481
        %v3502 = vmul.f32 %v1463, %v3481
        %v3503 = vmul.f32 %v1464, %v3481
        %v3504 = vmul.f32 %v1465, %v3481
        %v3505 = vmul.f32 %v1466, %v3481
        %v3530 = vrot.slane %v3482, 2
        %v3531 = vrot.slane %v3483, 2
        %v3532 = vsel %vm3045, %v3530, %v3531
        %v3533 = vrot.slane %v3484, 2
        %v3534 = vsel %vm3045, %v3531, %v3533
        %v3535 = vrot.slane %v3485, 2
        %v3536 = vrot.slane %v3486, 2
        %v3537 = vsel %vm3045, %v3535, %v3536
        %v3538 = vrot.slane %v3487, 2
        %v3539 = vsel %vm3045, %v3536, %v3538
        %v3540 = vrot.slane %v3488, 2
        %v3541 = vrot.slane %v3489, 2
        %v3542 = vsel %vm3045, %v3540, %v3541
        %v3543 = vrot.slane %v3490, 2
        %v3544 = vsel %vm3045, %v3541, %v3543
        %v3545 = vrot.slane %v3491, 2
        %v3546 = vrot.slane %v3492, 2
        %v3547 = vsel %vm3045, %v3545, %v3546
        %v3548 = vrot.slane %v3493, 2
        %v3549 = vsel %vm3045, %v3546, %v3548
        %v3550 = vrot.slane %v3494, 2
        %v3551 = vrot.slane %v3495, 2
        %v3552 = vsel %vm3045, %v3550, %v3551
        %v3553 = vrot.slane %v3496, 2
        %v3554 = vsel %vm3045, %v3551, %v3553
        %v3555 = vrot.slane %v3497, 2
        %v3556 = vrot.slane %v3498, 2
        %v3557 = vsel %vm3045, %v3555, %v3556
        %v3558 = vrot.slane %v3499, 2
        %v3559 = vsel %vm3045, %v3556, %v3558
        %v3560 = vrot.slane %v3500, 2
        %v3561 = vrot.slane %v3501, 2
        %v3562 = vsel %vm3045, %v3560, %v3561
        %v3563 = vrot.slane %v3502, 2
        %v3564 = vsel %vm3045, %v3561, %v3563
        %v3565 = vrot.slane %v3503, 2
        %v3566 = vrot.slane %v3504, 2
        %v3567 = vsel %vm3045, %v3565, %v3566
        %v3568 = vrot.slane %v3505, 2
        %v3569 = vsel %vm3045, %v3566, %v3568
        %v3586 = vadd.f32 %v3344, %v3532
        %v3587 = vadd.f32 %v3345, %v3534
        %v3588 = vadd.f32 %v3346, %v3537
        %v3589 = vadd.f32 %v3347, %v3539
        %v3590 = vadd.f32 %v3348, %v3542
        %v3591 = vadd.f32 %v3349, %v3544
        %v3592 = vadd.f32 %v3350, %v3547
        %v3593 = vadd.f32 %v3351, %v3549
        %v3594 = vadd.f32 %v3352, %v3552
        %v3595 = vadd.f32 %v3353, %v3554
        %v3596 = vadd.f32 %v3354, %v3557
        %v3597 = vadd.f32 %v3355, %v3559
        %v3598 = vadd.f32 %v3356, %v3562
        %v3599 = vadd.f32 %v3357, %v3564
        %v3600 = vadd.f32 %v3358, %v3567
        %v3601 = vadd.f32 %v3359, %v3569
        %v3602 = vperm.slane %v2070, 0
        %v3603 = vmul.f32 %v2043, %v3602
        %v3604 = vmul.f32 %v2044, %v3602
        %v3605 = vmul.f32 %v2045, %v3602
        %v3606 = vmul.f32 %v2046, %v3602
        %v3607 = vmul.f32 %v2047, %v3602
        %v3608 = vmul.f32 %v2048, %v3602
        %v3609 = vmul.f32 %v2049, %v3602
        %v3610 = vmul.f32 %v2050, %v3602
        %v3611 = vmul.f32 %v2051, %v3602
        %v3612 = vmul.f32 %v2052, %v3602
        %v3613 = vmul.f32 %v2053, %v3602
        %v3614 = vmul.f32 %v2054, %v3602
        %v3615 = vmul.f32 %v2055, %v3602
        %v3616 = vmul.f32 %v2056, %v3602
        %v3617 = vmul.f32 %v2057, %v3602
        %v3618 = vmul.f32 %v2058, %v3602
        %v3619 = vmul.f32 %v2059, %v3602
        %v3620 = vmul.f32 %v2060, %v3602
        %v3621 = vmul.f32 %v2061, %v3602
        %v3622 = vmul.f32 %v2062, %v3602
        %v3623 = vmul.f32 %v2063, %v3602
        %v3624 = vmul.f32 %v2064, %v3602
        %v3625 = vmul.f32 %v2065, %v3602
        %v3626 = vmul.f32 %v2066, %v3602
        %v3651 = vrot.slane %v3603, 2
        %v3652 = vrot.slane %v3604, 2
        %v3653 = vsel %vm3045, %v3651, %v3652
        %v3654 = vrot.slane %v3605, 2
        %v3655 = vsel %vm3045, %v3652, %v3654
        %v3656 = vrot.slane %v3606, 2
        %v3657 = vrot.slane %v3607, 2
        %v3658 = vsel %vm3045, %v3656, %v3657
        %v3659 = vrot.slane %v3608, 2
        %v3660 = vsel %vm3045, %v3657, %v3659
        %v3661 = vrot.slane %v3609, 2
        %v3662 = vrot.slane %v3610, 2
        %v3663 = vsel %vm3045, %v3661, %v3662
        %v3664 = vrot.slane %v3611, 2
        %v3665 = vsel %vm3045, %v3662, %v3664
        %v3666 = vrot.slane %v3612, 2
        %v3667 = vrot.slane %v3613, 2
        %v3668 = vsel %vm3045, %v3666, %v3667
        %v3669 = vrot.slane %v3614, 2
        %v3670 = vsel %vm3045, %v3667, %v3669
        %v3671 = vrot.slane %v3615, 2
        %v3672 = vrot.slane %v3616, 2
        %v3673 = vsel %vm3045, %v3671, %v3672
        %v3674 = vrot.slane %v3617, 2
        %v3675 = vsel %vm3045, %v3672, %v3674
        %v3676 = vrot.slane %v3618, 2
        %v3677 = vrot.slane %v3619, 2
        %v3678 = vsel %vm3045, %v3676, %v3677
        %v3679 = vrot.slane %v3620, 2
        %v3680 = vsel %vm3045, %v3677, %v3679
        %v3681 = vrot.slane %v3621, 2
        %v3682 = vrot.slane %v3622, 2
        %v3683 = vsel %vm3045, %v3681, %v3682
        %v3684 = vrot.slane %v3623, 2
        %v3685 = vsel %vm3045, %v3682, %v3684
        %v3686 = vrot.slane %v3624, 2
        %v3687 = vrot.slane %v3625, 2
        %v3688 = vsel %vm3045, %v3686, %v3687
        %v3689 = vrot.slane %v3626, 2
        %v3690 = vsel %vm3045, %v3687, %v3689
        %v3707 = vadd.f32 %v3465, %v3653
        %v3708 = vadd.f32 %v3466, %v3655
        %v3709 = vadd.f32 %v3467, %v3658
        %v3710 = vadd.f32 %v3468, %v3660
        %v3711 = vadd.f32 %v3469, %v3663
        %v3712 = vadd.f32 %v3470, %v3665
        %v3713 = vadd.f32 %v3471, %v3668
        %v3714 = vadd.f32 %v3472, %v3670
        %v3715 = vadd.f32 %v3473, %v3673
        %v3716 = vadd.f32 %v3474, %v3675
        %v3717 = vadd.f32 %v3475, %v3678
        %v3718 = vadd.f32 %v3476, %v3680
        %v3719 = vadd.f32 %v3477, %v3683
        %v3720 = vadd.f32 %v3478, %v3685
        %v3721 = vadd.f32 %v3479, %v3688
        %v3722 = vadd.f32 %v3480, %v3690
        %v3723 = vxor.u32 %v3707, 2147483648
        %v3724 = vxor.u32 %v3708, 2147483648
        %v3725 = vxor.u32 %v3709, 2147483648
        %v3726 = vxor.u32 %v3710, 2147483648
        %v3727 = vxor.u32 %v3711, 2147483648
        %v3728 = vxor.u32 %v3712, 2147483648
        %v3729 = vxor.u32 %v3713, 2147483648
        %v3730 = vxor.u32 %v3714, 2147483648
        %v3731 = vxor.u32 %v3715, 2147483648
        %v3732 = vxor.u32 %v3716, 2147483648
        %v3733 = vxor.u32 %v3717, 2147483648
        %v3734 = vxor.u32 %v3718, 2147483648
        %v3735 = vxor.u32 %v3719, 2147483648
        %v3736 = vxor.u32 %v3720, 2147483648
        %v3737 = vxor.u32 %v3721, 2147483648
        %v3738 = vxor.u32 %v3722, 2147483648
        %v3739 = vmul.f32 %v3723, 1.442695
        %v3740 = vpow.pop %v3739
        %v3741 = vmul.f32 %v3724, 1.442695
        %v3742 = vpow.pop %v3741
        %v3743 = vmul.f32 %v3725, 1.442695
        %v3744 = vpow.pop %v3743
        %v3745 = vmul.f32 %v3726, 1.442695
        %v3746 = vpow.pop %v3745
        %v3747 = vmul.f32 %v3727, 1.442695
        %v3748 = vpow.pop %v3747
        %v3749 = vmul.f32 %v3728, 1.442695
        %v3750 = vpow.pop %v3749
        %v3751 = vmul.f32 %v3729, 1.442695
        %v3752 = vpow.pop %v3751
        %v3753 = vmul.f32 %v3730, 1.442695
        %v3754 = vpow.pop %v3753
        %v3755 = vmul.f32 %v3731, 1.442695
        %v3756 = vpow.pop %v3755
        %v3757 = vmul.f32 %v3732, 1.442695
        %v3758 = vpow.pop %v3757
        %v3759 = vmul.f32 %v3733, 1.442695
        %v3760 = vpow.pop %v3759
        %v3761 = vmul.f32 %v3734, 1.442695
        %v3762 = vpow.pop %v3761
        %v3763 = vmul.f32 %v3735, 1.442695
        %v3764 = vpow.pop %v3763
        %v3765 = vmul.f32 %v3736, 1.442695
        %v3766 = vpow.pop %v3765
        %v3767 = vmul.f32 %v3737, 1.442695
        %v3768 = vpow.pop %v3767
        %v3769 = vmul.f32 %v3738, 1.442695
        %v3770 = vpow.pop %v3769
        %v3771 = vadd.f32 %v3740, 1.0
        %v3772 = vadd.f32 %v3742, 1.0
        %v3773 = vadd.f32 %v3744, 1.0
        %v3774 = vadd.f32 %v3746, 1.0
        %v3775 = vadd.f32 %v3748, 1.0
        %v3776 = vadd.f32 %v3750, 1.0
        %v3777 = vadd.f32 %v3752, 1.0
        %v3778 = vadd.f32 %v3754, 1.0
        %v3779 = vadd.f32 %v3756, 1.0
        %v3780 = vadd.f32 %v3758, 1.0
        %v3781 = vadd.f32 %v3760, 1.0
        %v3782 = vadd.f32 %v3762, 1.0
        %v3783 = vadd.f32 %v3764, 1.0
        %v3784 = vadd.f32 %v3766, 1.0
        %v3785 = vadd.f32 %v3768, 1.0
        %v3786 = vadd.f32 %v3770, 1.0
        %v3787 = vrcp.pop %v3771
        %v3788 = vmul.f32 %v3771, %v3787
        %v3789 = vsub.f32 1.0, %v3788
        %v3790 = vmul.f32 %v3787, %v3789
        %v3791 = vadd.f32 %v3787, %v3790
        %vm3792 = vweird.f32 %v3771
        %vm3793 = vweird.f32 %v3787
        %vm3794 = vmor %vm3792, %vm3793
        %v3795 = vsel %vm3794, %v3787, %v3791
        %v3796 = vand.u32 2147483647, %v3771
        %vm3797 = vcmp.eq.f32.partialorder %v3796, 8.507059e+37
        %v3798 = vand.u32 %v3771, 2147483648
        %v3799 = vor.u32 1.1754944e-38, %v3798
        %v3800 = vsel %vm3797, %v3799, %v3795
        %v3801 = vmul.f32 1.0, %v3800
        %v3802 = vrcp.pop %v3772
        %v3803 = vmul.f32 %v3772, %v3802
        %v3804 = vsub.f32 1.0, %v3803
        %v3805 = vmul.f32 %v3802, %v3804
        %v3806 = vadd.f32 %v3802, %v3805
        %vm3807 = vweird.f32 %v3772
        %vm3808 = vweird.f32 %v3802
        %vm3809 = vmor %vm3807, %vm3808
        %v3810 = vsel %vm3809, %v3802, %v3806
        %v3811 = vand.u32 2147483647, %v3772
        %vm3812 = vcmp.eq.f32.partialorder %v3811, 8.507059e+37
        %v3813 = vand.u32 %v3772, 2147483648
        %v3814 = vor.u32 1.1754944e-38, %v3813
        %v3815 = vsel %vm3812, %v3814, %v3810
        %v3816 = vmul.f32 1.0, %v3815
        %v3817 = vrcp.pop %v3773
        %v3818 = vmul.f32 %v3773, %v3817
        %v3819 = vsub.f32 1.0, %v3818
        %v3820 = vmul.f32 %v3817, %v3819
        %v3821 = vadd.f32 %v3817, %v3820
        %vm3822 = vweird.f32 %v3773
        %vm3823 = vweird.f32 %v3817
        %vm3824 = vmor %vm3822, %vm3823
        %v3825 = vsel %vm3824, %v3817, %v3821
        %v3826 = vand.u32 2147483647, %v3773
        %vm3827 = vcmp.eq.f32.partialorder %v3826, 8.507059e+37
        %v3828 = vand.u32 %v3773, 2147483648
        %v3829 = vor.u32 1.1754944e-38, %v3828
        %v3830 = vsel %vm3827, %v3829, %v3825
        %v3831 = vmul.f32 1.0, %v3830
        %v3832 = vrcp.pop %v3774
        %v3833 = vmul.f32 %v3774, %v3832
        %v3834 = vsub.f32 1.0, %v3833
        %v3835 = vmul.f32 %v3832, %v3834
        %v3836 = vadd.f32 %v3832, %v3835
        %vm3837 = vweird.f32 %v3774
        %vm3838 = vweird.f32 %v3832
        %vm3839 = vmor %vm3837, %vm3838
        %v3840 = vsel %vm3839, %v3832, %v3836
        %v3841 = vand.u32 2147483647, %v3774
        %vm3842 = vcmp.eq.f32.partialorder %v3841, 8.507059e+37
        %v3843 = vand.u32 %v3774, 2147483648
        %v3844 = vor.u32 1.1754944e-38, %v3843
        %v3845 = vsel %vm3842, %v3844, %v3840
        %v3846 = vmul.f32 1.0, %v3845
        %v3847 = vrcp.pop %v3775
        %v3848 = vmul.f32 %v3775, %v3847
        %v3849 = vsub.f32 1.0, %v3848
        %v3850 = vmul.f32 %v3847, %v3849
        %v3851 = vadd.f32 %v3847, %v3850
        %vm3852 = vweird.f32 %v3775
        %vm3853 = vweird.f32 %v3847
        %vm3854 = vmor %vm3852, %vm3853
        %v3855 = vsel %vm3854, %v3847, %v3851
        %v3856 = vand.u32 2147483647, %v3775
        %vm3857 = vcmp.eq.f32.partialorder %v3856, 8.507059e+37
        %v3858 = vand.u32 %v3775, 2147483648
        %v3859 = vor.u32 1.1754944e-38, %v3858
        %v3860 = vsel %vm3857, %v3859, %v3855
        %v3861 = vmul.f32 1.0, %v3860
        %v3862 = vrcp.pop %v3776
        %v3863 = vmul.f32 %v3776, %v3862
        %v3864 = vsub.f32 1.0, %v3863
        %v3865 = vmul.f32 %v3862, %v3864
        %v3866 = vadd.f32 %v3862, %v3865
        %vm3867 = vweird.f32 %v3776
        %vm3868 = vweird.f32 %v3862
        %vm3869 = vmor %vm3867, %vm3868
        %v3870 = vsel %vm3869, %v3862, %v3866
        %v3871 = vand.u32 2147483647, %v3776
        %vm3872 = vcmp.eq.f32.partialorder %v3871, 8.507059e+37
        %v3873 = vand.u32 %v3776, 2147483648
        %v3874 = vor.u32 1.1754944e-38, %v3873
        %v3875 = vsel %vm3872, %v3874, %v3870
        %v3876 = vmul.f32 1.0, %v3875
        %v3877 = vrcp.pop %v3777
        %v3878 = vmul.f32 %v3777, %v3877
        %v3879 = vsub.f32 1.0, %v3878
        %v3880 = vmul.f32 %v3877, %v3879
        %v3881 = vadd.f32 %v3877, %v3880
        %vm3882 = vweird.f32 %v3777
        %vm3883 = vweird.f32 %v3877
        %vm3884 = vmor %vm3882, %vm3883
        %v3885 = vsel %vm3884, %v3877, %v3881
        %v3886 = vand.u32 2147483647, %v3777
        %vm3887 = vcmp.eq.f32.partialorder %v3886, 8.507059e+37
        %v3888 = vand.u32 %v3777, 2147483648
        %v3889 = vor.u32 1.1754944e-38, %v3888
        %v3890 = vsel %vm3887, %v3889, %v3885
        %v3891 = vmul.f32 1.0, %v3890
        %v3892 = vrcp.pop %v3778
        %v3893 = vmul.f32 %v3778, %v3892
        %v3894 = vsub.f32 1.0, %v3893
        %v3895 = vmul.f32 %v3892, %v3894
        %v3896 = vadd.f32 %v3892, %v3895
        %vm3897 = vweird.f32 %v3778
        %vm3898 = vweird.f32 %v3892
        %vm3899 = vmor %vm3897, %vm3898
        %v3900 = vsel %vm3899, %v3892, %v3896
        %v3901 = vand.u32 2147483647, %v3778
        %vm3902 = vcmp.eq.f32.partialorder %v3901, 8.507059e+37
        %v3903 = vand.u32 %v3778, 2147483648
        %v3904 = vor.u32 1.1754944e-38, %v3903
        %v3905 = vsel %vm3902, %v3904, %v3900
        %v3906 = vmul.f32 1.0, %v3905
        %v3907 = vrcp.pop %v3779
        %v3908 = vmul.f32 %v3779, %v3907
        %v3909 = vsub.f32 1.0, %v3908
        %v3910 = vmul.f32 %v3907, %v3909
        %v3911 = vadd.f32 %v3907, %v3910
        %vm3912 = vweird.f32 %v3779
        %vm3913 = vweird.f32 %v3907
        %vm3914 = vmor %vm3912, %vm3913
        %v3915 = vsel %vm3914, %v3907, %v3911
        %v3916 = vand.u32 2147483647, %v3779
        %vm3917 = vcmp.eq.f32.partialorder %v3916, 8.507059e+37
        %v3918 = vand.u32 %v3779, 2147483648
        %v3919 = vor.u32 1.1754944e-38, %v3918
        %v3920 = vsel %vm3917, %v3919, %v3915
        %v3921 = vmul.f32 1.0, %v3920
        %v3922 = vrcp.pop %v3780
        %v3923 = vmul.f32 %v3780, %v3922
        %v3924 = vsub.f32 1.0, %v3923
        %v3925 = vmul.f32 %v3922, %v3924
        %v3926 = vadd.f32 %v3922, %v3925
        %vm3927 = vweird.f32 %v3780
        %vm3928 = vweird.f32 %v3922
        %vm3929 = vmor %vm3927, %vm3928
        %v3930 = vsel %vm3929, %v3922, %v3926
        %v3931 = vand.u32 2147483647, %v3780
        %vm3932 = vcmp.eq.f32.partialorder %v3931, 8.507059e+37
        %v3933 = vand.u32 %v3780, 2147483648
        %v3934 = vor.u32 1.1754944e-38, %v3933
        %v3935 = vsel %vm3932, %v3934, %v3930
        %v3936 = vmul.f32 1.0, %v3935
        %v3937 = vrcp.pop %v3781
        %v3938 = vmul.f32 %v3781, %v3937
        %v3939 = vsub.f32 1.0, %v3938
        %v3940 = vmul.f32 %v3937, %v3939
        %v3941 = vadd.f32 %v3937, %v3940
        %vm3942 = vweird.f32 %v3781
        %vm3943 = vweird.f32 %v3937
        %vm3944 = vmor %vm3942, %vm3943
        %v3945 = vsel %vm3944, %v3937, %v3941
        %v3946 = vand.u32 2147483647, %v3781
        %vm3947 = vcmp.eq.f32.partialorder %v3946, 8.507059e+37
        %v3948 = vand.u32 %v3781, 2147483648
        %v3949 = vor.u32 1.1754944e-38, %v3948
        %v3950 = vsel %vm3947, %v3949, %v3945
        %v3951 = vmul.f32 1.0, %v3950
        %v3952 = vrcp.pop %v3782
        %v3953 = vmul.f32 %v3782, %v3952
        %v3954 = vsub.f32 1.0, %v3953
        %v3955 = vmul.f32 %v3952, %v3954
        %v3956 = vadd.f32 %v3952, %v3955
        %vm3957 = vweird.f32 %v3782
        %vm3958 = vweird.f32 %v3952
        %vm3959 = vmor %vm3957, %vm3958
        %v3960 = vsel %vm3959, %v3952, %v3956
        %v3961 = vand.u32 2147483647, %v3782
        %vm3962 = vcmp.eq.f32.partialorder %v3961, 8.507059e+37
        %v3963 = vand.u32 %v3782, 2147483648
        %v3964 = vor.u32 1.1754944e-38, %v3963
        %v3965 = vsel %vm3962, %v3964, %v3960
        %v3966 = vmul.f32 1.0, %v3965
        %v3967 = vrcp.pop %v3783
        %v3968 = vmul.f32 %v3783, %v3967
        %v3969 = vsub.f32 1.0, %v3968
        %v3970 = vmul.f32 %v3967, %v3969
        %v3971 = vadd.f32 %v3967, %v3970
        %vm3972 = vweird.f32 %v3783
        %vm3973 = vweird.f32 %v3967
        %vm3974 = vmor %vm3972, %vm3973
        %v3975 = vsel %vm3974, %v3967, %v3971
        %v3976 = vand.u32 2147483647, %v3783
        %vm3977 = vcmp.eq.f32.partialorder %v3976, 8.507059e+37
        %v3978 = vand.u32 %v3783, 2147483648
        %v3979 = vor.u32 1.1754944e-38, %v3978
        %v3980 = vsel %vm3977, %v3979, %v3975
        %v3981 = vmul.f32 1.0, %v3980
        %v3982 = vrcp.pop %v3784
        %v3983 = vmul.f32 %v3784, %v3982
        %v3984 = vsub.f32 1.0, %v3983
        %v3985 = vmul.f32 %v3982, %v3984
        %v3986 = vadd.f32 %v3982, %v3985
        %vm3987 = vweird.f32 %v3784
        %vm3988 = vweird.f32 %v3982
        %vm3989 = vmor %vm3987, %vm3988
        %v3990 = vsel %vm3989, %v3982, %v3986
        %v3991 = vand.u32 2147483647, %v3784
        %vm3992 = vcmp.eq.f32.partialorder %v3991, 8.507059e+37
        %v3993 = vand.u32 %v3784, 2147483648
        %v3994 = vor.u32 1.1754944e-38, %v3993
        %v3995 = vsel %vm3992, %v3994, %v3990
        %v3996 = vmul.f32 1.0, %v3995
        %v3997 = vrcp.pop %v3785
        %v3998 = vmul.f32 %v3785, %v3997
        %v3999 = vsub.f32 1.0, %v3998
        %v4000 = vmul.f32 %v3997, %v3999
        %v4001 = vadd.f32 %v3997, %v4000
        %vm4002 = vweird.f32 %v3785
        %vm4003 = vweird.f32 %v3997
        %vm4004 = vmor %vm4002, %vm4003
        %v4005 = vsel %vm4004, %v3997, %v4001
        %v4006 = vand.u32 2147483647, %v3785
        %vm4007 = vcmp.eq.f32.partialorder %v4006, 8.507059e+37
        %v4008 = vand.u32 %v3785, 2147483648
        %v4009 = vor.u32 1.1754944e-38, %v4008
        %v4010 = vsel %vm4007, %v4009, %v4005
        %v4011 = vmul.f32 1.0, %v4010
        %v4012 = vrcp.pop %v3786
        %v4013 = vmul.f32 %v3786, %v4012
        %v4014 = vsub.f32 1.0, %v4013
        %v4015 = vmul.f32 %v4012, %v4014
        %v4016 = vadd.f32 %v4012, %v4015
        %vm4017 = vweird.f32 %v3786
        %vm4018 = vweird.f32 %v4012
        %vm4019 = vmor %vm4017, %vm4018
        %v4020 = vsel %vm4019, %v4012, %v4016
        %v4021 = vand.u32 2147483647, %v3786
        %vm4022 = vcmp.eq.f32.partialorder %v4021, 8.507059e+37
        %v4023 = vand.u32 %v3786, 2147483648
        %v4024 = vor.u32 1.1754944e-38, %v4023
        %v4025 = vsel %vm4022, %v4024, %v4020
        %v4026 = vmul.f32 1.0, %v4025
        %v4027 = vmul.f32 %v3707, %v3801
        %v4028 = vmul.f32 %v3708, %v3816
        %v4029 = vmul.f32 %v3709, %v3831
        %v4030 = vmul.f32 %v3710, %v3846
        %v4031 = vmul.f32 %v3711, %v3861
        %v4032 = vmul.f32 %v3712, %v3876
        %v4033 = vmul.f32 %v3713, %v3891
        %v4034 = vmul.f32 %v3714, %v3906
        %v4035 = vmul.f32 %v3715, %v3921
        %v4036 = vmul.f32 %v3716, %v3936
        %v4037 = vmul.f32 %v3717, %v3951
        %v4038 = vmul.f32 %v3718, %v3966
        %v4039 = vmul.f32 %v3719, %v3981
        %v4040 = vmul.f32 %v3720, %v3996
        %v4041 = vmul.f32 %v3721, %v4011
        %v4042 = vmul.f32 %v3722, %v4026
        %v4043 = vmul.f32 %v3586, %v4027
        %v4044 = vmul.f32 %v3587, %v4028
        %v4045 = vmul.f32 %v3588, %v4029
        %v4046 = vmul.f32 %v3589, %v4030
        %v4047 = vmul.f32 %v3590, %v4031
        %v4048 = vmul.f32 %v3591, %v4032
        %v4049 = vmul.f32 %v3592, %v4033
        %v4050 = vmul.f32 %v3593, %v4034
        %v4051 = vmul.f32 %v3594, %v4035
        %v4052 = vmul.f32 %v3595, %v4036
        %v4053 = vmul.f32 %v3596, %v4037
        %v4054 = vmul.f32 %v3597, %v4038
        %v4055 = vmul.f32 %v3598, %v4039
        %v4056 = vmul.f32 %v3599, %v4040
        %v4057 = vmul.f32 %v3600, %v4041
        %v4058 = vmul.f32 %v3601, %v4042
        %v4059 = vld [vmem:[%s7] sm:$0xff]
        %v4060 = vld [vmem:[%s7 + $0x8] sm:$0xff]
        %v4061 = vld [vmem:[%s7 + $0x10] sm:$0xff]
        %v4062 = vld [vmem:[%s7 + $0x18] sm:$0xff]
        %vm4063 = vcmask 261120
        %v4065 = vsel %vm4063, %v4043, 0
        %v4068 = vsel %vm4063, %v4044, 0
        %v4071 = vsel %vm4063, %v4045, 0
        %v4074 = vsel %vm4063, %v4046, 0
        %v4077 = vsel %vm4063, %v4047, 0
        %v4080 = vsel %vm4063, %v4048, 0
        %v4083 = vsel %vm4063, %v4049, 0
        %v4086 = vsel %vm4063, %v4050, 0
        %v4089 = vsel %vm4063, %v4051, 0
        %v4092 = vsel %vm4063, %v4052, 0
        %v4095 = vsel %vm4063, %v4053, 0
        %v4098 = vsel %vm4063, %v4054, 0
        %v4101 = vsel %vm4063, %v4055, 0
        %v4104 = vsel %vm4063, %v4056, 0
        %v4107 = vsel %vm4063, %v4057, 0
        %v4110 = vsel %vm4063, %v4058, 0
        %4112 = vmatpush.msra.mxu0 0.0
        %4113 = vmatpush.msra.mxu0 0.0
        %4114 = vmatpush.msra.mxu0 0.0
        %4115 = vmatpush.msra.mxu0 0.0
        %4116 = vmatpush.msra.mxu0 0.0
        %4117 = vmatpush.msra.mxu0 0.0
        %4118 = vmatpush.msra.mxu0 0.0
        %4119 = vmatpush.msra.mxu0 0.0
        %4120 = vmatpush.msra.mxu0 0.0
        %4121 = vmatpush.msra.mxu0 0.0
        %4122 = vmatpush.msra.mxu0 0.0
        %4123 = vmatpush.msra.mxu0 0.0
        %4124 = vmatpush.msra.mxu0 %v4062
        %4125 = vmatpush.msra.mxu0 %v4061
        %4126 = vmatpush.msra.mxu0 %v4060
        %4127 = vmatpush.msra.mxu0 %v4059
        %4128 = vmatmul.f32.gmra.mxu0 %v4065
        %v4129 = vpop.f32.mrf.mxu0
        %v4130 = vadd.f32 0.0, %v4129
        %4131 = vmatmul.f32.gmra.mxu0 %v4068
        %v4132 = vpop.f32.mrf.mxu0
        %v4133 = vadd.f32 0.0, %v4132
        %4134 = vmatmul.f32.gmra.mxu0 %v4071
        %v4135 = vpop.f32.mrf.mxu0
        %v4136 = vadd.f32 0.0, %v4135
        %4137 = vmatmul.f32.gmra.mxu0 %v4074
        %v4138 = vpop.f32.mrf.mxu0
        %v4139 = vadd.f32 0.0, %v4138
        %4140 = vmatmul.f32.gmra.mxu0 %v4077
        %v4141 = vpop.f32.mrf.mxu0
        %v4142 = vadd.f32 0.0, %v4141
        %4143 = vmatmul.f32.gmra.mxu0 %v4080
        %v4144 = vpop.f32.mrf.mxu0
        %v4145 = vadd.f32 0.0, %v4144
        %4146 = vmatmul.f32.gmra.mxu0 %v4083
        %v4147 = vpop.f32.mrf.mxu0
        %v4148 = vadd.f32 0.0, %v4147
        %4149 = vmatmul.f32.gmra.mxu0 %v4086
        %v4150 = vpop.f32.mrf.mxu0
        %v4151 = vadd.f32 0.0, %v4150
        %4152 = vmatmul.f32.gmra.mxu0 %v4089
        %v4153 = vpop.f32.mrf.mxu0
        %v4154 = vadd.f32 0.0, %v4153
        %4155 = vmatmul.f32.gmra.mxu0 %v4092
        %v4156 = vpop.f32.mrf.mxu0
        %v4157 = vadd.f32 0.0, %v4156
        %4158 = vmatmul.f32.gmra.mxu0 %v4095
        %v4159 = vpop.f32.mrf.mxu0
        %v4160 = vadd.f32 0.0, %v4159
        %4161 = vmatmul.f32.gmra.mxu0 %v4098
        %v4162 = vpop.f32.mrf.mxu0
        %v4163 = vadd.f32 0.0, %v4162
        %4164 = vmatmul.f32.gmra.mxu0 %v4101
        %v4165 = vpop.f32.mrf.mxu0
        %v4166 = vadd.f32 0.0, %v4165
        %4167 = vmatmul.f32.gmra.mxu0 %v4104
        %v4168 = vpop.f32.mrf.mxu0
        %v4169 = vadd.f32 0.0, %v4168
        %4170 = vmatmul.f32.gmra.mxu0 %v4107
        %v4171 = vpop.f32.mrf.mxu0
        %v4172 = vadd.f32 0.0, %v4171
        %4173 = vmatmul.f32.gmra.mxu0 %v4110
        %v4174 = vpop.f32.mrf.mxu0
        %v4175 = vadd.f32 0.0, %v4174
        %4176 = vdwg.mxu0
        %4177 = vst.msk [vmem:[%s415] sm:$0xff] %vm490, %v4130
        %4178 = vst.msk [vmem:[%s415 + $0x8] sm:$0xff] %vm490, %v4133
        %4179 = vst.msk [vmem:[%s415 + $0x10] sm:$0xff] %vm490, %v4136
        %4180 = vst.msk [vmem:[%s415 + $0x18] sm:$0xff] %vm490, %v4139
        %4181 = vst.msk [vmem:[%s415 + $0x20] sm:$0xff] %vm490, %v4142
        %4182 = vst.msk [vmem:[%s415 + $0x28] sm:$0xff] %vm490, %v4145
        %4183 = vst.msk [vmem:[%s415 + $0x30] sm:$0xff] %vm490, %v4148
        %4184 = vst.msk [vmem:[%s415 + $0x38] sm:$0xff] %vm490, %v4151
        %4185 = vst.msk [vmem:[%s415 + $0x40] sm:$0xff] %vm490, %v4154
        %4186 = vst.msk [vmem:[%s415 + $0x48] sm:$0xff] %vm490, %v4157
        %4187 = vst.msk [vmem:[%s415 + $0x50] sm:$0xff] %vm490, %v4160
        %4188 = vst.msk [vmem:[%s415 + $0x58] sm:$0xff] %vm490, %v4163
        %4189 = vst.msk [vmem:[%s415 + $0x60] sm:$0xff] %vm490, %v4166
        %4190 = vst.msk [vmem:[%s415 + $0x68] sm:$0xff] %vm490, %v4169
        %4191 = vst.msk [vmem:[%s415 + $0x70] sm:$0xff] %vm490, %v4172
        %4192 = vst.msk [vmem:[%s415 + $0x78] sm:$0xff] %vm490, %v4175
        %s4193 = sand.u32 %s243, 1
        %s4194 = scalar_lea.sflag [#allocation4], %s4193
        %s4195 = sand.u32 %s243, 1
        %s4196 = smul.addr %s4195, 128
        %s4197 = scalar_lea.vmem [#allocation3], %s4196
        // Predicated region
        $region53: #{tpu_custom_call.1} parent=51 // pred_check
          %p4198 = pneg %p253
        $region54: #{tpu_custom_call.1} parent=51 // pred_check_branch
          %4200 = sbr.rel (%p4198) target = $region56
        $region55: #{tpu_custom_call.1} parent=51 // pred_region
          %s4201 = smul.u32 8, %s27
          %4203 = vsyncadd %s4194, 0
          %s4204 = smul.addr %s4201, 2
          %s4205 = smul.addr %s26, 32
          %s4206 = sadd.s32 %s4204, %s4205
          %s4207 = smul.addr %s4206, 8
          %s4208 = scalar_lea.hbm %s8, %s4207
          %s4209 = sshll.u32 %s4197, 4
          %s4210 = int_to_ptr.vmem [resolvable:$true] %s4209
          %s4211 = sshll.u32 %s4208, 4
          %s4212 = int_to_ptr.hbm [resolvable:$true] %s4211
          %4217 = dma.vmem_to_hbm [thread:$0]  %s4210, 2048, %s4212, %s4194, 128, 128, 8
        $region56: #{tpu_custom_call.1} parent=51 // pred_fallthru
          _
      $region52: #{tpu_custom_call.1} parent=5 // pred_fallthru
        _
      %p4218 = scmp.le.s32.totalorder 2, %s17
      // Predicated region
      $region57: #{tpu_custom_call.1} parent=5 // pred_check
        %p4219 = pneg %p4218
      $region58: #{tpu_custom_call.1} parent=5 // pred_check_branch
        %4221 = sbr.rel (%p4219) target = $region60
      $region59: #{tpu_custom_call.1} parent=5 // pred_region
        %s4222 = ssub.s32 %s17, 2
        // Predicated region
        $region61: #{tpu_custom_call.1} parent=59 // pred_check
          %p4223 = pneg %p259
        $region62: #{tpu_custom_call.1} parent=59 // pred_check_branch
          %4225 = sbr.rel (%p4223) target = $region64
        $region63: #{tpu_custom_call.1} parent=59 // pred_region
          %s4226 = sand.u32 %s244, 1
          %s4227 = scalar_lea.sflag [#allocation4], %s4226
          %s4228 = sand.u32 %s244, 1
          %s4229 = smul.addr %s4228, 128
          %s4230 = scalar_lea.vmem [#allocation3], %s4229
          %4232 = dma.done %s4227, 2048
        $region64: #{tpu_custom_call.1} parent=59 // pred_fallthru
          _
      $region60: #{tpu_custom_call.1} parent=5 // pred_fallthru
        _
    $region6: #{tpu_custom_call.1} parent=1 // loop_footer
      %s21 = sadd.s32 1, %s17
    $region7: #{tpu_custom_call.1} parent=1 // loop_footer_branch
      %16 = sbr.rel target = $region3
    $region8: #{tpu_custom_call.1} parent=1 // loop_exit
      _
    %4233 = vsyncpa [#allocation4], 1
    %s4234 = scalar_lea.sflag [#allocation4], 1
    %4235 = vsyncpa %s4234, 1

</llo_original>
